<compile_context>
chip_gen: v5e
topology: v5e:2x2
jax: 0.10.0
libtpu: 0.0.40
codegen_flags: <defaults>
</compile_context>

<pallas_src>
import functools
import math

import jax
import jax.numpy as jnp
from jax import lax
from jax.experimental import pallas as pl
from jax.experimental.pallas import tpu as pltpu

LN_EPS = 1e-5  # PyTorch nn.LayerNorm default


def _layernorm(x, gamma, beta, eps):
    mu = jnp.mean(x, axis=-1, keepdims=True)
    xc = x - mu
    var = jnp.mean(xc * xc, axis=-1, keepdims=True)
    return xc * lax.rsqrt(var + eps) * gamma + beta


def attn_block_kernel(x_ref, g1_ref, b1_ref, wqkv_ref, bqkv_ref, wp_ref, bp_ref,
                      o_ref, *, n_head, head_size):
    """y = x + c_proj(causal_attention(ln_1(x))) for one batch element."""
    x = x_ref[0].astype(jnp.float32)                      # (T, C)
    T, C = x.shape
    mxu_dtype = wqkv_ref.dtype

    h = _layernorm(x, g1_ref[...].astype(jnp.float32),
                   b1_ref[...].astype(jnp.float32), LN_EPS)

    # Fused QKV projection for all heads: one (T, C) @ (C, 3C) matmul.
    qkv = jnp.dot(h.astype(mxu_dtype), wqkv_ref[...],
                  preferred_element_type=jnp.float32)
    qkv = qkv + bqkv_ref[...].astype(jnp.float32)
    q = qkv[:, 0:C]
    k = qkv[:, C:2 * C]
    v = qkv[:, 2 * C:3 * C]

    # Causal additive bias, computed once and reused across all heads.
    row = lax.broadcasted_iota(jnp.int32, (T, T), 0)
    col = lax.broadcasted_iota(jnp.int32, (T, T), 1)
    causal_bias = jnp.where(row >= col, 0.0, -1e30).astype(jnp.float32)

    scale = 1.0 / math.sqrt(head_size)
    heads = []
    for hh in range(n_head):
        sl = slice(hh * head_size, (hh + 1) * head_size)
        qh = q[:, sl].astype(mxu_dtype)
        kh = k[:, sl].astype(mxu_dtype)
        vh = v[:, sl].astype(mxu_dtype)
        # q @ k^T without materializing a transpose: contract the head dim.
        s = lax.dot_general(qh, kh, (((1,), (1,)), ((), ())),
                            preferred_element_type=jnp.float32)
        s = s * scale + causal_bias
        m = jnp.max(s, axis=-1, keepdims=True)
        p = jnp.exp(s - m)
        denom = jnp.sum(p, axis=-1, keepdims=True)
        p = p * pl.reciprocal(denom, approx=True)
        # TODO(synk): attn_dropout is an eval-mode identity (no in-kernel RNG).
        heads.append(jnp.dot(p.astype(mxu_dtype), vh,
                             preferred_element_type=jnp.float32))

    y = jnp.concatenate(heads, axis=-1)                   # (T, C)
    y = jnp.dot(y.astype(wp_ref.dtype), wp_ref[...],
                preferred_element_type=jnp.float32)
    y = y + bp_ref[...].astype(jnp.float32)
    # TODO(synk): resid_dropout is an eval-mode identity.
    o_ref[0] = (x + y).astype(o_ref.dtype)


def mlp_block_kernel(x_ref, g2_ref, b2_ref, wfc_ref, bfc_ref, wpr_ref, bpr_ref,
                     o_ref):
    """y = x + c_proj(NewGELU(c_fc(ln_2(x)))) for one (tq, C) row tile."""
    x = x_ref[0].astype(jnp.float32)                      # (tq, C)
    h = _layernorm(x, g2_ref[...].astype(jnp.float32),
                   b2_ref[...].astype(jnp.float32), LN_EPS)

    u = jnp.dot(h.astype(wfc_ref.dtype), wfc_ref[...],
                preferred_element_type=jnp.float32)
    u = u + bfc_ref[...].astype(jnp.float32)

    # NewGELU (tanh approximation) — tanh runs on the EUP slot.
    c = math.sqrt(2.0 / math.pi)
    g = 0.5 * u * (1.0 + jnp.tanh(c * (u + 0.044715 * u * u * u)))

    y = jnp.dot(g.astype(wpr_ref.dtype), wpr_ref[...],
                preferred_element_type=jnp.float32)
    y = y + bpr_ref[...].astype(jnp.float32)
    # TODO(synk): mlp dropout is an eval-mode identity.
    o_ref[0] = (x + y).astype(o_ref.dtype)


def block_forward(x, params, *, n_head):
    """Transformer Block forward (eval mode). x: (B, T, C) float32/bf16."""
    B, T, C = x.shape
    assert C % n_head == 0
    assert T % 8 == 0, "T must be a multiple of 8 (sublane tiling)"
    head_size = C // n_head

    (ln1_g, ln1_b, wqkv, bqkv, wp, bp,
     ln2_g, ln2_b, wfc, bfc, wpr, bpr) = params

    # ---- attention sub-block: y1 = x + attn(ln_1(x)) -----------------------
    attn_kernel = functools.partial(attn_block_kernel, n_head=n_head,
                                    head_size=head_size)
    y1 = pl.pallas_call(
        attn_kernel,
        out_shape=jax.ShapeDtypeStruct((B, T, C), x.dtype),
        grid=(B,),
        in_specs=[
            pl.BlockSpec((1, T, C), lambda b: (b, 0, 0)),      # x
            pl.BlockSpec((1, C), lambda b: (0, 0)),            # ln1 gamma
            pl.BlockSpec((1, C), lambda b: (0, 0)),            # ln1 beta
            pl.BlockSpec((C, 3 * C), lambda b: (0, 0)),        # fused Wqkv
            pl.BlockSpec((1, 3 * C), lambda b: (0, 0)),        # fused bqkv
            pl.BlockSpec((C, C), lambda b: (0, 0)),            # Wproj
            pl.BlockSpec((1, C), lambda b: (0, 0)),            # bproj
        ],
        out_specs=pl.BlockSpec((1, T, C), lambda b: (b, 0, 0)),
        compiler_params=pltpu.CompilerParams(
            dimension_semantics=("parallel",)),
    )(x, ln1_g, ln1_b, wqkv, bqkv, wp, bp)

    # ---- MLP sub-block: out = y1 + mlp(ln_2(y1)) ---------------------------
    tq = T
    for cand in (512, 256, 128):                # prefer large MXU-friendly row tiles
        if T % cand == 0:
            tq = cand
            break

    out = pl.pallas_call(
        mlp_block_kernel,
        out_shape=jax.ShapeDtypeStruct((B, T, C), x.dtype),
        grid=(B, T // tq),
        in_specs=[
            pl.BlockSpec((1, tq, C), lambda b, t: (b, t, 0)),  # y1 row tile
            pl.BlockSpec((1, C), lambda b, t: (0, 0)),         # ln2 gamma
            pl.BlockSpec((1, C), lambda b, t: (0, 0)),         # ln2 beta
            pl.BlockSpec((C, 4 * C), lambda b, t: (0, 0)),     # W_fc
            pl.BlockSpec((1, 4 * C), lambda b, t: (0, 0)),     # b_fc
            pl.BlockSpec((4 * C, C), lambda b, t: (0, 0)),     # W_mlp_proj
            pl.BlockSpec((1, C), lambda b, t: (0, 0)),         # b_mlp_proj
        ],
        out_specs=pl.BlockSpec((1, tq, C), lambda b, t: (b, t, 0)),
        compiler_params=pltpu.CompilerParams(
            dimension_semantics=("parallel", "parallel")),
    )(y1, ln2_g, ln2_b, wfc, bfc, wpr, bpr)
    return out


def reference_block(x, params, *, n_head):
    """Pure-JAX mirror of Block.forward (separate_heads attention, eval)."""
    (ln1_g, ln1_b, wqkv, bqkv, wp, bp,
     ln2_g, ln2_b, wfc, bfc, wpr, bpr) = params
    B, T, C = x.shape
    hs = C // n_head

    def ln(z, g, b):
        mu = z.mean(-1, keepdims=True)
        var = ((z - mu) ** 2).mean(-1, keepdims=True)
        return (z - mu) / jnp.sqrt(var + LN_EPS) * g + b

    h = ln(x, ln1_g, ln1_b)
    qkv = h @ wqkv + bqkv
    q, k, v = qkv[..., :C], qkv[..., C:2 * C], qkv[..., 2 * C:]
    causal = jnp.tril(jnp.ones((T, T), dtype=bool))
    heads = []
    for i in range(n_head):
        sl = slice(i * hs, (i + 1) * hs)
        att = (q[..., sl] @ jnp.swapaxes(k[..., sl], -1, -2)) / math.sqrt(hs)
        att = jnp.where(causal, att, -jnp.inf)
        att = jax.nn.softmax(att, axis=-1)
        heads.append(att @ v[..., sl])
    y = jnp.concatenate(heads, axis=-1) @ wp + bp
    x1 = x + y
    h2 = ln(x1, ln2_g, ln2_b)
    u = h2 @ wfc + bfc
    g = 0.5 * u * (1.0 + jnp.tanh(math.sqrt(2.0 / math.pi)
                                  * (u + 0.044715 * u ** 3)))
    return x1 + g @ wpr + bpr


if __name__ == "__main__":
    # Small config consistent with the module: n_embd % n_head == 0,
    # lane-dense C (multiple of 128), modest T (block_size).
    B, T = 2, 128
    n_embd, n_head = 128, 4
    C = n_embd
    encoder_var = 1.0
    sigma = (encoder_var / n_embd) ** 0.5

    key = jax.random.PRNGKey(0)
    ks = jax.random.split(key, 10)

    # mulo_init: weights ~ N(0, sigma), biases ~ N(0, 1), LayerNorm (1, 0).
    # Per-head k/q/v weights are pre-stacked & transposed into one (C, 3C)
    # QKV matrix ([Q_heads | K_heads | V_heads]); c_proj/c_fc are (in, out).
    ln1_g = jnp.ones((1, C), jnp.float32)
    ln1_b = jnp.zeros((1, C), jnp.float32)
    ln2_g = jnp.ones((1, C), jnp.float32)
    ln2_b = jnp.zeros((1, C), jnp.float32)
    wqkv = sigma * jax.random.normal(ks[0], (C, 3 * C), jnp.float32)
    bqkv = jax.random.normal(ks[1], (1, 3 * C), jnp.float32)
    wp = sigma * jax.random.normal(ks[2], (C, C), jnp.float32)
    bp = jax.random.normal(ks[3], (1, C), jnp.float32)
    wfc = sigma * jax.random.normal(ks[4], (C, 4 * C), jnp.float32)
    bfc = jax.random.normal(ks[5], (1, 4 * C), jnp.float32)
    wpr = sigma * jax.random.normal(ks[6], (4 * C, C), jnp.float32)
    bpr = jax.random.normal(ks[7], (1, C), jnp.float32)

    x = jax.random.normal(ks[8], (B, T, C), jnp.float32)

    params = (ln1_g, ln1_b, wqkv, bqkv, wp, bp,
              ln2_g, ln2_b, wfc, bfc, wpr, bpr)

    out = block_forward(x, params, n_head=n_head)
    out = jax.block_until_ready(out)

    ref = reference_block(x, params, n_head=n_head)
    assert out.shape == (B, T, C)
    # Loose-ish tolerance accounts for the EUP approximate reciprocal in the
    # softmax normalization; all matmuls here run in f32 with f32 accumulation.
    assert jnp.allclose(out, ref, atol=2e-2, rtol=2e-2), float(
        jnp.max(jnp.abs(out - ref)))

    print("KERNEL_OK")
</pallas_src>

<mosaic_0001>
module attributes {stable_mosaic.version = 11 : i64} {
  func.func @attn_block_kernel(%arg0: i32, %arg1: memref<1x128x128xf32, #tpu.memory_space<vmem>>, %arg2: memref<1x128xf32, #tpu.memory_space<vmem>>, %arg3: memref<1x128xf32, #tpu.memory_space<vmem>>, %arg4: memref<128x384xf32, #tpu.memory_space<vmem>>, %arg5: memref<1x384xf32, #tpu.memory_space<vmem>>, %arg6: memref<128x128xf32, #tpu.memory_space<vmem>>, %arg7: memref<1x128xf32, #tpu.memory_space<vmem>>, %arg8: memref<1x128x128xf32, #tpu.memory_space<vmem>>) attributes {dimension_semantics = [#tpu.dimension_semantics<parallel>], iteration_bounds = array<i64: 2>, scalar_prefetch = 0 : i64, scratch_operands = 0 : i64, tpu.core_type = #tpu.core_type<tc>, window_params = [{transform_indices = @transform_0, window_bounds = array<i64: 1, 128, 128>}, {pipeline_mode = #tpu.pipeline_mode<synchronous>, transform_indices = @transform_1, window_bounds = array<i64: 1, 128>}, {pipeline_mode = #tpu.pipeline_mode<synchronous>, transform_indices = @transform_2, window_bounds = array<i64: 1, 128>}, {pipeline_mode = #tpu.pipeline_mode<synchronous>, transform_indices = @transform_3, window_bounds = array<i64: 128, 384>}, {pipeline_mode = #tpu.pipeline_mode<synchronous>, transform_indices = @transform_4, window_bounds = array<i64: 1, 384>}, {pipeline_mode = #tpu.pipeline_mode<synchronous>, transform_indices = @transform_5, window_bounds = array<i64: 128, 128>}, {pipeline_mode = #tpu.pipeline_mode<synchronous>, transform_indices = @transform_6, window_bounds = array<i64: 1, 128>}, {transform_indices = @transform_7, window_bounds = array<i64: 1, 128, 128>}]} {
    %c0 = arith.constant 0 : index
    %c0_0 = arith.constant 0 : index
    %c0_1 = arith.constant 0 : index
    %0 = vector.load %arg1[%c0, %c0_0, %c0_1] : memref<1x128x128xf32, #tpu.memory_space<vmem>>, vector<1x128x128xf32>
    %1 = vector.shape_cast %0 : vector<1x128x128xf32> to vector<128x128xf32>
    %c0_2 = arith.constant 0 : index
    %c0_3 = arith.constant 0 : index
    %2 = vector.load %arg2[%c0_2, %c0_3] : memref<1x128xf32, #tpu.memory_space<vmem>>, vector<1x128xf32>
    %c0_4 = arith.constant 0 : index
    %c0_5 = arith.constant 0 : index
    %3 = vector.load %arg3[%c0_4, %c0_5] : memref<1x128xf32, #tpu.memory_space<vmem>>, vector<1x128xf32>
    %cst = arith.constant dense<0.000000e+00> : vector<128xf32>
    %4 = vector.multi_reduction <add>, %1, %cst [1] : vector<128x128xf32> to vector<128xf32>
    %5 = vector.shape_cast %4 : vector<128xf32> to vector<128x1xf32>
    %cst_6 = arith.constant 1.280000e+02 : f32
    %6 = vector.broadcast %cst_6 : f32 to vector<128x1xf32>
    %7 = arith.divf %5, %6 : vector<128x1xf32>
    %8 = vector.broadcast %7 : vector<128x1xf32> to vector<128x128xf32>
    %9 = arith.subf %1, %8 : vector<128x128xf32>
    %10 = arith.mulf %9, %9 : vector<128x128xf32>
    %cst_7 = arith.constant dense<0.000000e+00> : vector<128xf32>
    %11 = vector.multi_reduction <add>, %10, %cst_7 [1] : vector<128x128xf32> to vector<128xf32>
    %12 = vector.shape_cast %11 : vector<128xf32> to vector<128x1xf32>
    %cst_8 = arith.constant 1.280000e+02 : f32
    %13 = vector.broadcast %cst_8 : f32 to vector<128x1xf32>
    %14 = arith.divf %12, %13 : vector<128x1xf32>
    %cst_9 = arith.constant 9.99999974E-6 : f32
    %15 = vector.broadcast %cst_9 : f32 to vector<128x1xf32>
    %16 = arith.addf %14, %15 : vector<128x1xf32>
    %17 = math.rsqrt %16 : vector<128x1xf32>
    %18 = vector.broadcast %17 : vector<128x1xf32> to vector<128x128xf32>
    %19 = arith.mulf %9, %18 : vector<128x128xf32>
    %20 = vector.broadcast %2 : vector<1x128xf32> to vector<128x128xf32>
    %21 = arith.mulf %19, %20 : vector<128x128xf32>
    %22 = vector.broadcast %3 : vector<1x128xf32> to vector<128x128xf32>
    %23 = arith.addf %21, %22 : vector<128x128xf32>
    %c0_10 = arith.constant 0 : index
    %c0_11 = arith.constant 0 : index
    %24 = vector.load %arg4[%c0_10, %c0_11] : memref<128x384xf32, #tpu.memory_space<vmem>>, vector<128x384xf32>
    %cst_12 = arith.constant dense<0.000000e+00> : vector<128x384xf32>
    %25 = tpu.matmul %23, %24, %cst_12 {dimension_numbers = #tpu.dot_dimension_numbers<[1], [0], [0], [1], [0, 0, 1, 1], [], []>} : vector<128x128xf32>, vector<128x384xf32>, vector<128x384xf32> -> vector<128x384xf32>
    %c0_13 = arith.constant 0 : index
    %c0_14 = arith.constant 0 : index
    %26 = vector.load %arg5[%c0_13, %c0_14] : memref<1x384xf32, #tpu.memory_space<vmem>>, vector<1x384xf32>
    %27 = vector.broadcast %26 : vector<1x384xf32> to vector<128x384xf32>
    %28 = arith.addf %25, %27 : vector<128x384xf32>
    %29 = vector.extract_strided_slice %28 {offsets = [0, 0], sizes = [128, 128], strides = [1, 1]} : vector<128x384xf32> to vector<128x128xf32>
    %30 = vector.extract_strided_slice %28 {offsets = [0, 128], sizes = [128, 128], strides = [1, 1]} : vector<128x384xf32> to vector<128x128xf32>
    %31 = vector.extract_strided_slice %28 {offsets = [0, 256], sizes = [128, 128], strides = [1, 1]} : vector<128x384xf32> to vector<128x128xf32>
    %32 = tpu.iota {dimensions = array<i32: 0>} : vector<128x128xi32>
    %33 = tpu.iota {dimensions = array<i32: 1>} : vector<128x128xi32>
    %34 = arith.cmpi sge, %32, %33 : vector<128x128xi32>
    %cst_15 = arith.constant 0.000000e+00 : f32
    %cst_16 = arith.constant -1.000000e+30 : f32
    %35 = vector.broadcast %cst_15 : f32 to vector<128x128xf32>
    %36 = vector.broadcast %cst_16 : f32 to vector<128x128xf32>
    %37 = arith.select %34, %35, %36 : vector<128x128xi1>, vector<128x128xf32>
    %38 = vector.extract_strided_slice %29 {offsets = [0, 0], sizes = [128, 32], strides = [1, 1]} : vector<128x128xf32> to vector<128x32xf32>
    %39 = vector.extract_strided_slice %30 {offsets = [0, 0], sizes = [128, 32], strides = [1, 1]} : vector<128x128xf32> to vector<128x32xf32>
    %40 = vector.extract_strided_slice %31 {offsets = [0, 0], sizes = [128, 32], strides = [1, 1]} : vector<128x128xf32> to vector<128x32xf32>
    %cst_17 = arith.constant dense<0.000000e+00> : vector<128x128xf32>
    %41 = tpu.matmul %38, %39, %cst_17 {dimension_numbers = #tpu.dot_dimension_numbers<[1], [1], [0], [0], [0, 0, 1, 0], [], []>} : vector<128x32xf32>, vector<128x32xf32>, vector<128x128xf32> -> vector<128x128xf32>
    %cst_18 = arith.constant 0.176776692 : f32
    %42 = vector.broadcast %cst_18 : f32 to vector<128x128xf32>
    %43 = arith.mulf %41, %42 : vector<128x128xf32>
    %44 = arith.addf %43, %37 : vector<128x128xf32>
    %cst_19 = arith.constant dense<0xFF800000> : vector<128xf32>
    %45 = vector.multi_reduction <maximumf>, %44, %cst_19 [1] : vector<128x128xf32> to vector<128xf32>
    %46 = vector.shape_cast %45 : vector<128xf32> to vector<128x1xf32>
    %47 = vector.broadcast %46 : vector<128x1xf32> to vector<128x128xf32>
    %48 = arith.subf %44, %47 : vector<128x128xf32>
    %49 = math.exp %48 : vector<128x128xf32>
    %cst_20 = arith.constant dense<0.000000e+00> : vector<128xf32>
    %50 = vector.multi_reduction <add>, %49, %cst_20 [1] : vector<128x128xf32> to vector<128xf32>
    %51 = vector.shape_cast %50 : vector<128xf32> to vector<128x1xf32>
    %52 = tpu.reciprocal %51 {approx = true} : vector<128x1xf32> -> vector<128x1xf32>
    %53 = vector.broadcast %52 : vector<128x1xf32> to vector<128x128xf32>
    %54 = arith.mulf %49, %53 : vector<128x128xf32>
    %cst_21 = arith.constant dense<0.000000e+00> : vector<128x32xf32>
    %55 = tpu.matmul %54, %40, %cst_21 {dimension_numbers = #tpu.dot_dimension_numbers<[1], [0], [0], [1], [0, 0, 1, 1], [], []>} : vector<128x128xf32>, vector<128x32xf32>, vector<128x32xf32> -> vector<128x32xf32>
    %56 = vector.extract_strided_slice %29 {offsets = [0, 32], sizes = [128, 32], strides = [1, 1]} : vector<128x128xf32> to vector<128x32xf32>
    %57 = vector.extract_strided_slice %30 {offsets = [0, 32], sizes = [128, 32], strides = [1, 1]} : vector<128x128xf32> to vector<128x32xf32>
    %58 = vector.extract_strided_slice %31 {offsets = [0, 32], sizes = [128, 32], strides = [1, 1]} : vector<128x128xf32> to vector<128x32xf32>
    %cst_22 = arith.constant dense<0.000000e+00> : vector<128x128xf32>
    %59 = tpu.matmul %56, %57, %cst_22 {dimension_numbers = #tpu.dot_dimension_numbers<[1], [1], [0], [0], [0, 0, 1, 0], [], []>} : vector<128x32xf32>, vector<128x32xf32>, vector<128x128xf32> -> vector<128x128xf32>
    %cst_23 = arith.constant 0.176776692 : f32
    %60 = vector.broadcast %cst_23 : f32 to vector<128x128xf32>
    %61 = arith.mulf %59, %60 : vector<128x128xf32>
    %62 = arith.addf %61, %37 : vector<128x128xf32>
    %cst_24 = arith.constant dense<0xFF800000> : vector<128xf32>
    %63 = vector.multi_reduction <maximumf>, %62, %cst_24 [1] : vector<128x128xf32> to vector<128xf32>
    %64 = vector.shape_cast %63 : vector<128xf32> to vector<128x1xf32>
    %65 = vector.broadcast %64 : vector<128x1xf32> to vector<128x128xf32>
    %66 = arith.subf %62, %65 : vector<128x128xf32>
    %67 = math.exp %66 : vector<128x128xf32>
    %cst_25 = arith.constant dense<0.000000e+00> : vector<128xf32>
    %68 = vector.multi_reduction <add>, %67, %cst_25 [1] : vector<128x128xf32> to vector<128xf32>
    %69 = vector.shape_cast %68 : vector<128xf32> to vector<128x1xf32>
    %70 = tpu.reciprocal %69 {approx = true} : vector<128x1xf32> -> vector<128x1xf32>
    %71 = vector.broadcast %70 : vector<128x1xf32> to vector<128x128xf32>
    %72 = arith.mulf %67, %71 : vector<128x128xf32>
    %cst_26 = arith.constant dense<0.000000e+00> : vector<128x32xf32>
    %73 = tpu.matmul %72, %58, %cst_26 {dimension_numbers = #tpu.dot_dimension_numbers<[1], [0], [0], [1], [0, 0, 1, 1], [], []>} : vector<128x128xf32>, vector<128x32xf32>, vector<128x32xf32> -> vector<128x32xf32>
    %74 = vector.extract_strided_slice %29 {offsets = [0, 64], sizes = [128, 32], strides = [1, 1]} : vector<128x128xf32> to vector<128x32xf32>
    %75 = vector.extract_strided_slice %30 {offsets = [0, 64], sizes = [128, 32], strides = [1, 1]} : vector<128x128xf32> to vector<128x32xf32>
    %76 = vector.extract_strided_slice %31 {offsets = [0, 64], sizes = [128, 32], strides = [1, 1]} : vector<128x128xf32> to vector<128x32xf32>
    %cst_27 = arith.constant dense<0.000000e+00> : vector<128x128xf32>
    %77 = tpu.matmul %74, %75, %cst_27 {dimension_numbers = #tpu.dot_dimension_numbers<[1], [1], [0], [0], [0, 0, 1, 0], [], []>} : vector<128x32xf32>, vector<128x32xf32>, vector<128x128xf32> -> vector<128x128xf32>
    %cst_28 = arith.constant 0.176776692 : f32
    %78 = vector.broadcast %cst_28 : f32 to vector<128x128xf32>
    %79 = arith.mulf %77, %78 : vector<128x128xf32>
    %80 = arith.addf %79, %37 : vector<128x128xf32>
    %cst_29 = arith.constant dense<0xFF800000> : vector<128xf32>
    %81 = vector.multi_reduction <maximumf>, %80, %cst_29 [1] : vector<128x128xf32> to vector<128xf32>
    %82 = vector.shape_cast %81 : vector<128xf32> to vector<128x1xf32>
    %83 = vector.broadcast %82 : vector<128x1xf32> to vector<128x128xf32>
    %84 = arith.subf %80, %83 : vector<128x128xf32>
    %85 = math.exp %84 : vector<128x128xf32>
    %cst_30 = arith.constant dense<0.000000e+00> : vector<128xf32>
    %86 = vector.multi_reduction <add>, %85, %cst_30 [1] : vector<128x128xf32> to vector<128xf32>
    %87 = vector.shape_cast %86 : vector<128xf32> to vector<128x1xf32>
    %88 = tpu.reciprocal %87 {approx = true} : vector<128x1xf32> -> vector<128x1xf32>
    %89 = vector.broadcast %88 : vector<128x1xf32> to vector<128x128xf32>
    %90 = arith.mulf %85, %89 : vector<128x128xf32>
    %cst_31 = arith.constant dense<0.000000e+00> : vector<128x32xf32>
    %91 = tpu.matmul %90, %76, %cst_31 {dimension_numbers = #tpu.dot_dimension_numbers<[1], [0], [0], [1], [0, 0, 1, 1], [], []>} : vector<128x128xf32>, vector<128x32xf32>, vector<128x32xf32> -> vector<128x32xf32>
    %92 = vector.extract_strided_slice %29 {offsets = [0, 96], sizes = [128, 32], strides = [1, 1]} : vector<128x128xf32> to vector<128x32xf32>
    %93 = vector.extract_strided_slice %30 {offsets = [0, 96], sizes = [128, 32], strides = [1, 1]} : vector<128x128xf32> to vector<128x32xf32>
    %94 = vector.extract_strided_slice %31 {offsets = [0, 96], sizes = [128, 32], strides = [1, 1]} : vector<128x128xf32> to vector<128x32xf32>
    %cst_32 = arith.constant dense<0.000000e+00> : vector<128x128xf32>
    %95 = tpu.matmul %92, %93, %cst_32 {dimension_numbers = #tpu.dot_dimension_numbers<[1], [1], [0], [0], [0, 0, 1, 0], [], []>} : vector<128x32xf32>, vector<128x32xf32>, vector<128x128xf32> -> vector<128x128xf32>
    %cst_33 = arith.constant 0.176776692 : f32
    %96 = vector.broadcast %cst_33 : f32 to vector<128x128xf32>
    %97 = arith.mulf %95, %96 : vector<128x128xf32>
    %98 = arith.addf %97, %37 : vector<128x128xf32>
    %cst_34 = arith.constant dense<0xFF800000> : vector<128xf32>
    %99 = vector.multi_reduction <maximumf>, %98, %cst_34 [1] : vector<128x128xf32> to vector<128xf32>
    %100 = vector.shape_cast %99 : vector<128xf32> to vector<128x1xf32>
    %101 = vector.broadcast %100 : vector<128x1xf32> to vector<128x128xf32>
    %102 = arith.subf %98, %101 : vector<128x128xf32>
    %103 = math.exp %102 : vector<128x128xf32>
    %cst_35 = arith.constant dense<0.000000e+00> : vector<128xf32>
    %104 = vector.multi_reduction <add>, %103, %cst_35 [1] : vector<128x128xf32> to vector<128xf32>
    %105 = vector.shape_cast %104 : vector<128xf32> to vector<128x1xf32>
    %106 = tpu.reciprocal %105 {approx = true} : vector<128x1xf32> -> vector<128x1xf32>
    %107 = vector.broadcast %106 : vector<128x1xf32> to vector<128x128xf32>
    %108 = arith.mulf %103, %107 : vector<128x128xf32>
    %cst_36 = arith.constant dense<0.000000e+00> : vector<128x32xf32>
    %109 = tpu.matmul %108, %94, %cst_36 {dimension_numbers = #tpu.dot_dimension_numbers<[1], [0], [0], [1], [0, 0, 1, 1], [], []>} : vector<128x128xf32>, vector<128x32xf32>, vector<128x32xf32> -> vector<128x32xf32>
    %110 = tpu.concatenate %55, %73, %91, %109 in 1 : vector<128x32xf32>, vector<128x32xf32>, vector<128x32xf32>, vector<128x32xf32> -> vector<128x128xf32>
    %c0_37 = arith.constant 0 : index
    %c0_38 = arith.constant 0 : index
    %111 = vector.load %arg6[%c0_37, %c0_38] : memref<128x128xf32, #tpu.memory_space<vmem>>, vector<128x128xf32>
    %cst_39 = arith.constant dense<0.000000e+00> : vector<128x128xf32>
    %112 = tpu.matmul %110, %111, %cst_39 {dimension_numbers = #tpu.dot_dimension_numbers<[1], [0], [0], [1], [0, 0, 1, 1], [], []>} : vector<128x128xf32>, vector<128x128xf32>, vector<128x128xf32> -> vector<128x128xf32>
    %c0_40 = arith.constant 0 : index
    %c0_41 = arith.constant 0 : index
    %113 = vector.load %arg7[%c0_40, %c0_41] : memref<1x128xf32, #tpu.memory_space<vmem>>, vector<1x128xf32>
    %114 = vector.broadcast %113 : vector<1x128xf32> to vector<128x128xf32>
    %115 = arith.addf %112, %114 : vector<128x128xf32>
    %116 = arith.addf %1, %115 : vector<128x128xf32>
    %c0_42 = arith.constant 0 : index
    %c0_43 = arith.constant 0 : index
    %c0_44 = arith.constant 0 : index
    %117 = vector.load %arg8[%c0_42, %c0_43, %c0_44] : memref<1x128x128xf32, #tpu.memory_space<vmem>>, vector<1x128x128xf32>
    %118 = vector.shape_cast %117 : vector<1x128x128xf32> to vector<128x128xf32>
    %119 = vector.shape_cast %116 : vector<128x128xf32> to vector<1x128x128xf32>
    tpu.vector_store %arg8[%c0_42, %c0_43, %c0_44], %119 {strides = array<i32>} : memref<1x128x128xf32, #tpu.memory_space<vmem>>, vector<1x128x128xf32>,
    return
  }
  func.func @transform_0(%arg0: i32) -> (i32, i32, i32) {
    %c0_i32 = arith.constant 0 : i32
    %c0_i32_0 = arith.constant 0 : i32
    %c0_i32_1 = arith.constant 0 : i32
    return %arg0, %c0_i32, %c0_i32_0 : i32, i32, i32
  }
  func.func @transform_1(%arg0: i32) -> (i32, i32) {
    %c0_i32 = arith.constant 0 : i32
    %c0_i32_0 = arith.constant 0 : i32
    %c0_i32_1 = arith.constant 0 : i32
    return %c0_i32, %c0_i32_0 : i32, i32
  }
  func.func @transform_2(%arg0: i32) -> (i32, i32) {
    %c0_i32 = arith.constant 0 : i32
    %c0_i32_0 = arith.constant 0 : i32
    %c0_i32_1 = arith.constant 0 : i32
    return %c0_i32, %c0_i32_0 : i32, i32
  }
  func.func @transform_3(%arg0: i32) -> (i32, i32) {
    %c0_i32 = arith.constant 0 : i32
    %c0_i32_0 = arith.constant 0 : i32
    %c0_i32_1 = arith.constant 0 : i32
    return %c0_i32, %c0_i32_0 : i32, i32
  }
  func.func @transform_4(%arg0: i32) -> (i32, i32) {
    %c0_i32 = arith.constant 0 : i32
    %c0_i32_0 = arith.constant 0 : i32
    %c0_i32_1 = arith.constant 0 : i32
    return %c0_i32, %c0_i32_0 : i32, i32
  }
  func.func @transform_5(%arg0: i32) -> (i32, i32) {
    %c0_i32 = arith.constant 0 : i32
    %c0_i32_0 = arith.constant 0 : i32
    %c0_i32_1 = arith.constant 0 : i32
    return %c0_i32, %c0_i32_0 : i32, i32
  }
  func.func @transform_6(%arg0: i32) -> (i32, i32) {
    %c0_i32 = arith.constant 0 : i32
    %c0_i32_0 = arith.constant 0 : i32
    %c0_i32_1 = arith.constant 0 : i32
    return %c0_i32, %c0_i32_0 : i32, i32
  }
  func.func @transform_7(%arg0: i32) -> (i32, i32, i32) {
    %c0_i32 = arith.constant 0 : i32
    %c0_i32_0 = arith.constant 0 : i32
    %c0_i32_1 = arith.constant 0 : i32
    return %arg0, %c0_i32, %c0_i32_0 : i32, i32, i32
  }
}

</mosaic_0001>

<llo_original>
// kernel: tpu_custom_call.1
$region0: #{tpu_custom_call.1}
  #allocation0 [shape = 'u32[]', space=smem, size = 0x4, offset = 0x4, fixed_abs, tag = 'smem constant byte address 0x4 - core index']
  #allocation1 [shape = 'u32[72,128]{1,0:T(1,128)}', space=vmem, size = 0x9000, scoped, tag = 'internal scratch']
  %s0 = inlined_call_operand.hbm [shape: f32[2,128,128], index: 0, kind: input, shape index: {}]
  %s1 = inlined_call_operand.hbm [shape: f32[1,128], index: 1, kind: input, shape index: {}]
  %s2 = inlined_call_operand.hbm [shape: f32[1,128], index: 2, kind: input, shape index: {}]
  %s3 = inlined_call_operand.hbm [shape: f32[128,384], index: 3, kind: input, shape index: {}]
  %s4 = inlined_call_operand.vmem [shape: f32[1,384], index: 4, kind: input, shape index: {}]
  %s5 = inlined_call_operand.hbm [shape: f32[128,128], index: 5, kind: input, shape index: {}]
  %s6 = inlined_call_operand.vmem [shape: f32[1,128], index: 6, kind: input, shape index: {}]
  %s7 = inlined_call_operand.hbm [shape: f32[2,128,128], index: 7, kind: output, shape index: {}]
  %s8 = sld [smem:[#allocation0]]
  $region81: #{tpu_custom_call.1} parent=0
    _
  %s10 = ssub.s32 1, %s8
  %s11 = scalar_select 0, %s10, %s8
  $region1: #{tpu_custom_call.1} parent=0
    #allocation2 [shape = 'u8[131072]{0}', space=vmem, size = 0x20000, scoped, tag = 'input window, operand 0']
    #allocation3 [shape = 's32[2]{0}', space=sflag, size = 0x8, scoped, tag = 'scoped memory for tpu_custom_call.1']
    #allocation4 [shape = 's32[2]{0}', space=sflag, size = 0x8, scoped, tag = 'scoped memory for tpu_custom_call.1']
    #allocation5 [shape = 'u8[512]{0}', space=vmem, size = 0x400, scoped, tag = 'input window, operand 1, single buffered']
    #allocation6 [shape = 's32[1]{0}', space=sflag, size = 0x4, scoped, tag = 'scoped memory for tpu_custom_call.1']
    #allocation7 [shape = 'u8[512]{0}', space=vmem, size = 0x400, scoped, tag = 'input window, operand 2, single buffered']
    #allocation8 [shape = 'u8[196608]{0}', space=vmem, size = 0x30000, scoped, tag = 'input window, operand 3, single buffered']
    #allocation9 [shape = 's32[1]{0}', space=sflag, size = 0x4, scoped, tag = 'scoped memory for tpu_custom_call.1']
    #allocation10 [shape = 'u8[65536]{0}', space=vmem, size = 0x10000, scoped, tag = 'input window, operand 5, single buffered']
    #allocation11 [shape = 'u8[131072]{0}', space=vmem, size = 0x20000, scoped, tag = 'output window, operand 0']
    %12 = vsyncpa [#allocation3], 0
    %s13 = scalar_lea.sflag [#allocation3], 1
    %14 = vsyncpa %s13, 0
    %15 = vsyncpa [#allocation6], 0
    %16 = vsyncpa [#allocation9], 0
    %17 = vsyncpa [#allocation4], 0
    %s18 = scalar_lea.sflag [#allocation4], 1
    %19 = vsyncpa %s18, 0
    loop: start=0, step=1, limit=4
    $region2: #{tpu_custom_call.1} parent=1 // loop_pre_header
      _
    $region3: #{tpu_custom_call.1} parent=1 // loop_header
      %s21 = sphi 0, %s25
      %p22 = scmp.ge.s32.totalorder %s21, 4
      %s31 = sphi 0, %s33
      %s34 = sphi 0, %s31
      %s35 = sphi 0, %s34
      %s51 = sphi 0, %s35
      %s55 = sphi 0, %s55
      %s57 = sphi 0, %s55
      %s58 = sphi 0, %s57
      %s72 = sphi 0, %s58
      %s76 = sphi 0, %s76
      %s78 = sphi 0, %s76
      %s79 = sphi 0, %s78
      %s93 = sphi 0, %s79
      %s97 = sphi 0, %s97
      %s99 = sphi 0, %s97
      %s100 = sphi 0, %s99
      %s114 = sphi 0, %s100
      %s118 = sphi 0, %s118
      %s120 = sphi 0, %s118
      %s121 = sphi 0, %s120
      %s135 = sphi 0, %s121
      %s139 = sphi 0, %s139
      %s141 = sphi 0, %s139
      %s142 = sphi 0, %s141
      %s156 = sphi 0, %s142
      %s160 = sphi 0, %s160
      %s162 = sphi 0, %s160
      %s163 = sphi 0, %s162
      %s177 = sphi 0, %s163
      %s183 = sphi 0, %s185
      %s186 = sphi 0, %s183
      %s187 = sphi 0, %s186
      %s203 = sphi 0, %s187
    $region4: #{tpu_custom_call.1} parent=1 // loop_header_branch
      %24 = sbr.rel (%p22) target = $region8
    $region5: #{tpu_custom_call.1} parent=1 // loop_body
      %s26 = ssub.s32 %s21, 1
      %s27 = ssub.s32 %s21, 2
      %s28 = sadd.s32 %s21, 1
      %s29 = ssub.s32 %s21, %s28
      %p30 = scmp.eq.s32.totalorder %s29, 0
      %s32 = sadd.s32 %s31, 1
      %s33 = scalar_select %p30, %s31, %s32
      %p36 = pneg %p30
      %p37 = scmp.eq.s32.totalorder %s21, 1
      %p38 = por %p36, %p37
      %p39 = scmp.ne.s32.totalorder %s31, %s34
      %p40 = scmp.eq.s32.totalorder %s21, 0
      %p41 = por %p39, %p40
      %p42 = scmp.ne.s32.totalorder %s31, %s34
      %p43 = scmp.eq.s32.totalorder %s26, 1
      %p44 = por %p42, %p43
      %p45 = scmp.ne.s32.totalorder %s34, %s35
      %p46 = scmp.eq.s32.totalorder %s26, 0
      %p47 = por %p45, %p46
      %p48 = scmp.ne.s32.totalorder %s34, %s35
      %p49 = scmp.eq.s32.totalorder %s27, 1
      %p50 = por %p48, %p49
      %p52 = scmp.ne.s32.totalorder %s35, %s51
      %p53 = scmp.eq.s32.totalorder %s27, 0
      %p54 = por %p52, %p53
      %s56 = sadd.s32 %s55, 1
      %p59 = scmp.eq.s32.totalorder %s21, 1
      %p60 = scmp.ne.s32.totalorder %s55, %s57
      %p61 = scmp.eq.s32.totalorder %s21, 0
      %p62 = por %p60, %p61
      %p63 = scmp.ne.s32.totalorder %s55, %s57
      %p64 = scmp.eq.s32.totalorder %s26, 1
      %p65 = por %p63, %p64
      %p66 = scmp.ne.s32.totalorder %s57, %s58
      %p67 = scmp.eq.s32.totalorder %s26, 0
      %p68 = por %p66, %p67
      %p69 = scmp.ne.s32.totalorder %s57, %s58
      %p70 = scmp.eq.s32.totalorder %s27, 1
      %p71 = por %p69, %p70
      %p73 = scmp.ne.s32.totalorder %s58, %s72
      %p74 = scmp.eq.s32.totalorder %s27, 0
      %p75 = por %p73, %p74
      %s77 = sadd.s32 %s76, 1
      %p80 = scmp.eq.s32.totalorder %s21, 1
      %p81 = scmp.ne.s32.totalorder %s76, %s78
      %p82 = scmp.eq.s32.totalorder %s21, 0
      %p83 = por %p81, %p82
      %p84 = scmp.ne.s32.totalorder %s76, %s78
      %p85 = scmp.eq.s32.totalorder %s26, 1
      %p86 = por %p84, %p85
      %p87 = scmp.ne.s32.totalorder %s78, %s79
      %p88 = scmp.eq.s32.totalorder %s26, 0
      %p89 = por %p87, %p88
      %p90 = scmp.ne.s32.totalorder %s78, %s79
      %p91 = scmp.eq.s32.totalorder %s27, 1
      %p92 = por %p90, %p91
      %p94 = scmp.ne.s32.totalorder %s79, %s93
      %p95 = scmp.eq.s32.totalorder %s27, 0
      %p96 = por %p94, %p95
      %s98 = sadd.s32 %s97, 1
      %p101 = scmp.eq.s32.totalorder %s21, 1
      %p102 = scmp.ne.s32.totalorder %s97, %s99
      %p103 = scmp.eq.s32.totalorder %s21, 0
      %p104 = por %p102, %p103
      %p105 = scmp.ne.s32.totalorder %s97, %s99
      %p106 = scmp.eq.s32.totalorder %s26, 1
      %p107 = por %p105, %p106
      %p108 = scmp.ne.s32.totalorder %s99, %s100
      %p109 = scmp.eq.s32.totalorder %s26, 0
      %p110 = por %p108, %p109
      %p111 = scmp.ne.s32.totalorder %s99, %s100
      %p112 = scmp.eq.s32.totalorder %s27, 1
      %p113 = por %p111, %p112
      %p115 = scmp.ne.s32.totalorder %s100, %s114
      %p116 = scmp.eq.s32.totalorder %s27, 0
      %p117 = por %p115, %p116
      %s119 = sadd.s32 %s118, 1
      %p122 = scmp.eq.s32.totalorder %s21, 1
      %p123 = scmp.ne.s32.totalorder %s118, %s120
      %p124 = scmp.eq.s32.totalorder %s21, 0
      %p125 = por %p123, %p124
      %p126 = scmp.ne.s32.totalorder %s118, %s120
      %p127 = scmp.eq.s32.totalorder %s26, 1
      %p128 = por %p126, %p127
      %p129 = scmp.ne.s32.totalorder %s120, %s121
      %p130 = scmp.eq.s32.totalorder %s26, 0
      %p131 = por %p129, %p130
      %p132 = scmp.ne.s32.totalorder %s120, %s121
      %p133 = scmp.eq.s32.totalorder %s27, 1
      %p134 = por %p132, %p133
      %p136 = scmp.ne.s32.totalorder %s121, %s135
      %p137 = scmp.eq.s32.totalorder %s27, 0
      %p138 = por %p136, %p137
      %s140 = sadd.s32 %s139, 1
      %p143 = scmp.eq.s32.totalorder %s21, 1
      %p144 = scmp.ne.s32.totalorder %s139, %s141
      %p145 = scmp.eq.s32.totalorder %s21, 0
      %p146 = por %p144, %p145
      %p147 = scmp.ne.s32.totalorder %s139, %s141
      %p148 = scmp.eq.s32.totalorder %s26, 1
      %p149 = por %p147, %p148
      %p150 = scmp.ne.s32.totalorder %s141, %s142
      %p151 = scmp.eq.s32.totalorder %s26, 0
      %p152 = por %p150, %p151
      %p153 = scmp.ne.s32.totalorder %s141, %s142
      %p154 = scmp.eq.s32.totalorder %s27, 1
      %p155 = por %p153, %p154
      %p157 = scmp.ne.s32.totalorder %s142, %s156
      %p158 = scmp.eq.s32.totalorder %s27, 0
      %p159 = por %p157, %p158
      %s161 = sadd.s32 %s160, 1
      %p164 = scmp.eq.s32.totalorder %s21, 1
      %p165 = scmp.ne.s32.totalorder %s160, %s162
      %p166 = scmp.eq.s32.totalorder %s21, 0
      %p167 = por %p165, %p166
      %p168 = scmp.ne.s32.totalorder %s160, %s162
      %p169 = scmp.eq.s32.totalorder %s26, 1
      %p170 = por %p168, %p169
      %p171 = scmp.ne.s32.totalorder %s162, %s163
      %p172 = scmp.eq.s32.totalorder %s26, 0
      %p173 = por %p171, %p172
      %p174 = scmp.ne.s32.totalorder %s162, %s163
      %p175 = scmp.eq.s32.totalorder %s27, 1
      %p176 = por %p174, %p175
      %p178 = scmp.ne.s32.totalorder %s163, %s177
      %p179 = scmp.eq.s32.totalorder %s27, 0
      %p180 = por %p178, %p179
      %s181 = ssub.s32 %s21, %s28
      %p182 = scmp.eq.s32.totalorder %s181, 0
      %s184 = sadd.s32 %s183, 1
      %s185 = scalar_select %p182, %s183, %s184
      %p188 = pneg %p182
      %p189 = scmp.eq.s32.totalorder %s21, 1
      %p190 = por %p188, %p189
      %p191 = scmp.ne.s32.totalorder %s183, %s186
      %p192 = scmp.eq.s32.totalorder %s21, 0
      %p193 = por %p191, %p192
      %p194 = scmp.ne.s32.totalorder %s183, %s186
      %p195 = scmp.eq.s32.totalorder %s26, 1
      %p196 = por %p194, %p195
      %p197 = scmp.ne.s32.totalorder %s186, %s187
      %p198 = scmp.eq.s32.totalorder %s26, 0
      %p199 = por %p197, %p198
      %p200 = scmp.ne.s32.totalorder %s186, %s187
      %p201 = scmp.eq.s32.totalorder %s27, 1
      %p202 = por %p200, %p201
      %p204 = scmp.ne.s32.totalorder %s187, %s203
      %p205 = scmp.eq.s32.totalorder %s27, 0
      %p206 = por %p204, %p205
      %p207 = scmp.le.s32.totalorder 1, %s21
      %p208 = scmp.lt.s32.totalorder %s21, 3
      %p209 = pnand %p207, %p208
      %p210 = pneg %p209
      // Predicated region
      $region9: #{tpu_custom_call.1} parent=5 // pred_check
        _
      $region10: #{tpu_custom_call.1} parent=5 // pred_check_branch
        %212 = sbr.rel (%p209) target = $region12
      $region11: #{tpu_custom_call.1} parent=5 // pred_region
        %s213 = ssub.s32 %s21, 1
        // Predicated region
        $region13: #{tpu_custom_call.1} parent=11 // pred_check
          %p214 = pneg %p68
        $region14: #{tpu_custom_call.1} parent=11 // pred_check_branch
          %216 = sbr.rel (%p214) target = $region16
        $region15: #{tpu_custom_call.1} parent=11 // pred_region
          %218 = vsyncadd [#allocation6], 0
          %s220 = sshll.u32 %s1, 4
          %s221 = int_to_ptr.hbm [resolvable:$true] %s220
          %s222 = sshll.u32 [#allocation5], 4
          %s223 = int_to_ptr.vmem [resolvable:$true] %s222
          %225 = dma.hbm_to_vmem [thread:$0]  %s221, 16, %s223, [#allocation6]
        $region16: #{tpu_custom_call.1} parent=11 // pred_fallthru
          _
        // Predicated region
        $region17: #{tpu_custom_call.1} parent=11 // pred_check
          %p226 = pneg %p89
        $region18: #{tpu_custom_call.1} parent=11 // pred_check_branch
          %228 = sbr.rel (%p226) target = $region20
        $region19: #{tpu_custom_call.1} parent=11 // pred_region
          %230 = vsyncadd [#allocation6], 0
          %s232 = sshll.u32 %s2, 4
          %s233 = int_to_ptr.hbm [resolvable:$true] %s232
          %s234 = sshll.u32 [#allocation7], 4
          %s235 = int_to_ptr.vmem [resolvable:$true] %s234
          %237 = dma.hbm_to_vmem [thread:$0]  %s233, 16, %s235, [#allocation6]
        $region20: #{tpu_custom_call.1} parent=11 // pred_fallthru
          _
        // Predicated region
        $region21: #{tpu_custom_call.1} parent=11 // pred_check
          %p238 = pneg %p110
        $region22: #{tpu_custom_call.1} parent=11 // pred_check_branch
          %240 = sbr.rel (%p238) target = $region24
        $region23: #{tpu_custom_call.1} parent=11 // pred_region
          %242 = vsyncadd [#allocation9], 0
          %s243 = sshll.u32 %s3, 4
          %s244 = int_to_ptr.hbm [resolvable:$true] %s243
          %s245 = sshll.u32 [#allocation8], 4
          %s246 = int_to_ptr.vmem [resolvable:$true] %s245
          %251 = dma.hbm_to_vmem [thread:$0]  %s244, 6144, %s246, [#allocation9], 384, 384, 24
        $region24: #{tpu_custom_call.1} parent=11 // pred_fallthru
          _
        // Predicated region
        $region25: #{tpu_custom_call.1} parent=11 // pred_check
          %p252 = pneg %p131
        $region26: #{tpu_custom_call.1} parent=11 // pred_check_branch
          %254 = sbr.rel (%p252) target = $region28
        $region27: #{tpu_custom_call.1} parent=11 // pred_region
          _
        $region28: #{tpu_custom_call.1} parent=11 // pred_fallthru
          _
        // Predicated region
        $region29: #{tpu_custom_call.1} parent=11 // pred_check
          %p255 = pneg %p152
        $region30: #{tpu_custom_call.1} parent=11 // pred_check_branch
          %257 = sbr.rel (%p255) target = $region32
        $region31: #{tpu_custom_call.1} parent=11 // pred_region
          %259 = vsyncadd [#allocation9], 0
          %s260 = sshll.u32 %s5, 4
          %s261 = int_to_ptr.hbm [resolvable:$true] %s260
          %s262 = sshll.u32 [#allocation10], 4
          %s263 = int_to_ptr.vmem [resolvable:$true] %s262
          %268 = dma.hbm_to_vmem [thread:$0]  %s261, 2048, %s263, [#allocation9], 128, 128, 8
        $region32: #{tpu_custom_call.1} parent=11 // pred_fallthru
          _
        // Predicated region
        $region33: #{tpu_custom_call.1} parent=11 // pred_check
          %p269 = pneg %p173
        $region34: #{tpu_custom_call.1} parent=11 // pred_check_branch
          %271 = sbr.rel (%p269) target = $region36
        $region35: #{tpu_custom_call.1} parent=11 // pred_region
          _
        $region36: #{tpu_custom_call.1} parent=11 // pred_fallthru
          _
      $region12: #{tpu_custom_call.1} parent=5 // pred_fallthru
        _
      %p272 = scmp.lt.s32.totalorder %s21, 2
      // Predicated region
      $region37: #{tpu_custom_call.1} parent=5 // pred_check
        %p273 = pneg %p272
      $region38: #{tpu_custom_call.1} parent=5 // pred_check_branch
        %275 = sbr.rel (%p273) target = $region40
      $region39: #{tpu_custom_call.1} parent=5 // pred_region
        // Predicated region
        $region41: #{tpu_custom_call.1} parent=39 // pred_check
          %p276 = pneg %p41
        $region42: #{tpu_custom_call.1} parent=39 // pred_check_branch
          %278 = sbr.rel (%p276) target = $region44
        $region43: #{tpu_custom_call.1} parent=39 // pred_region
          %s279 = sand.u32 %s31, 1
          %s280 = scalar_lea.sflag [#allocation3], %s279
          %s281 = sand.u32 %s31, 1
          %s282 = smul.addr %s281, 128
          %s283 = scalar_lea.vmem [#allocation2], %s282
          %285 = vsyncadd %s280, 0
          %s286 = smul.addr %s21, 16
          %s287 = smul.addr %s286, 8
          %s288 = scalar_lea.hbm %s0, %s287
          %s289 = sshll.u32 %s288, 4
          %s290 = int_to_ptr.hbm [resolvable:$true] %s289
          %s291 = sshll.u32 %s283, 4
          %s292 = int_to_ptr.vmem [resolvable:$true] %s291
          %297 = dma.hbm_to_vmem [thread:$0]  %s290, 2048, %s292, %s280, 128, 128, 8
        $region44: #{tpu_custom_call.1} parent=39 // pred_fallthru
          _
      $region40: #{tpu_custom_call.1} parent=5 // pred_fallthru
        _
      %p298 = scmp.le.s32.totalorder 1, %s21
      %p299 = scmp.lt.s32.totalorder %s21, 3
      %p300 = pnand %p298, %p299
      %p301 = pneg %p300
      // Predicated region
      $region45: #{tpu_custom_call.1} parent=5 // pred_check
        _
      $region46: #{tpu_custom_call.1} parent=5 // pred_check_branch
        %303 = sbr.rel (%p300) target = $region48
      $region47: #{tpu_custom_call.1} parent=5 // pred_region
        %s304 = ssub.s32 %s21, 1
        %s305 = sand.u32 %s34, 1
        %s306 = scalar_lea.sflag [#allocation3], %s305
        %s307 = sand.u32 %s34, 1
        %s308 = smul.addr %s307, 128
        %s309 = scalar_lea.vmem [#allocation2], %s308
        // Predicated region
        $region49: #{tpu_custom_call.1} parent=47 // pred_check
          %p310 = pneg %p47
        $region50: #{tpu_custom_call.1} parent=47 // pred_check_branch
          %312 = sbr.rel (%p310) target = $region52
        $region51: #{tpu_custom_call.1} parent=47 // pred_region
          %314 = dma.done %s306, 2048
        $region52: #{tpu_custom_call.1} parent=47 // pred_fallthru
          _
        // Predicated region
        $region53: #{tpu_custom_call.1} parent=47 // pred_check
          %p315 = pneg %p68
        $region54: #{tpu_custom_call.1} parent=47 // pred_check_branch
          %317 = sbr.rel (%p315) target = $region56
        $region55: #{tpu_custom_call.1} parent=47 // pred_region
          %319 = dma.done [#allocation6], 16
        $region56: #{tpu_custom_call.1} parent=47 // pred_fallthru
          _
        // Predicated region
        $region57: #{tpu_custom_call.1} parent=47 // pred_check
          %p320 = pneg %p89
        $region58: #{tpu_custom_call.1} parent=47 // pred_check_branch
          %322 = sbr.rel (%p320) target = $region60
        $region59: #{tpu_custom_call.1} parent=47 // pred_region
          %324 = dma.done [#allocation6], 16
        $region60: #{tpu_custom_call.1} parent=47 // pred_fallthru
          _
        // Predicated region
        $region61: #{tpu_custom_call.1} parent=47 // pred_check
          %p325 = pneg %p110
        $region62: #{tpu_custom_call.1} parent=47 // pred_check_branch
          %327 = sbr.rel (%p325) target = $region64
        $region63: #{tpu_custom_call.1} parent=47 // pred_region
          %329 = dma.done [#allocation9], 6144
        $region64: #{tpu_custom_call.1} parent=47 // pred_fallthru
          _
        // Predicated region
        $region65: #{tpu_custom_call.1} parent=47 // pred_check
          %p330 = pneg %p152
        $region66: #{tpu_custom_call.1} parent=47 // pred_check_branch
          %332 = sbr.rel (%p330) target = $region68
        $region67: #{tpu_custom_call.1} parent=47 // pred_region
          %334 = dma.done [#allocation9], 2048
        $region68: #{tpu_custom_call.1} parent=47 // pred_fallthru
          _
        %s335 = sand.u32 %s34, 1
        %s336 = scalar_lea.sflag [#allocation3], %s335
        %s337 = sand.u32 %s34, 1
        %s338 = smul.addr %s337, 128
        %s339 = scalar_lea.vmem [#allocation2], %s338
        %p340 = pneg %p47
        %p341 = pneg %p44
        %p342 = pneg %p68
        %p343 = pneg %p65
        %p344 = pneg %p89
        %p345 = pneg %p86
        %p346 = pneg %p110
        %p347 = pneg %p107
        %p348 = pneg %p131
        %p349 = pneg %p128
        %p350 = pneg %p152
        %p351 = pneg %p149
        %p352 = pneg %p173
        %p353 = pneg %p170
        %p354 = pneg %p199
        %p355 = pneg %p196
        %s356 = sand.u32 %s186, 1
        %s357 = scalar_lea.sflag [#allocation4], %s356
        %s358 = sand.u32 %s186, 1
        %s359 = smul.addr %s358, 128
        %s360 = scalar_lea.vmem [#allocation11], %s359
        %v361 = vld [vmem:[%s309] sm:$0xff]
        %v362 = vld [vmem:[%s309 + $0x8] sm:$0xff]
        %v363 = vld [vmem:[%s309 + $0x10] sm:$0xff]
        %v364 = vld [vmem:[%s309 + $0x18] sm:$0xff]
        %v365 = vld [vmem:[%s309 + $0x20] sm:$0xff]
        %v366 = vld [vmem:[%s309 + $0x28] sm:$0xff]
        %v367 = vld [vmem:[%s309 + $0x30] sm:$0xff]
        %v368 = vld [vmem:[%s309 + $0x38] sm:$0xff]
        %v369 = vld [vmem:[%s309 + $0x40] sm:$0xff]
        %v370 = vld [vmem:[%s309 + $0x48] sm:$0xff]
        %v371 = vld [vmem:[%s309 + $0x50] sm:$0xff]
        %v372 = vld [vmem:[%s309 + $0x58] sm:$0xff]
        %v373 = vld [vmem:[%s309 + $0x60] sm:$0xff]
        %v374 = vld [vmem:[%s309 + $0x68] sm:$0xff]
        %v375 = vld [vmem:[%s309 + $0x70] sm:$0xff]
        %v376 = vld [vmem:[%s309 + $0x78] sm:$0xff]
        %v377 = vld [vmem:[#allocation5] sm:$0x1]
        %v378 = vld [vmem:[#allocation7] sm:$0x1]
        %379 = vadd.xlane.f32.xlu0 %v361
        %v380 = vpop.xlane.xlu0 %379
        %381 = vadd.xlane.f32.xlu0 %v362
        %v382 = vpop.xlane.xlu0 %381
        %383 = vadd.xlane.f32.xlu0 %v363
        %v384 = vpop.xlane.xlu0 %383
        %385 = vadd.xlane.f32.xlu0 %v364
        %v386 = vpop.xlane.xlu0 %385
        %387 = vadd.xlane.f32.xlu0 %v365
        %v388 = vpop.xlane.xlu0 %387
        %389 = vadd.xlane.f32.xlu0 %v366
        %v390 = vpop.xlane.xlu0 %389
        %391 = vadd.xlane.f32.xlu0 %v367
        %v392 = vpop.xlane.xlu0 %391
        %393 = vadd.xlane.f32.xlu0 %v368
        %v394 = vpop.xlane.xlu0 %393
        %395 = vadd.xlane.f32.xlu0 %v369
        %v396 = vpop.xlane.xlu0 %395
        %397 = vadd.xlane.f32.xlu0 %v370
        %v398 = vpop.xlane.xlu0 %397
        %399 = vadd.xlane.f32.xlu0 %v371
        %v400 = vpop.xlane.xlu0 %399
        %401 = vadd.xlane.f32.xlu0 %v372
        %v402 = vpop.xlane.xlu0 %401
        %403 = vadd.xlane.f32.xlu0 %v373
        %v404 = vpop.xlane.xlu0 %403
        %405 = vadd.xlane.f32.xlu0 %v374
        %v406 = vpop.xlane.xlu0 %405
        %407 = vadd.xlane.f32.xlu0 %v375
        %v408 = vpop.xlane.xlu0 %407
        %409 = vadd.xlane.f32.xlu0 %v376
        %v410 = vpop.xlane.xlu0 %409
        %v411 = vrcp.pop 128.0
        %v412 = vmul.f32 128.0, %v411
        %v413 = vsub.f32 1.0, %v412
        %v414 = vmul.f32 %v411, %v413
        %v415 = vadd.f32 %v411, %v414
        %vm416 = vweird.f32 %v411
        %v417 = vsel %vm416, %v411, %v415
        %v418 = vmul.f32 %v380, %v417
        %v419 = vmul.f32 %v382, %v417
        %v420 = vmul.f32 %v384, %v417
        %v421 = vmul.f32 %v386, %v417
        %v422 = vmul.f32 %v388, %v417
        %v423 = vmul.f32 %v390, %v417
        %v424 = vmul.f32 %v392, %v417
        %v425 = vmul.f32 %v394, %v417
        %v426 = vmul.f32 %v396, %v417
        %v427 = vmul.f32 %v398, %v417
        %v428 = vmul.f32 %v400, %v417
        %v429 = vmul.f32 %v402, %v417
        %v430 = vmul.f32 %v404, %v417
        %v431 = vmul.f32 %v406, %v417
        %v432 = vmul.f32 %v408, %v417
        %v433 = vmul.f32 %v410, %v417
        %v434 = vsub.f32 %v361, %v418
        %v435 = vsub.f32 %v362, %v419
        %v436 = vsub.f32 %v363, %v420
        %v437 = vsub.f32 %v364, %v421
        %v438 = vsub.f32 %v365, %v422
        %v439 = vsub.f32 %v366, %v423
        %v440 = vsub.f32 %v367, %v424
        %v441 = vsub.f32 %v368, %v425
        %v442 = vsub.f32 %v369, %v426
        %v443 = vsub.f32 %v370, %v427
        %v444 = vsub.f32 %v371, %v428
        %v445 = vsub.f32 %v372, %v429
        %v446 = vsub.f32 %v373, %v430
        %v447 = vsub.f32 %v374, %v431
        %v448 = vsub.f32 %v375, %v432
        %v449 = vsub.f32 %v376, %v433
        %v450 = vmul.f32 %v434, %v434
        %v451 = vmul.f32 %v435, %v435
        %v452 = vmul.f32 %v436, %v436
        %v453 = vmul.f32 %v437, %v437
        %v454 = vmul.f32 %v438, %v438
        %v455 = vmul.f32 %v439, %v439
        %v456 = vmul.f32 %v440, %v440
        %v457 = vmul.f32 %v441, %v441
        %v458 = vmul.f32 %v442, %v442
        %v459 = vmul.f32 %v443, %v443
        %v460 = vmul.f32 %v444, %v444
        %v461 = vmul.f32 %v445, %v445
        %v462 = vmul.f32 %v446, %v446
        %v463 = vmul.f32 %v447, %v447
        %v464 = vmul.f32 %v448, %v448
        %v465 = vmul.f32 %v449, %v449
        %466 = vadd.xlane.f32.xlu0 %v450
        %v467 = vpop.xlane.xlu0 %466
        %468 = vadd.xlane.f32.xlu0 %v451
        %v469 = vpop.xlane.xlu0 %468
        %470 = vadd.xlane.f32.xlu0 %v452
        %v471 = vpop.xlane.xlu0 %470
        %472 = vadd.xlane.f32.xlu0 %v453
        %v473 = vpop.xlane.xlu0 %472
        %474 = vadd.xlane.f32.xlu0 %v454
        %v475 = vpop.xlane.xlu0 %474
        %476 = vadd.xlane.f32.xlu0 %v455
        %v477 = vpop.xlane.xlu0 %476
        %478 = vadd.xlane.f32.xlu0 %v456
        %v479 = vpop.xlane.xlu0 %478
        %480 = vadd.xlane.f32.xlu0 %v457
        %v481 = vpop.xlane.xlu0 %480
        %482 = vadd.xlane.f32.xlu0 %v458
        %v483 = vpop.xlane.xlu0 %482
        %484 = vadd.xlane.f32.xlu0 %v459
        %v485 = vpop.xlane.xlu0 %484
        %486 = vadd.xlane.f32.xlu0 %v460
        %v487 = vpop.xlane.xlu0 %486
        %488 = vadd.xlane.f32.xlu0 %v461
        %v489 = vpop.xlane.xlu0 %488
        %490 = vadd.xlane.f32.xlu0 %v462
        %v491 = vpop.xlane.xlu0 %490
        %492 = vadd.xlane.f32.xlu0 %v463
        %v493 = vpop.xlane.xlu0 %492
        %494 = vadd.xlane.f32.xlu0 %v464
        %v495 = vpop.xlane.xlu0 %494
        %496 = vadd.xlane.f32.xlu0 %v465
        %v497 = vpop.xlane.xlu0 %496
        %v498 = vmul.f32 %v467, %v417
        %v499 = vmul.f32 %v469, %v417
        %v500 = vmul.f32 %v471, %v417
        %v501 = vmul.f32 %v473, %v417
        %v502 = vmul.f32 %v475, %v417
        %v503 = vmul.f32 %v477, %v417
        %v504 = vmul.f32 %v479, %v417
        %v505 = vmul.f32 %v481, %v417
        %v506 = vmul.f32 %v483, %v417
        %v507 = vmul.f32 %v485, %v417
        %v508 = vmul.f32 %v487, %v417
        %v509 = vmul.f32 %v489, %v417
        %v510 = vmul.f32 %v491, %v417
        %v511 = vmul.f32 %v493, %v417
        %v512 = vmul.f32 %v495, %v417
        %v513 = vmul.f32 %v497, %v417
        %v514 = vadd.f32 %v498, 1e-05
        %v515 = vadd.f32 %v499, 1e-05
        %v516 = vadd.f32 %v500, 1e-05
        %v517 = vadd.f32 %v501, 1e-05
        %v518 = vadd.f32 %v502, 1e-05
        %v519 = vadd.f32 %v503, 1e-05
        %v520 = vadd.f32 %v504, 1e-05
        %v521 = vadd.f32 %v505, 1e-05
        %v522 = vadd.f32 %v506, 1e-05
        %v523 = vadd.f32 %v507, 1e-05
        %v524 = vadd.f32 %v508, 1e-05
        %v525 = vadd.f32 %v509, 1e-05
        %v526 = vadd.f32 %v510, 1e-05
        %v527 = vadd.f32 %v511, 1e-05
        %v528 = vadd.f32 %v512, 1e-05
        %v529 = vadd.f32 %v513, 1e-05
        %v530 = vrsqrt.pop %v514
        %v531 = vmul.f32 %v530, %v514
        %v532 = vmul.f32 %v531, %v530
        %v533 = vmul.f32 0.5, %v532
        %v534 = vsub.f32 1.5, %v533
        %v535 = vmul.f32 %v530, %v534
        %vm536 = vweird.f32 %v514
        %vm537 = vweird.f32 %v530
        %vm538 = vmor %vm536, %vm537
        %v539 = vsel %vm538, %v530, %v535
        %v540 = vrsqrt.pop %v515
        %v541 = vmul.f32 %v540, %v515
        %v542 = vmul.f32 %v541, %v540
        %v543 = vmul.f32 0.5, %v542
        %v544 = vsub.f32 1.5, %v543
        %v545 = vmul.f32 %v540, %v544
        %vm546 = vweird.f32 %v515
        %vm547 = vweird.f32 %v540
        %vm548 = vmor %vm546, %vm547
        %v549 = vsel %vm548, %v540, %v545
        %v550 = vrsqrt.pop %v516
        %v551 = vmul.f32 %v550, %v516
        %v552 = vmul.f32 %v551, %v550
        %v553 = vmul.f32 0.5, %v552
        %v554 = vsub.f32 1.5, %v553
        %v555 = vmul.f32 %v550, %v554
        %vm556 = vweird.f32 %v516
        %vm557 = vweird.f32 %v550
        %vm558 = vmor %vm556, %vm557
        %v559 = vsel %vm558, %v550, %v555
        %v560 = vrsqrt.pop %v517
        %v561 = vmul.f32 %v560, %v517
        %v562 = vmul.f32 %v561, %v560
        %v563 = vmul.f32 0.5, %v562
        %v564 = vsub.f32 1.5, %v563
        %v565 = vmul.f32 %v560, %v564
        %vm566 = vweird.f32 %v517
        %vm567 = vweird.f32 %v560
        %vm568 = vmor %vm566, %vm567
        %v569 = vsel %vm568, %v560, %v565
        %v570 = vrsqrt.pop %v518
        %v571 = vmul.f32 %v570, %v518
        %v572 = vmul.f32 %v571, %v570
        %v573 = vmul.f32 0.5, %v572
        %v574 = vsub.f32 1.5, %v573
        %v575 = vmul.f32 %v570, %v574
        %vm576 = vweird.f32 %v518
        %vm577 = vweird.f32 %v570
        %vm578 = vmor %vm576, %vm577
        %v579 = vsel %vm578, %v570, %v575
        %v580 = vrsqrt.pop %v519
        %v581 = vmul.f32 %v580, %v519
        %v582 = vmul.f32 %v581, %v580
        %v583 = vmul.f32 0.5, %v582
        %v584 = vsub.f32 1.5, %v583
        %v585 = vmul.f32 %v580, %v584
        %vm586 = vweird.f32 %v519
        %vm587 = vweird.f32 %v580
        %vm588 = vmor %vm586, %vm587
        %v589 = vsel %vm588, %v580, %v585
        %v590 = vrsqrt.pop %v520
        %v591 = vmul.f32 %v590, %v520
        %v592 = vmul.f32 %v591, %v590
        %v593 = vmul.f32 0.5, %v592
        %v594 = vsub.f32 1.5, %v593
        %v595 = vmul.f32 %v590, %v594
        %vm596 = vweird.f32 %v520
        %vm597 = vweird.f32 %v590
        %vm598 = vmor %vm596, %vm597
        %v599 = vsel %vm598, %v590, %v595
        %v600 = vrsqrt.pop %v521
        %v601 = vmul.f32 %v600, %v521
        %v602 = vmul.f32 %v601, %v600
        %v603 = vmul.f32 0.5, %v602
        %v604 = vsub.f32 1.5, %v603
        %v605 = vmul.f32 %v600, %v604
        %vm606 = vweird.f32 %v521
        %vm607 = vweird.f32 %v600
        %vm608 = vmor %vm606, %vm607
        %v609 = vsel %vm608, %v600, %v605
        %v610 = vrsqrt.pop %v522
        %v611 = vmul.f32 %v610, %v522
        %v612 = vmul.f32 %v611, %v610
        %v613 = vmul.f32 0.5, %v612
        %v614 = vsub.f32 1.5, %v613
        %v615 = vmul.f32 %v610, %v614
        %vm616 = vweird.f32 %v522
        %vm617 = vweird.f32 %v610
        %vm618 = vmor %vm616, %vm617
        %v619 = vsel %vm618, %v610, %v615
        %v620 = vrsqrt.pop %v523
        %v621 = vmul.f32 %v620, %v523
        %v622 = vmul.f32 %v621, %v620
        %v623 = vmul.f32 0.5, %v622
        %v624 = vsub.f32 1.5, %v623
        %v625 = vmul.f32 %v620, %v624
        %vm626 = vweird.f32 %v523
        %vm627 = vweird.f32 %v620
        %vm628 = vmor %vm626, %vm627
        %v629 = vsel %vm628, %v620, %v625
        %v630 = vrsqrt.pop %v524
        %v631 = vmul.f32 %v630, %v524
        %v632 = vmul.f32 %v631, %v630
        %v633 = vmul.f32 0.5, %v632
        %v634 = vsub.f32 1.5, %v633
        %v635 = vmul.f32 %v630, %v634
        %vm636 = vweird.f32 %v524
        %vm637 = vweird.f32 %v630
        %vm638 = vmor %vm636, %vm637
        %v639 = vsel %vm638, %v630, %v635
        %v640 = vrsqrt.pop %v525
        %v641 = vmul.f32 %v640, %v525
        %v642 = vmul.f32 %v641, %v640
        %v643 = vmul.f32 0.5, %v642
        %v644 = vsub.f32 1.5, %v643
        %v645 = vmul.f32 %v640, %v644
        %vm646 = vweird.f32 %v525
        %vm647 = vweird.f32 %v640
        %vm648 = vmor %vm646, %vm647
        %v649 = vsel %vm648, %v640, %v645
        %v650 = vrsqrt.pop %v526
        %v651 = vmul.f32 %v650, %v526
        %v652 = vmul.f32 %v651, %v650
        %v653 = vmul.f32 0.5, %v652
        %v654 = vsub.f32 1.5, %v653
        %v655 = vmul.f32 %v650, %v654
        %vm656 = vweird.f32 %v526
        %vm657 = vweird.f32 %v650
        %vm658 = vmor %vm656, %vm657
        %v659 = vsel %vm658, %v650, %v655
        %v660 = vrsqrt.pop %v527
        %v661 = vmul.f32 %v660, %v527
        %v662 = vmul.f32 %v661, %v660
        %v663 = vmul.f32 0.5, %v662
        %v664 = vsub.f32 1.5, %v663
        %v665 = vmul.f32 %v660, %v664
        %vm666 = vweird.f32 %v527
        %vm667 = vweird.f32 %v660
        %vm668 = vmor %vm666, %vm667
        %v669 = vsel %vm668, %v660, %v665
        %v670 = vrsqrt.pop %v528
        %v671 = vmul.f32 %v670, %v528
        %v672 = vmul.f32 %v671, %v670
        %v673 = vmul.f32 0.5, %v672
        %v674 = vsub.f32 1.5, %v673
        %v675 = vmul.f32 %v670, %v674
        %vm676 = vweird.f32 %v528
        %vm677 = vweird.f32 %v670
        %vm678 = vmor %vm676, %vm677
        %v679 = vsel %vm678, %v670, %v675
        %v680 = vrsqrt.pop %v529
        %v681 = vmul.f32 %v680, %v529
        %v682 = vmul.f32 %v681, %v680
        %v683 = vmul.f32 0.5, %v682
        %v684 = vsub.f32 1.5, %v683
        %v685 = vmul.f32 %v680, %v684
        %vm686 = vweird.f32 %v529
        %vm687 = vweird.f32 %v680
        %vm688 = vmor %vm686, %vm687
        %v689 = vsel %vm688, %v680, %v685
        %v690 = vmul.f32 %v434, %v539
        %v691 = vmul.f32 %v435, %v549
        %v692 = vmul.f32 %v436, %v559
        %v693 = vmul.f32 %v437, %v569
        %v694 = vmul.f32 %v438, %v579
        %v695 = vmul.f32 %v439, %v589
        %v696 = vmul.f32 %v440, %v599
        %v697 = vmul.f32 %v441, %v609
        %v698 = vmul.f32 %v442, %v619
        %v699 = vmul.f32 %v443, %v629
        %v700 = vmul.f32 %v444, %v639
        %v701 = vmul.f32 %v445, %v649
        %v702 = vmul.f32 %v446, %v659
        %v703 = vmul.f32 %v447, %v669
        %v704 = vmul.f32 %v448, %v679
        %v705 = vmul.f32 %v449, %v689
        %v707 = vperm.slane %v377, 0
        %v709 = vmul.f32 %v690, %v707
        %v710 = vmul.f32 %v691, %v707
        %v711 = vmul.f32 %v692, %v707
        %v712 = vmul.f32 %v693, %v707
        %v713 = vmul.f32 %v694, %v707
        %v714 = vmul.f32 %v695, %v707
        %v715 = vmul.f32 %v696, %v707
        %v716 = vmul.f32 %v697, %v707
        %v717 = vmul.f32 %v698, %v707
        %v718 = vmul.f32 %v699, %v707
        %v719 = vmul.f32 %v700, %v707
        %v720 = vmul.f32 %v701, %v707
        %v721 = vmul.f32 %v702, %v707
        %v722 = vmul.f32 %v703, %v707
        %v723 = vmul.f32 %v704, %v707
        %v724 = vmul.f32 %v705, %v707
        %v726 = vperm.slane %v378, 0
        %v728 = vadd.f32 %v709, %v726
        %v729 = vadd.f32 %v710, %v726
        %v730 = vadd.f32 %v711, %v726
        %v731 = vadd.f32 %v712, %v726
        %v732 = vadd.f32 %v713, %v726
        %v733 = vadd.f32 %v714, %v726
        %v734 = vadd.f32 %v715, %v726
        %v735 = vadd.f32 %v716, %v726
        %v736 = vadd.f32 %v717, %v726
        %v737 = vadd.f32 %v718, %v726
        %v738 = vadd.f32 %v719, %v726
        %v739 = vadd.f32 %v720, %v726
        %v740 = vadd.f32 %v721, %v726
        %v741 = vadd.f32 %v722, %v726
        %v742 = vadd.f32 %v723, %v726
        %v743 = vadd.f32 %v724, %v726
        %v744 = vld [vmem:[#allocation8] sm:$0xff]
        %v745 = vld [vmem:[#allocation8 + $0x8] sm:$0xff]
        %v746 = vld [vmem:[#allocation8 + $0x10] sm:$0xff]
        %v747 = vld [vmem:[#allocation8 + $0x18] sm:$0xff]
        %v748 = vld [vmem:[#allocation8 + $0x20] sm:$0xff]
        %v749 = vld [vmem:[#allocation8 + $0x28] sm:$0xff]
        %v750 = vld [vmem:[#allocation8 + $0x30] sm:$0xff]
        %v751 = vld [vmem:[#allocation8 + $0x38] sm:$0xff]
        %v752 = vld [vmem:[#allocation8 + $0x40] sm:$0xff]
        %v753 = vld [vmem:[#allocation8 + $0x48] sm:$0xff]
        %v754 = vld [vmem:[#allocation8 + $0x50] sm:$0xff]
        %v755 = vld [vmem:[#allocation8 + $0x58] sm:$0xff]
        %v756 = vld [vmem:[#allocation8 + $0x60] sm:$0xff]
        %v757 = vld [vmem:[#allocation8 + $0x68] sm:$0xff]
        %v758 = vld [vmem:[#allocation8 + $0x70] sm:$0xff]
        %v759 = vld [vmem:[#allocation8 + $0x78] sm:$0xff]
        %v760 = vld [vmem:[#allocation8 + $0x80] sm:$0xff]
        %v761 = vld [vmem:[#allocation8 + $0x88] sm:$0xff]
        %v762 = vld [vmem:[#allocation8 + $0x90] sm:$0xff]
        %v763 = vld [vmem:[#allocation8 + $0x98] sm:$0xff]
        %v764 = vld [vmem:[#allocation8 + $0xa0] sm:$0xff]
        %v765 = vld [vmem:[#allocation8 + $0xa8] sm:$0xff]
        %v766 = vld [vmem:[#allocation8 + $0xb0] sm:$0xff]
        %v767 = vld [vmem:[#allocation8 + $0xb8] sm:$0xff]
        %v768 = vld [vmem:[#allocation8 + $0xc0] sm:$0xff]
        %v769 = vld [vmem:[#allocation8 + $0xc8] sm:$0xff]
        %v770 = vld [vmem:[#allocation8 + $0xd0] sm:$0xff]
        %v771 = vld [vmem:[#allocation8 + $0xd8] sm:$0xff]
        %v772 = vld [vmem:[#allocation8 + $0xe0] sm:$0xff]
        %v773 = vld [vmem:[#allocation8 + $0xe8] sm:$0xff]
        %v774 = vld [vmem:[#allocation8 + $0xf0] sm:$0xff]
        %v775 = vld [vmem:[#allocation8 + $0xf8] sm:$0xff]
        %v776 = vld [vmem:[#allocation8 + $0x100] sm:$0xff]
        %v777 = vld [vmem:[#allocation8 + $0x108] sm:$0xff]
        %v778 = vld [vmem:[#allocation8 + $0x110] sm:$0xff]
        %v779 = vld [vmem:[#allocation8 + $0x118] sm:$0xff]
        %v780 = vld [vmem:[#allocation8 + $0x120] sm:$0xff]
        %v781 = vld [vmem:[#allocation8 + $0x128] sm:$0xff]
        %v782 = vld [vmem:[#allocation8 + $0x130] sm:$0xff]
        %v783 = vld [vmem:[#allocation8 + $0x138] sm:$0xff]
        %v784 = vld [vmem:[#allocation8 + $0x140] sm:$0xff]
        %v785 = vld [vmem:[#allocation8 + $0x148] sm:$0xff]
        %v786 = vld [vmem:[#allocation8 + $0x150] sm:$0xff]
        %v787 = vld [vmem:[#allocation8 + $0x158] sm:$0xff]
        %v788 = vld [vmem:[#allocation8 + $0x160] sm:$0xff]
        %v789 = vld [vmem:[#allocation8 + $0x168] sm:$0xff]
        %v790 = vld [vmem:[#allocation8 + $0x170] sm:$0xff]
        %v791 = vld [vmem:[#allocation8 + $0x178] sm:$0xff]
        %v792 = vld [vmem:[%s4] sm:$0x7]
        %v794 = vperm.slane %v792, 0
        %v795 = vperm.slane %v792, 1
        %v796 = vperm.slane %v792, 2
        %800 = vmatpush.msra.mxu0 %v789
        %801 = vmatpush.msra.mxu0 %v786
        %802 = vmatpush.msra.mxu0 %v783
        %803 = vmatpush.msra.mxu0 %v780
        %804 = vmatpush.msra.mxu0 %v777
        %805 = vmatpush.msra.mxu0 %v774
        %806 = vmatpush.msra.mxu0 %v771
        %807 = vmatpush.msra.mxu0 %v768
        %808 = vmatpush.msra.mxu0 %v765
        %809 = vmatpush.msra.mxu0 %v762
        %810 = vmatpush.msra.mxu0 %v759
        %811 = vmatpush.msra.mxu0 %v756
        %812 = vmatpush.msra.mxu0 %v753
        %813 = vmatpush.msra.mxu0 %v750
        %814 = vmatpush.msra.mxu0 %v747
        %815 = vmatpush.msra.mxu0 %v744
        %816 = vmatmul.f32.gmra.mxu0 %v728
        %v817 = vpop.f32.mrf.mxu0
        %v818 = vadd.f32 %v794, %v817
        %819 = vmatmul.f32.gmra.mxu0 %v729
        %v820 = vpop.f32.mrf.mxu0
        %v821 = vadd.f32 %v794, %v820
        %822 = vmatmul.f32.gmra.mxu0 %v730
        %v823 = vpop.f32.mrf.mxu0
        %v824 = vadd.f32 %v794, %v823
        %825 = vmatmul.f32.gmra.mxu0 %v731
        %v826 = vpop.f32.mrf.mxu0
        %v827 = vadd.f32 %v794, %v826
        %828 = vmatmul.f32.gmra.mxu0 %v732
        %v829 = vpop.f32.mrf.mxu0
        %v830 = vadd.f32 %v794, %v829
        %831 = vmatmul.f32.gmra.mxu0 %v733
        %v832 = vpop.f32.mrf.mxu0
        %v833 = vadd.f32 %v794, %v832
        %834 = vmatmul.f32.gmra.mxu0 %v734
        %v835 = vpop.f32.mrf.mxu0
        %v836 = vadd.f32 %v794, %v835
        %837 = vmatmul.f32.gmra.mxu0 %v735
        %v838 = vpop.f32.mrf.mxu0
        %v839 = vadd.f32 %v794, %v838
        %840 = vmatmul.f32.gmra.mxu0 %v736
        %v841 = vpop.f32.mrf.mxu0
        %v842 = vadd.f32 %v794, %v841
        %843 = vmatmul.f32.gmra.mxu0 %v737
        %v844 = vpop.f32.mrf.mxu0
        %v845 = vadd.f32 %v794, %v844
        %846 = vmatmul.f32.gmra.mxu0 %v738
        %v847 = vpop.f32.mrf.mxu0
        %v848 = vadd.f32 %v794, %v847
        %849 = vmatmul.f32.gmra.mxu0 %v739
        %v850 = vpop.f32.mrf.mxu0
        %v851 = vadd.f32 %v794, %v850
        %852 = vmatmul.f32.gmra.mxu0 %v740
        %v853 = vpop.f32.mrf.mxu0
        %v854 = vadd.f32 %v794, %v853
        %855 = vmatmul.f32.gmra.mxu0 %v741
        %v856 = vpop.f32.mrf.mxu0
        %v857 = vadd.f32 %v794, %v856
        %858 = vmatmul.f32.gmra.mxu0 %v742
        %v859 = vpop.f32.mrf.mxu0
        %v860 = vadd.f32 %v794, %v859
        %861 = vmatmul.f32.gmra.mxu0 %v743
        %v862 = vpop.f32.mrf.mxu0
        %v863 = vadd.f32 %v794, %v862
        %864 = vdwg.mxu0
        %865 = vmatpush.msra.mxu0 %v790
        %866 = vmatpush.msra.mxu0 %v787
        %867 = vmatpush.msra.mxu0 %v784
        %868 = vmatpush.msra.mxu0 %v781
        %869 = vmatpush.msra.mxu0 %v778
        %870 = vmatpush.msra.mxu0 %v775
        %871 = vmatpush.msra.mxu0 %v772
        %872 = vmatpush.msra.mxu0 %v769
        %873 = vmatpush.msra.mxu0 %v766
        %874 = vmatpush.msra.mxu0 %v763
        %875 = vmatpush.msra.mxu0 %v760
        %876 = vmatpush.msra.mxu0 %v757
        %877 = vmatpush.msra.mxu0 %v754
        %878 = vmatpush.msra.mxu0 %v751
        %879 = vmatpush.msra.mxu0 %v748
        %880 = vmatpush.msra.mxu0 %v745
        %881 = vmatmul.f32.gmra.mxu0 %v728
        %v882 = vpop.f32.mrf.mxu0
        %v883 = vadd.f32 %v795, %v882
        %884 = vmatmul.f32.gmra.mxu0 %v729
        %v885 = vpop.f32.mrf.mxu0
        %v886 = vadd.f32 %v795, %v885
        %887 = vmatmul.f32.gmra.mxu0 %v730
        %v888 = vpop.f32.mrf.mxu0
        %v889 = vadd.f32 %v795, %v888
        %890 = vmatmul.f32.gmra.mxu0 %v731
        %v891 = vpop.f32.mrf.mxu0
        %v892 = vadd.f32 %v795, %v891
        %893 = vmatmul.f32.gmra.mxu0 %v732
        %v894 = vpop.f32.mrf.mxu0
        %v895 = vadd.f32 %v795, %v894
        %896 = vmatmul.f32.gmra.mxu0 %v733
        %v897 = vpop.f32.mrf.mxu0
        %v898 = vadd.f32 %v795, %v897
        %899 = vmatmul.f32.gmra.mxu0 %v734
        %v900 = vpop.f32.mrf.mxu0
        %v901 = vadd.f32 %v795, %v900
        %902 = vmatmul.f32.gmra.mxu0 %v735
        %v903 = vpop.f32.mrf.mxu0
        %v904 = vadd.f32 %v795, %v903
        %905 = vmatmul.f32.gmra.mxu0 %v736
        %v906 = vpop.f32.mrf.mxu0
        %v907 = vadd.f32 %v795, %v906
        %908 = vmatmul.f32.gmra.mxu0 %v737
        %v909 = vpop.f32.mrf.mxu0
        %v910 = vadd.f32 %v795, %v909
        %911 = vmatmul.f32.gmra.mxu0 %v738
        %v912 = vpop.f32.mrf.mxu0
        %v913 = vadd.f32 %v795, %v912
        %914 = vmatmul.f32.gmra.mxu0 %v739
        %v915 = vpop.f32.mrf.mxu0
        %v916 = vadd.f32 %v795, %v915
        %917 = vmatmul.f32.gmra.mxu0 %v740
        %v918 = vpop.f32.mrf.mxu0
        %v919 = vadd.f32 %v795, %v918
        %920 = vmatmul.f32.gmra.mxu0 %v741
        %v921 = vpop.f32.mrf.mxu0
        %v922 = vadd.f32 %v795, %v921
        %923 = vmatmul.f32.gmra.mxu0 %v742
        %v924 = vpop.f32.mrf.mxu0
        %v925 = vadd.f32 %v795, %v924
        %926 = vmatmul.f32.gmra.mxu0 %v743
        %v927 = vpop.f32.mrf.mxu0
        %v928 = vadd.f32 %v795, %v927
        %929 = vdwg.mxu0
        %930 = vmatpush.msra.mxu0 %v791
        %931 = vmatpush.msra.mxu0 %v788
        %932 = vmatpush.msra.mxu0 %v785
        %933 = vmatpush.msra.mxu0 %v782
        %934 = vmatpush.msra.mxu0 %v779
        %935 = vmatpush.msra.mxu0 %v776
        %936 = vmatpush.msra.mxu0 %v773
        %937 = vmatpush.msra.mxu0 %v770
        %938 = vmatpush.msra.mxu0 %v767
        %939 = vmatpush.msra.mxu0 %v764
        %940 = vmatpush.msra.mxu0 %v761
        %941 = vmatpush.msra.mxu0 %v758
        %942 = vmatpush.msra.mxu0 %v755
        %943 = vmatpush.msra.mxu0 %v752
        %944 = vmatpush.msra.mxu0 %v749
        %945 = vmatpush.msra.mxu0 %v746
        %946 = vmatmul.f32.gmra.mxu0 %v728
        %v947 = vpop.f32.mrf.mxu0
        %v948 = vadd.f32 %v796, %v947
        %949 = vmatmul.f32.gmra.mxu0 %v729
        %v950 = vpop.f32.mrf.mxu0
        %v951 = vadd.f32 %v796, %v950
        %952 = vmatmul.f32.gmra.mxu0 %v730
        %v953 = vpop.f32.mrf.mxu0
        %v954 = vadd.f32 %v796, %v953
        %955 = vmatmul.f32.gmra.mxu0 %v731
        %v956 = vpop.f32.mrf.mxu0
        %v957 = vadd.f32 %v796, %v956
        %958 = vmatmul.f32.gmra.mxu0 %v732
        %v959 = vpop.f32.mrf.mxu0
        %v960 = vadd.f32 %v796, %v959
        %961 = vmatmul.f32.gmra.mxu0 %v733
        %v962 = vpop.f32.mrf.mxu0
        %v963 = vadd.f32 %v796, %v962
        %964 = vmatmul.f32.gmra.mxu0 %v734
        %v965 = vpop.f32.mrf.mxu0
        %v966 = vadd.f32 %v796, %v965
        %967 = vmatmul.f32.gmra.mxu0 %v735
        %v968 = vpop.f32.mrf.mxu0
        %v969 = vadd.f32 %v796, %v968
        %970 = vmatmul.f32.gmra.mxu0 %v736
        %v971 = vpop.f32.mrf.mxu0
        %v972 = vadd.f32 %v796, %v971
        %973 = vmatmul.f32.gmra.mxu0 %v737
        %v974 = vpop.f32.mrf.mxu0
        %v975 = vadd.f32 %v796, %v974
        %976 = vmatmul.f32.gmra.mxu0 %v738
        %v977 = vpop.f32.mrf.mxu0
        %v978 = vadd.f32 %v796, %v977
        %979 = vmatmul.f32.gmra.mxu0 %v739
        %v980 = vpop.f32.mrf.mxu0
        %v981 = vadd.f32 %v796, %v980
        %982 = vmatmul.f32.gmra.mxu0 %v740
        %v983 = vpop.f32.mrf.mxu0
        %v984 = vadd.f32 %v796, %v983
        %985 = vmatmul.f32.gmra.mxu0 %v741
        %v986 = vpop.f32.mrf.mxu0
        %v987 = vadd.f32 %v796, %v986
        %988 = vmatmul.f32.gmra.mxu0 %v742
        %v989 = vpop.f32.mrf.mxu0
        %v990 = vadd.f32 %v796, %v989
        %991 = vmatmul.f32.gmra.mxu0 %v743
        %v992 = vpop.f32.mrf.mxu0
        %v993 = vadd.f32 %v796, %v992
        %994 = vdwg.mxu0
        %v995 = vlaneseq
        %v996 = vshrl.u32 %v995, 7
        %v997 = vadd.s32 %v996, 8
        %v998 = vadd.s32 %v996, 16
        %v999 = vadd.s32 %v996, 24
        %v1000 = vadd.s32 %v996, 32
        %v1001 = vadd.s32 %v996, 40
        %v1002 = vadd.s32 %v996, 48
        %v1003 = vadd.s32 %v996, 56
        %v1004 = vadd.s32 %v996, 64
        %v1005 = vadd.s32 %v996, 72
        %v1006 = vadd.s32 %v996, 80
        %v1007 = vadd.s32 %v996, 88
        %v1008 = vadd.s32 %v996, 96
        %v1009 = vadd.s32 %v996, 104
        %v1010 = vadd.s32 %v996, 112
        %v1011 = vadd.s32 %v996, 120
        %v1012 = vlaneseq
        %v1013 = vand.u32 %v1012, 127
        %vm1014 = vcmp.ge.s32.totalorder %v996, %v1013
        %vm1015 = vcmp.ge.s32.totalorder %v997, %v1013
        %vm1016 = vcmp.ge.s32.totalorder %v998, %v1013
        %vm1017 = vcmp.ge.s32.totalorder %v999, %v1013
        %vm1018 = vcmp.ge.s32.totalorder %v1000, %v1013
        %vm1019 = vcmp.ge.s32.totalorder %v1001, %v1013
        %vm1020 = vcmp.ge.s32.totalorder %v1002, %v1013
        %vm1021 = vcmp.ge.s32.totalorder %v1003, %v1013
        %vm1022 = vcmp.ge.s32.totalorder %v1004, %v1013
        %vm1023 = vcmp.ge.s32.totalorder %v1005, %v1013
        %vm1024 = vcmp.ge.s32.totalorder %v1006, %v1013
        %vm1025 = vcmp.ge.s32.totalorder %v1007, %v1013
        %vm1026 = vcmp.ge.s32.totalorder %v1008, %v1013
        %vm1027 = vcmp.ge.s32.totalorder %v1009, %v1013
        %vm1028 = vcmp.ge.s32.totalorder %v1010, %v1013
        %vm1029 = vcmp.ge.s32.totalorder %v1011, %v1013
        %v1030 = vsel %vm1014, 0.0, -1e+30
        %v1031 = vsel %vm1015, 0.0, -1e+30
        %v1032 = vsel %vm1016, 0.0, -1e+30
        %v1033 = vsel %vm1017, 0.0, -1e+30
        %v1034 = vsel %vm1018, 0.0, -1e+30
        %v1035 = vsel %vm1019, 0.0, -1e+30
        %v1036 = vsel %vm1020, 0.0, -1e+30
        %v1037 = vsel %vm1021, 0.0, -1e+30
        %v1038 = vsel %vm1022, 0.0, -1e+30
        %v1039 = vsel %vm1023, 0.0, -1e+30
        %v1040 = vsel %vm1024, 0.0, -1e+30
        %v1041 = vsel %vm1025, 0.0, -1e+30
        %v1042 = vsel %vm1026, 0.0, -1e+30
        %v1043 = vsel %vm1027, 0.0, -1e+30
        %v1044 = vsel %vm1028, 0.0, -1e+30
        %v1045 = vsel %vm1029, 0.0, -1e+30
        %vm1046 = vcmask 261120
        %v1048 = vsel %vm1046, %v818, 0
        %v1051 = vsel %vm1046, %v821, 0
        %v1054 = vsel %vm1046, %v824, 0
        %v1057 = vsel %vm1046, %v827, 0
        %v1060 = vsel %vm1046, %v830, 0
        %v1063 = vsel %vm1046, %v833, 0
        %v1066 = vsel %vm1046, %v836, 0
        %v1069 = vsel %vm1046, %v839, 0
        %v1072 = vsel %vm1046, %v842, 0
        %v1075 = vsel %vm1046, %v845, 0
        %v1078 = vsel %vm1046, %v848, 0
        %v1081 = vsel %vm1046, %v851, 0
        %v1084 = vsel %vm1046, %v854, 0
        %v1087 = vsel %vm1046, %v857, 0
        %v1090 = vsel %vm1046, %v860, 0
        %v1093 = vsel %vm1046, %v863, 0
        %v1096 = vsel %vm1046, %v883, 0
        %v1099 = vsel %vm1046, %v886, 0
        %v1102 = vsel %vm1046, %v889, 0
        %v1105 = vsel %vm1046, %v892, 0
        %v1108 = vsel %vm1046, %v895, 0
        %v1111 = vsel %vm1046, %v898, 0
        %v1114 = vsel %vm1046, %v901, 0
        %v1117 = vsel %vm1046, %v904, 0
        %v1120 = vsel %vm1046, %v907, 0
        %v1123 = vsel %vm1046, %v910, 0
        %v1126 = vsel %vm1046, %v913, 0
        %v1129 = vsel %vm1046, %v916, 0
        %v1132 = vsel %vm1046, %v919, 0
        %v1135 = vsel %vm1046, %v922, 0
        %v1138 = vsel %vm1046, %v925, 0
        %v1141 = vsel %vm1046, %v928, 0
        %1143 = vmatpush.xpose.msra.mxu0 %v1141
        %1144 = vmatpush.xpose.msra.mxu0 %v1138
        %1145 = vmatpush.xpose.msra.mxu0 %v1135
        %1146 = vmatpush.xpose.msra.mxu0 %v1132
        %1147 = vmatpush.xpose.msra.mxu0 %v1129
        %1148 = vmatpush.xpose.msra.mxu0 %v1126
        %1149 = vmatpush.xpose.msra.mxu0 %v1123
        %1150 = vmatpush.xpose.msra.mxu0 %v1120
        %1151 = vmatpush.xpose.msra.mxu0 %v1117
        %1152 = vmatpush.xpose.msra.mxu0 %v1114
        %1153 = vmatpush.xpose.msra.mxu0 %v1111
        %1154 = vmatpush.xpose.msra.mxu0 %v1108
        %1155 = vmatpush.xpose.msra.mxu0 %v1105
        %1156 = vmatpush.xpose.msra.mxu0 %v1102
        %1157 = vmatpush.xpose.msra.mxu0 %v1099
        %1158 = vmatpush.xpose.msra.mxu0 %v1096
        %1159 = vmatmul.f32.gmra.mxu0 %v1048
        %v1160 = vpop.f32.mrf.mxu0
        %v1161 = vadd.f32 0.0, %v1160
        %1162 = vmatmul.f32.gmra.mxu0 %v1051
        %v1163 = vpop.f32.mrf.mxu0
        %v1164 = vadd.f32 0.0, %v1163
        %1165 = vmatmul.f32.gmra.mxu0 %v1054
        %v1166 = vpop.f32.mrf.mxu0
        %v1167 = vadd.f32 0.0, %v1166
        %1168 = vmatmul.f32.gmra.mxu0 %v1057
        %v1169 = vpop.f32.mrf.mxu0
        %v1170 = vadd.f32 0.0, %v1169
        %1171 = vmatmul.f32.gmra.mxu0 %v1060
        %v1172 = vpop.f32.mrf.mxu0
        %v1173 = vadd.f32 0.0, %v1172
        %1174 = vmatmul.f32.gmra.mxu0 %v1063
        %v1175 = vpop.f32.mrf.mxu0
        %v1176 = vadd.f32 0.0, %v1175
        %1177 = vmatmul.f32.gmra.mxu0 %v1066
        %v1178 = vpop.f32.mrf.mxu0
        %v1179 = vadd.f32 0.0, %v1178
        %1180 = vmatmul.f32.gmra.mxu0 %v1069
        %v1181 = vpop.f32.mrf.mxu0
        %v1182 = vadd.f32 0.0, %v1181
        %1183 = vmatmul.f32.gmra.mxu0 %v1072
        %v1184 = vpop.f32.mrf.mxu0
        %v1185 = vadd.f32 0.0, %v1184
        %1186 = vmatmul.f32.gmra.mxu0 %v1075
        %v1187 = vpop.f32.mrf.mxu0
        %v1188 = vadd.f32 0.0, %v1187
        %1189 = vmatmul.f32.gmra.mxu0 %v1078
        %v1190 = vpop.f32.mrf.mxu0
        %v1191 = vadd.f32 0.0, %v1190
        %1192 = vmatmul.f32.gmra.mxu0 %v1081
        %v1193 = vpop.f32.mrf.mxu0
        %v1194 = vadd.f32 0.0, %v1193
        %1195 = vmatmul.f32.gmra.mxu0 %v1084
        %v1196 = vpop.f32.mrf.mxu0
        %v1197 = vadd.f32 0.0, %v1196
        %1198 = vmatmul.f32.gmra.mxu0 %v1087
        %v1199 = vpop.f32.mrf.mxu0
        %v1200 = vadd.f32 0.0, %v1199
        %1201 = vmatmul.f32.gmra.mxu0 %v1090
        %v1202 = vpop.f32.mrf.mxu0
        %v1203 = vadd.f32 0.0, %v1202
        %1204 = vmatmul.f32.gmra.mxu0 %v1093
        %v1205 = vpop.f32.mrf.mxu0
        %v1206 = vadd.f32 0.0, %v1205
        %1207 = vdwg.mxu0
        %v1208 = vmul.f32 %v1161, 0.17677669
        %v1209 = vmul.f32 %v1164, 0.17677669
        %v1210 = vmul.f32 %v1167, 0.17677669
        %v1211 = vmul.f32 %v1170, 0.17677669
        %v1212 = vmul.f32 %v1173, 0.17677669
        %v1213 = vmul.f32 %v1176, 0.17677669
        %v1214 = vmul.f32 %v1179, 0.17677669
        %v1215 = vmul.f32 %v1182, 0.17677669
        %v1216 = vmul.f32 %v1185, 0.17677669
        %v1217 = vmul.f32 %v1188, 0.17677669
        %v1218 = vmul.f32 %v1191, 0.17677669
        %v1219 = vmul.f32 %v1194, 0.17677669
        %v1220 = vmul.f32 %v1197, 0.17677669
        %v1221 = vmul.f32 %v1200, 0.17677669
        %v1222 = vmul.f32 %v1203, 0.17677669
        %v1223 = vmul.f32 %v1206, 0.17677669
        %v1224 = vadd.f32 %v1208, %v1030
        %v1225 = vadd.f32 %v1209, %v1031
        %v1226 = vadd.f32 %v1210, %v1032
        %v1227 = vadd.f32 %v1211, %v1033
        %v1228 = vadd.f32 %v1212, %v1034
        %v1229 = vadd.f32 %v1213, %v1035
        %v1230 = vadd.f32 %v1214, %v1036
        %v1231 = vadd.f32 %v1215, %v1037
        %v1232 = vadd.f32 %v1216, %v1038
        %v1233 = vadd.f32 %v1217, %v1039
        %v1234 = vadd.f32 %v1218, %v1040
        %v1235 = vadd.f32 %v1219, %v1041
        %v1236 = vadd.f32 %v1220, %v1042
        %v1237 = vadd.f32 %v1221, %v1043
        %v1238 = vadd.f32 %v1222, %v1044
        %v1239 = vadd.f32 %v1223, %v1045
        %1240 = vmax.xlane.f32.xlu0 %v1224
        %v1241 = vpop.xlane.xlu0 %1240
        %1242 = vmax.xlane.f32.xlu0 %v1225
        %v1243 = vpop.xlane.xlu0 %1242
        %1244 = vmax.xlane.f32.xlu0 %v1226
        %v1245 = vpop.xlane.xlu0 %1244
        %1246 = vmax.xlane.f32.xlu0 %v1227
        %v1247 = vpop.xlane.xlu0 %1246
        %1248 = vmax.xlane.f32.xlu0 %v1228
        %v1249 = vpop.xlane.xlu0 %1248
        %1250 = vmax.xlane.f32.xlu0 %v1229
        %v1251 = vpop.xlane.xlu0 %1250
        %1252 = vmax.xlane.f32.xlu0 %v1230
        %v1253 = vpop.xlane.xlu0 %1252
        %1254 = vmax.xlane.f32.xlu0 %v1231
        %v1255 = vpop.xlane.xlu0 %1254
        %1256 = vmax.xlane.f32.xlu0 %v1232
        %v1257 = vpop.xlane.xlu0 %1256
        %1258 = vmax.xlane.f32.xlu0 %v1233
        %v1259 = vpop.xlane.xlu0 %1258
        %1260 = vmax.xlane.f32.xlu0 %v1234
        %v1261 = vpop.xlane.xlu0 %1260
        %1262 = vmax.xlane.f32.xlu0 %v1235
        %v1263 = vpop.xlane.xlu0 %1262
        %1264 = vmax.xlane.f32.xlu0 %v1236
        %v1265 = vpop.xlane.xlu0 %1264
        %1266 = vmax.xlane.f32.xlu0 %v1237
        %v1267 = vpop.xlane.xlu0 %1266
        %1268 = vmax.xlane.f32.xlu0 %v1238
        %v1269 = vpop.xlane.xlu0 %1268
        %1270 = vmax.xlane.f32.xlu0 %v1239
        %v1271 = vpop.xlane.xlu0 %1270
        %v1272 = vsub.f32 %v1224, %v1241
        %v1273 = vsub.f32 %v1225, %v1243
        %v1274 = vsub.f32 %v1226, %v1245
        %v1275 = vsub.f32 %v1227, %v1247
        %v1276 = vsub.f32 %v1228, %v1249
        %v1277 = vsub.f32 %v1229, %v1251
        %v1278 = vsub.f32 %v1230, %v1253
        %v1279 = vsub.f32 %v1231, %v1255
        %v1280 = vsub.f32 %v1232, %v1257
        %v1281 = vsub.f32 %v1233, %v1259
        %v1282 = vsub.f32 %v1234, %v1261
        %v1283 = vsub.f32 %v1235, %v1263
        %v1284 = vsub.f32 %v1236, %v1265
        %v1285 = vsub.f32 %v1237, %v1267
        %v1286 = vsub.f32 %v1238, %v1269
        %v1287 = vsub.f32 %v1239, %v1271
        %v1288 = vmul.f32 %v1272, 1.442695
        %v1289 = vpow.pop %v1288
        %v1290 = vmul.f32 %v1273, 1.442695
        %v1291 = vpow.pop %v1290
        %v1292 = vmul.f32 %v1274, 1.442695
        %v1293 = vpow.pop %v1292
        %v1294 = vmul.f32 %v1275, 1.442695
        %v1295 = vpow.pop %v1294
        %v1296 = vmul.f32 %v1276, 1.442695
        %v1297 = vpow.pop %v1296
        %v1298 = vmul.f32 %v1277, 1.442695
        %v1299 = vpow.pop %v1298
        %v1300 = vmul.f32 %v1278, 1.442695
        %v1301 = vpow.pop %v1300
        %v1302 = vmul.f32 %v1279, 1.442695
        %v1303 = vpow.pop %v1302
        %v1304 = vmul.f32 %v1280, 1.442695
        %v1305 = vpow.pop %v1304
        %v1306 = vmul.f32 %v1281, 1.442695
        %v1307 = vpow.pop %v1306
        %v1308 = vmul.f32 %v1282, 1.442695
        %v1309 = vpow.pop %v1308
        %v1310 = vmul.f32 %v1283, 1.442695
        %v1311 = vpow.pop %v1310
        %v1312 = vmul.f32 %v1284, 1.442695
        %v1313 = vpow.pop %v1312
        %v1314 = vmul.f32 %v1285, 1.442695
        %v1315 = vpow.pop %v1314
        %v1316 = vmul.f32 %v1286, 1.442695
        %v1317 = vpow.pop %v1316
        %v1318 = vmul.f32 %v1287, 1.442695
        %v1319 = vpow.pop %v1318
        %1320 = vadd.xlane.f32.xlu0 %v1289
        %v1321 = vpop.xlane.xlu0 %1320
        %1322 = vadd.xlane.f32.xlu0 %v1291
        %v1323 = vpop.xlane.xlu0 %1322
        %1324 = vadd.xlane.f32.xlu0 %v1293
        %v1325 = vpop.xlane.xlu0 %1324
        %1326 = vadd.xlane.f32.xlu0 %v1295
        %v1327 = vpop.xlane.xlu0 %1326
        %1328 = vadd.xlane.f32.xlu0 %v1297
        %v1329 = vpop.xlane.xlu0 %1328
        %1330 = vadd.xlane.f32.xlu0 %v1299
        %v1331 = vpop.xlane.xlu0 %1330
        %1332 = vadd.xlane.f32.xlu0 %v1301
        %v1333 = vpop.xlane.xlu0 %1332
        %1334 = vadd.xlane.f32.xlu0 %v1303
        %v1335 = vpop.xlane.xlu0 %1334
        %1336 = vadd.xlane.f32.xlu0 %v1305
        %v1337 = vpop.xlane.xlu0 %1336
        %1338 = vadd.xlane.f32.xlu0 %v1307
        %v1339 = vpop.xlane.xlu0 %1338
        %1340 = vadd.xlane.f32.xlu0 %v1309
        %v1341 = vpop.xlane.xlu0 %1340
        %1342 = vadd.xlane.f32.xlu0 %v1311
        %v1343 = vpop.xlane.xlu0 %1342
        %1344 = vadd.xlane.f32.xlu0 %v1313
        %v1345 = vpop.xlane.xlu0 %1344
        %1346 = vadd.xlane.f32.xlu0 %v1315
        %v1347 = vpop.xlane.xlu0 %1346
        %1348 = vadd.xlane.f32.xlu0 %v1317
        %v1349 = vpop.xlane.xlu0 %1348
        %1350 = vadd.xlane.f32.xlu0 %v1319
        %v1351 = vpop.xlane.xlu0 %1350
        %v1352 = vrcp.pop %v1321
        %v1353 = vrcp.pop %v1323
        %v1354 = vrcp.pop %v1325
        %v1355 = vrcp.pop %v1327
        %v1356 = vrcp.pop %v1329
        %v1357 = vrcp.pop %v1331
        %v1358 = vrcp.pop %v1333
        %v1359 = vrcp.pop %v1335
        %v1360 = vrcp.pop %v1337
        %v1361 = vrcp.pop %v1339
        %v1362 = vrcp.pop %v1341
        %v1363 = vrcp.pop %v1343
        %v1364 = vrcp.pop %v1345
        %v1365 = vrcp.pop %v1347
        %v1366 = vrcp.pop %v1349
        %v1367 = vrcp.pop %v1351
        %v1368 = vmul.f32 %v1289, %v1352
        %v1369 = vmul.f32 %v1291, %v1353
        %v1370 = vmul.f32 %v1293, %v1354
        %v1371 = vmul.f32 %v1295, %v1355
        %v1372 = vmul.f32 %v1297, %v1356
        %v1373 = vmul.f32 %v1299, %v1357
        %v1374 = vmul.f32 %v1301, %v1358
        %v1375 = vmul.f32 %v1303, %v1359
        %v1376 = vmul.f32 %v1305, %v1360
        %v1377 = vmul.f32 %v1307, %v1361
        %v1378 = vmul.f32 %v1309, %v1362
        %v1379 = vmul.f32 %v1311, %v1363
        %v1380 = vmul.f32 %v1313, %v1364
        %v1381 = vmul.f32 %v1315, %v1365
        %v1382 = vmul.f32 %v1317, %v1366
        %v1383 = vmul.f32 %v1319, %v1367
        %1384 = vmatpush.msra.mxu0 %v993
        %1385 = vmatpush.msra.mxu0 %v990
        %1386 = vmatpush.msra.mxu0 %v987
        %1387 = vmatpush.msra.mxu0 %v984
        %1388 = vmatpush.msra.mxu0 %v981
        %1389 = vmatpush.msra.mxu0 %v978
        %1390 = vmatpush.msra.mxu0 %v975
        %1391 = vmatpush.msra.mxu0 %v972
        %1392 = vmatpush.msra.mxu0 %v969
        %1393 = vmatpush.msra.mxu0 %v966
        %1394 = vmatpush.msra.mxu0 %v963
        %1395 = vmatpush.msra.mxu0 %v960
        %1396 = vmatpush.msra.mxu0 %v957
        %1397 = vmatpush.msra.mxu0 %v954
        %1398 = vmatpush.msra.mxu0 %v951
        %1399 = vmatpush.msra.mxu0 %v948
        %1400 = vmatmul.f32.gmra.mxu0 %v1368
        %v1401 = vpop.f32.mrf.mxu0
        %v1402 = vadd.f32 0.0, %v1401
        %1403 = vmatmul.f32.gmra.mxu0 %v1369
        %v1404 = vpop.f32.mrf.mxu0
        %v1405 = vadd.f32 0.0, %v1404
        %1406 = vmatmul.f32.gmra.mxu0 %v1370
        %v1407 = vpop.f32.mrf.mxu0
        %v1408 = vadd.f32 0.0, %v1407
        %1409 = vmatmul.f32.gmra.mxu0 %v1371
        %v1410 = vpop.f32.mrf.mxu0
        %v1411 = vadd.f32 0.0, %v1410
        %1412 = vmatmul.f32.gmra.mxu0 %v1372
        %v1413 = vpop.f32.mrf.mxu0
        %v1414 = vadd.f32 0.0, %v1413
        %1415 = vmatmul.f32.gmra.mxu0 %v1373
        %v1416 = vpop.f32.mrf.mxu0
        %v1417 = vadd.f32 0.0, %v1416
        %1418 = vmatmul.f32.gmra.mxu0 %v1374
        %v1419 = vpop.f32.mrf.mxu0
        %v1420 = vadd.f32 0.0, %v1419
        %1421 = vmatmul.f32.gmra.mxu0 %v1375
        %v1422 = vpop.f32.mrf.mxu0
        %v1423 = vadd.f32 0.0, %v1422
        %1424 = vmatmul.f32.gmra.mxu0 %v1376
        %v1425 = vpop.f32.mrf.mxu0
        %v1426 = vadd.f32 0.0, %v1425
        %1427 = vmatmul.f32.gmra.mxu0 %v1377
        %v1428 = vpop.f32.mrf.mxu0
        %v1429 = vadd.f32 0.0, %v1428
        %1430 = vmatmul.f32.gmra.mxu0 %v1378
        %v1431 = vpop.f32.mrf.mxu0
        %v1432 = vadd.f32 0.0, %v1431
        %1433 = vmatmul.f32.gmra.mxu0 %v1379
        %v1434 = vpop.f32.mrf.mxu0
        %v1435 = vadd.f32 0.0, %v1434
        %1436 = vmatmul.f32.gmra.mxu0 %v1380
        %v1437 = vpop.f32.mrf.mxu0
        %v1438 = vadd.f32 0.0, %v1437
        %1439 = vmatmul.f32.gmra.mxu0 %v1381
        %v1440 = vpop.f32.mrf.mxu0
        %v1441 = vadd.f32 0.0, %v1440
        %1442 = vmatmul.f32.gmra.mxu0 %v1382
        %v1443 = vpop.f32.mrf.mxu0
        %v1444 = vadd.f32 0.0, %v1443
        %1445 = vmatmul.f32.gmra.mxu0 %v1383
        %v1446 = vpop.f32.mrf.mxu0
        %v1447 = vadd.f32 0.0, %v1446
        %1448 = vdwg.mxu0
        %1449 = vrot.lane.b32.xlu0 %v818, 96
        %v1450 = vpop.permute.xlu0 %1449
        %1451 = vrot.lane.b32.xlu0 %v821, 96
        %v1452 = vpop.permute.xlu0 %1451
        %1453 = vrot.lane.b32.xlu0 %v824, 96
        %v1454 = vpop.permute.xlu0 %1453
        %1455 = vrot.lane.b32.xlu0 %v827, 96
        %v1456 = vpop.permute.xlu0 %1455
        %1457 = vrot.lane.b32.xlu0 %v830, 96
        %v1458 = vpop.permute.xlu0 %1457
        %1459 = vrot.lane.b32.xlu0 %v833, 96
        %v1460 = vpop.permute.xlu0 %1459
        %1461 = vrot.lane.b32.xlu0 %v836, 96
        %v1462 = vpop.permute.xlu0 %1461
        %1463 = vrot.lane.b32.xlu0 %v839, 96
        %v1464 = vpop.permute.xlu0 %1463
        %1465 = vrot.lane.b32.xlu0 %v842, 96
        %v1466 = vpop.permute.xlu0 %1465
        %1467 = vrot.lane.b32.xlu0 %v845, 96
        %v1468 = vpop.permute.xlu0 %1467
        %1469 = vrot.lane.b32.xlu0 %v848, 96
        %v1470 = vpop.permute.xlu0 %1469
        %1471 = vrot.lane.b32.xlu0 %v851, 96
        %v1472 = vpop.permute.xlu0 %1471
        %1473 = vrot.lane.b32.xlu0 %v854, 96
        %v1474 = vpop.permute.xlu0 %1473
        %1475 = vrot.lane.b32.xlu0 %v857, 96
        %v1476 = vpop.permute.xlu0 %1475
        %1477 = vrot.lane.b32.xlu0 %v860, 96
        %v1478 = vpop.permute.xlu0 %1477
        %1479 = vrot.lane.b32.xlu0 %v863, 96
        %v1480 = vpop.permute.xlu0 %1479
        %1481 = vrot.lane.b32.xlu0 %v883, 96
        %v1482 = vpop.permute.xlu0 %1481
        %1483 = vrot.lane.b32.xlu0 %v886, 96
        %v1484 = vpop.permute.xlu0 %1483
        %1485 = vrot.lane.b32.xlu0 %v889, 96
        %v1486 = vpop.permute.xlu0 %1485
        %1487 = vrot.lane.b32.xlu0 %v892, 96
        %v1488 = vpop.permute.xlu0 %1487
        %1489 = vrot.lane.b32.xlu0 %v895, 96
        %v1490 = vpop.permute.xlu0 %1489
        %1491 = vrot.lane.b32.xlu0 %v898, 96
        %v1492 = vpop.permute.xlu0 %1491
        %1493 = vrot.lane.b32.xlu0 %v901, 96
        %v1494 = vpop.permute.xlu0 %1493
        %1495 = vrot.lane.b32.xlu0 %v904, 96
        %v1496 = vpop.permute.xlu0 %1495
        %1497 = vrot.lane.b32.xlu0 %v907, 96
        %v1498 = vpop.permute.xlu0 %1497
        %1499 = vrot.lane.b32.xlu0 %v910, 96
        %v1500 = vpop.permute.xlu0 %1499
        %1501 = vrot.lane.b32.xlu0 %v913, 96
        %v1502 = vpop.permute.xlu0 %1501
        %1503 = vrot.lane.b32.xlu0 %v916, 96
        %v1504 = vpop.permute.xlu0 %1503
        %1505 = vrot.lane.b32.xlu0 %v919, 96
        %v1506 = vpop.permute.xlu0 %1505
        %1507 = vrot.lane.b32.xlu0 %v922, 96
        %v1508 = vpop.permute.xlu0 %1507
        %1509 = vrot.lane.b32.xlu0 %v925, 96
        %v1510 = vpop.permute.xlu0 %1509
        %1511 = vrot.lane.b32.xlu0 %v928, 96
        %v1512 = vpop.permute.xlu0 %1511
        %v1513 = vsel %vm1046, %v1450, 0
        %v1515 = vsel %vm1046, %v1452, 0
        %v1517 = vsel %vm1046, %v1454, 0
        %v1519 = vsel %vm1046, %v1456, 0
        %v1521 = vsel %vm1046, %v1458, 0
        %v1523 = vsel %vm1046, %v1460, 0
        %v1525 = vsel %vm1046, %v1462, 0
        %v1527 = vsel %vm1046, %v1464, 0
        %v1529 = vsel %vm1046, %v1466, 0
        %v1531 = vsel %vm1046, %v1468, 0
        %v1533 = vsel %vm1046, %v1470, 0
        %v1535 = vsel %vm1046, %v1472, 0
        %v1537 = vsel %vm1046, %v1474, 0
        %v1539 = vsel %vm1046, %v1476, 0
        %v1541 = vsel %vm1046, %v1478, 0
        %v1543 = vsel %vm1046, %v1480, 0
        %v1545 = vsel %vm1046, %v1482, 0
        %v1547 = vsel %vm1046, %v1484, 0
        %v1549 = vsel %vm1046, %v1486, 0
        %v1551 = vsel %vm1046, %v1488, 0
        %v1553 = vsel %vm1046, %v1490, 0
        %v1555 = vsel %vm1046, %v1492, 0
        %v1557 = vsel %vm1046, %v1494, 0
        %v1559 = vsel %vm1046, %v1496, 0
        %v1561 = vsel %vm1046, %v1498, 0
        %v1563 = vsel %vm1046, %v1500, 0
        %v1565 = vsel %vm1046, %v1502, 0
        %v1567 = vsel %vm1046, %v1504, 0
        %v1569 = vsel %vm1046, %v1506, 0
        %v1571 = vsel %vm1046, %v1508, 0
        %v1573 = vsel %vm1046, %v1510, 0
        %v1575 = vsel %vm1046, %v1512, 0
        %1577 = vmatpush.xpose.msra.mxu0 %v1575
        %1578 = vmatpush.xpose.msra.mxu0 %v1573
        %1579 = vmatpush.xpose.msra.mxu0 %v1571
        %1580 = vmatpush.xpose.msra.mxu0 %v1569
        %1581 = vmatpush.xpose.msra.mxu0 %v1567
        %1582 = vmatpush.xpose.msra.mxu0 %v1565
        %1583 = vmatpush.xpose.msra.mxu0 %v1563
        %1584 = vmatpush.xpose.msra.mxu0 %v1561
        %1585 = vmatpush.xpose.msra.mxu0 %v1559
        %1586 = vmatpush.xpose.msra.mxu0 %v1557
        %1587 = vmatpush.xpose.msra.mxu0 %v1555
        %1588 = vmatpush.xpose.msra.mxu0 %v1553
        %1589 = vmatpush.xpose.msra.mxu0 %v1551
        %1590 = vmatpush.xpose.msra.mxu0 %v1549
        %1591 = vmatpush.xpose.msra.mxu0 %v1547
        %1592 = vmatpush.xpose.msra.mxu0 %v1545
        %1593 = vmatmul.f32.gmra.mxu0 %v1513
        %v1594 = vpop.f32.mrf.mxu0
        %v1595 = vadd.f32 0.0, %v1594
        %1596 = vmatmul.f32.gmra.mxu0 %v1515
        %v1597 = vpop.f32.mrf.mxu0
        %v1598 = vadd.f32 0.0, %v1597
        %1599 = vmatmul.f32.gmra.mxu0 %v1517
        %v1600 = vpop.f32.mrf.mxu0
        %v1601 = vadd.f32 0.0, %v1600
        %1602 = vmatmul.f32.gmra.mxu0 %v1519
        %v1603 = vpop.f32.mrf.mxu0
        %v1604 = vadd.f32 0.0, %v1603
        %1605 = vmatmul.f32.gmra.mxu0 %v1521
        %v1606 = vpop.f32.mrf.mxu0
        %v1607 = vadd.f32 0.0, %v1606
        %1608 = vmatmul.f32.gmra.mxu0 %v1523
        %v1609 = vpop.f32.mrf.mxu0
        %v1610 = vadd.f32 0.0, %v1609
        %1611 = vmatmul.f32.gmra.mxu0 %v1525
        %v1612 = vpop.f32.mrf.mxu0
        %v1613 = vadd.f32 0.0, %v1612
        %1614 = vmatmul.f32.gmra.mxu0 %v1527
        %v1615 = vpop.f32.mrf.mxu0
        %v1616 = vadd.f32 0.0, %v1615
        %1617 = vmatmul.f32.gmra.mxu0 %v1529
        %v1618 = vpop.f32.mrf.mxu0
        %v1619 = vadd.f32 0.0, %v1618
        %1620 = vmatmul.f32.gmra.mxu0 %v1531
        %v1621 = vpop.f32.mrf.mxu0
        %v1622 = vadd.f32 0.0, %v1621
        %1623 = vmatmul.f32.gmra.mxu0 %v1533
        %v1624 = vpop.f32.mrf.mxu0
        %v1625 = vadd.f32 0.0, %v1624
        %1626 = vmatmul.f32.gmra.mxu0 %v1535
        %v1627 = vpop.f32.mrf.mxu0
        %v1628 = vadd.f32 0.0, %v1627
        %1629 = vmatmul.f32.gmra.mxu0 %v1537
        %v1630 = vpop.f32.mrf.mxu0
        %v1631 = vadd.f32 0.0, %v1630
        %1632 = vmatmul.f32.gmra.mxu0 %v1539
        %v1633 = vpop.f32.mrf.mxu0
        %v1634 = vadd.f32 0.0, %v1633
        %1635 = vmatmul.f32.gmra.mxu0 %v1541
        %v1636 = vpop.f32.mrf.mxu0
        %v1637 = vadd.f32 0.0, %v1636
        %1638 = vmatmul.f32.gmra.mxu0 %v1543
        %v1639 = vpop.f32.mrf.mxu0
        %v1640 = vadd.f32 0.0, %v1639
        %1641 = vdwg.mxu0
        %v1642 = vmul.f32 %v1595, 0.17677669
        %v1643 = vmul.f32 %v1598, 0.17677669
        %v1644 = vmul.f32 %v1601, 0.17677669
        %v1645 = vmul.f32 %v1604, 0.17677669
        %v1646 = vmul.f32 %v1607, 0.17677669
        %v1647 = vmul.f32 %v1610, 0.17677669
        %v1648 = vmul.f32 %v1613, 0.17677669
        %v1649 = vmul.f32 %v1616, 0.17677669
        %v1650 = vmul.f32 %v1619, 0.17677669
        %v1651 = vmul.f32 %v1622, 0.17677669
        %v1652 = vmul.f32 %v1625, 0.17677669
        %v1653 = vmul.f32 %v1628, 0.17677669
        %v1654 = vmul.f32 %v1631, 0.17677669
        %v1655 = vmul.f32 %v1634, 0.17677669
        %v1656 = vmul.f32 %v1637, 0.17677669
        %v1657 = vmul.f32 %v1640, 0.17677669
        %v1658 = vadd.f32 %v1642, %v1030
        %v1659 = vadd.f32 %v1643, %v1031
        %v1660 = vadd.f32 %v1644, %v1032
        %v1661 = vadd.f32 %v1645, %v1033
        %v1662 = vadd.f32 %v1646, %v1034
        %v1663 = vadd.f32 %v1647, %v1035
        %v1664 = vadd.f32 %v1648, %v1036
        %v1665 = vadd.f32 %v1649, %v1037
        %v1666 = vadd.f32 %v1650, %v1038
        %v1667 = vadd.f32 %v1651, %v1039
        %v1668 = vadd.f32 %v1652, %v1040
        %v1669 = vadd.f32 %v1653, %v1041
        %v1670 = vadd.f32 %v1654, %v1042
        %v1671 = vadd.f32 %v1655, %v1043
        %v1672 = vadd.f32 %v1656, %v1044
        %v1673 = vadd.f32 %v1657, %v1045
        %1674 = vmax.xlane.f32.xlu0 %v1658
        %v1675 = vpop.xlane.xlu0 %1674
        %1676 = vmax.xlane.f32.xlu0 %v1659
        %v1677 = vpop.xlane.xlu0 %1676
        %1678 = vmax.xlane.f32.xlu0 %v1660
        %v1679 = vpop.xlane.xlu0 %1678
        %1680 = vmax.xlane.f32.xlu0 %v1661
        %v1681 = vpop.xlane.xlu0 %1680
        %1682 = vmax.xlane.f32.xlu0 %v1662
        %v1683 = vpop.xlane.xlu0 %1682
        %1684 = vmax.xlane.f32.xlu0 %v1663
        %v1685 = vpop.xlane.xlu0 %1684
        %1686 = vmax.xlane.f32.xlu0 %v1664
        %v1687 = vpop.xlane.xlu0 %1686
        %1688 = vmax.xlane.f32.xlu0 %v1665
        %v1689 = vpop.xlane.xlu0 %1688
        %1690 = vmax.xlane.f32.xlu0 %v1666
        %v1691 = vpop.xlane.xlu0 %1690
        %1692 = vmax.xlane.f32.xlu0 %v1667
        %v1693 = vpop.xlane.xlu0 %1692
        %1694 = vmax.xlane.f32.xlu0 %v1668
        %v1695 = vpop.xlane.xlu0 %1694
        %1696 = vmax.xlane.f32.xlu0 %v1669
        %v1697 = vpop.xlane.xlu0 %1696
        %1698 = vmax.xlane.f32.xlu0 %v1670
        %v1699 = vpop.xlane.xlu0 %1698
        %1700 = vmax.xlane.f32.xlu0 %v1671
        %v1701 = vpop.xlane.xlu0 %1700
        %1702 = vmax.xlane.f32.xlu0 %v1672
        %v1703 = vpop.xlane.xlu0 %1702
        %1704 = vmax.xlane.f32.xlu0 %v1673
        %v1705 = vpop.xlane.xlu0 %1704
        %v1706 = vsub.f32 %v1658, %v1675
        %v1707 = vsub.f32 %v1659, %v1677
        %v1708 = vsub.f32 %v1660, %v1679
        %v1709 = vsub.f32 %v1661, %v1681
        %v1710 = vsub.f32 %v1662, %v1683
        %v1711 = vsub.f32 %v1663, %v1685
        %v1712 = vsub.f32 %v1664, %v1687
        %v1713 = vsub.f32 %v1665, %v1689
        %v1714 = vsub.f32 %v1666, %v1691
        %v1715 = vsub.f32 %v1667, %v1693
        %v1716 = vsub.f32 %v1668, %v1695
        %v1717 = vsub.f32 %v1669, %v1697
        %v1718 = vsub.f32 %v1670, %v1699
        %v1719 = vsub.f32 %v1671, %v1701
        %v1720 = vsub.f32 %v1672, %v1703
        %v1721 = vsub.f32 %v1673, %v1705
        %v1722 = vmul.f32 %v1706, 1.442695
        %v1723 = vpow.pop %v1722
        %v1724 = vmul.f32 %v1707, 1.442695
        %v1725 = vpow.pop %v1724
        %v1726 = vmul.f32 %v1708, 1.442695
        %v1727 = vpow.pop %v1726
        %v1728 = vmul.f32 %v1709, 1.442695
        %v1729 = vpow.pop %v1728
        %v1730 = vmul.f32 %v1710, 1.442695
        %v1731 = vpow.pop %v1730
        %v1732 = vmul.f32 %v1711, 1.442695
        %v1733 = vpow.pop %v1732
        %v1734 = vmul.f32 %v1712, 1.442695
        %v1735 = vpow.pop %v1734
        %v1736 = vmul.f32 %v1713, 1.442695
        %v1737 = vpow.pop %v1736
        %v1738 = vmul.f32 %v1714, 1.442695
        %v1739 = vpow.pop %v1738
        %v1740 = vmul.f32 %v1715, 1.442695
        %v1741 = vpow.pop %v1740
        %v1742 = vmul.f32 %v1716, 1.442695
        %v1743 = vpow.pop %v1742
        %v1744 = vmul.f32 %v1717, 1.442695
        %v1745 = vpow.pop %v1744
        %v1746 = vmul.f32 %v1718, 1.442695
        %v1747 = vpow.pop %v1746
        %v1748 = vmul.f32 %v1719, 1.442695
        %v1749 = vpow.pop %v1748
        %v1750 = vmul.f32 %v1720, 1.442695
        %v1751 = vpow.pop %v1750
        %v1752 = vmul.f32 %v1721, 1.442695
        %v1753 = vpow.pop %v1752
        %1754 = vadd.xlane.f32.xlu0 %v1723
        %v1755 = vpop.xlane.xlu0 %1754
        %1756 = vadd.xlane.f32.xlu0 %v1725
        %v1757 = vpop.xlane.xlu0 %1756
        %1758 = vadd.xlane.f32.xlu0 %v1727
        %v1759 = vpop.xlane.xlu0 %1758
        %1760 = vadd.xlane.f32.xlu0 %v1729
        %v1761 = vpop.xlane.xlu0 %1760
        %1762 = vadd.xlane.f32.xlu0 %v1731
        %v1763 = vpop.xlane.xlu0 %1762
        %1764 = vadd.xlane.f32.xlu0 %v1733
        %v1765 = vpop.xlane.xlu0 %1764
        %1766 = vadd.xlane.f32.xlu0 %v1735
        %v1767 = vpop.xlane.xlu0 %1766
        %1768 = vadd.xlane.f32.xlu0 %v1737
        %v1769 = vpop.xlane.xlu0 %1768
        %1770 = vadd.xlane.f32.xlu0 %v1739
        %v1771 = vpop.xlane.xlu0 %1770
        %1772 = vadd.xlane.f32.xlu0 %v1741
        %v1773 = vpop.xlane.xlu0 %1772
        %1774 = vadd.xlane.f32.xlu0 %v1743
        %v1775 = vpop.xlane.xlu0 %1774
        %1776 = vadd.xlane.f32.xlu0 %v1745
        %v1777 = vpop.xlane.xlu0 %1776
        %1778 = vadd.xlane.f32.xlu0 %v1747
        %v1779 = vpop.xlane.xlu0 %1778
        %1780 = vadd.xlane.f32.xlu0 %v1749
        %v1781 = vpop.xlane.xlu0 %1780
        %1782 = vadd.xlane.f32.xlu0 %v1751
        %v1783 = vpop.xlane.xlu0 %1782
        %1784 = vadd.xlane.f32.xlu0 %v1753
        %v1785 = vpop.xlane.xlu0 %1784
        %v1786 = vrcp.pop %v1755
        %v1787 = vrcp.pop %v1757
        %v1788 = vrcp.pop %v1759
        %v1789 = vrcp.pop %v1761
        %v1790 = vrcp.pop %v1763
        %v1791 = vrcp.pop %v1765
        %v1792 = vrcp.pop %v1767
        %v1793 = vrcp.pop %v1769
        %v1794 = vrcp.pop %v1771
        %v1795 = vrcp.pop %v1773
        %v1796 = vrcp.pop %v1775
        %v1797 = vrcp.pop %v1777
        %v1798 = vrcp.pop %v1779
        %v1799 = vrcp.pop %v1781
        %v1800 = vrcp.pop %v1783
        %v1801 = vrcp.pop %v1785
        %v1802 = vmul.f32 %v1723, %v1786
        %v1803 = vmul.f32 %v1725, %v1787
        %v1804 = vmul.f32 %v1727, %v1788
        %v1805 = vmul.f32 %v1729, %v1789
        %v1806 = vmul.f32 %v1731, %v1790
        %v1807 = vmul.f32 %v1733, %v1791
        %v1808 = vmul.f32 %v1735, %v1792
        %v1809 = vmul.f32 %v1737, %v1793
        %v1810 = vmul.f32 %v1739, %v1794
        %v1811 = vmul.f32 %v1741, %v1795
        %v1812 = vmul.f32 %v1743, %v1796
        %v1813 = vmul.f32 %v1745, %v1797
        %v1814 = vmul.f32 %v1747, %v1798
        %v1815 = vmul.f32 %v1749, %v1799
        %v1816 = vmul.f32 %v1751, %v1800
        %v1817 = vmul.f32 %v1753, %v1801
        %1834 = vrot.lane.b32.xlu0 %v948, 96
        %v1835 = vpop.permute.xlu0 %1834
        %1836 = vrot.lane.b32.xlu0 %v951, 96
        %v1837 = vpop.permute.xlu0 %1836
        %1838 = vrot.lane.b32.xlu0 %v954, 96
        %v1839 = vpop.permute.xlu0 %1838
        %1840 = vrot.lane.b32.xlu0 %v957, 96
        %v1841 = vpop.permute.xlu0 %1840
        %1842 = vrot.lane.b32.xlu0 %v960, 96
        %v1843 = vpop.permute.xlu0 %1842
        %1844 = vrot.lane.b32.xlu0 %v963, 96
        %v1845 = vpop.permute.xlu0 %1844
        %1846 = vrot.lane.b32.xlu0 %v966, 96
        %v1847 = vpop.permute.xlu0 %1846
        %1848 = vrot.lane.b32.xlu0 %v969, 96
        %v1849 = vpop.permute.xlu0 %1848
        %1850 = vrot.lane.b32.xlu0 %v972, 96
        %v1851 = vpop.permute.xlu0 %1850
        %1852 = vrot.lane.b32.xlu0 %v975, 96
        %v1853 = vpop.permute.xlu0 %1852
        %1854 = vrot.lane.b32.xlu0 %v978, 96
        %v1855 = vpop.permute.xlu0 %1854
        %1856 = vrot.lane.b32.xlu0 %v981, 96
        %v1857 = vpop.permute.xlu0 %1856
        %1858 = vrot.lane.b32.xlu0 %v984, 96
        %v1859 = vpop.permute.xlu0 %1858
        %1860 = vrot.lane.b32.xlu0 %v987, 96
        %v1861 = vpop.permute.xlu0 %1860
        %1862 = vrot.lane.b32.xlu0 %v990, 96
        %v1863 = vpop.permute.xlu0 %1862
        %1864 = vrot.lane.b32.xlu0 %v993, 96
        %v1865 = vpop.permute.xlu0 %1864
        %1882 = vmatpush.msra.mxu0 %v1865
        %1883 = vmatpush.msra.mxu0 %v1863
        %1884 = vmatpush.msra.mxu0 %v1861
        %1885 = vmatpush.msra.mxu0 %v1859
        %1886 = vmatpush.msra.mxu0 %v1857
        %1887 = vmatpush.msra.mxu0 %v1855
        %1888 = vmatpush.msra.mxu0 %v1853
        %1889 = vmatpush.msra.mxu0 %v1851
        %1890 = vmatpush.msra.mxu0 %v1849
        %1891 = vmatpush.msra.mxu0 %v1847
        %1892 = vmatpush.msra.mxu0 %v1845
        %1893 = vmatpush.msra.mxu0 %v1843
        %1894 = vmatpush.msra.mxu0 %v1841
        %1895 = vmatpush.msra.mxu0 %v1839
        %1896 = vmatpush.msra.mxu0 %v1837
        %1897 = vmatpush.msra.mxu0 %v1835
        %1898 = vmatmul.f32.gmra.mxu0 %v1802
        %v1899 = vpop.f32.mrf.mxu0
        %v1900 = vadd.f32 0.0, %v1899
        %1901 = vmatmul.f32.gmra.mxu0 %v1803
        %v1902 = vpop.f32.mrf.mxu0
        %v1903 = vadd.f32 0.0, %v1902
        %1904 = vmatmul.f32.gmra.mxu0 %v1804
        %v1905 = vpop.f32.mrf.mxu0
        %v1906 = vadd.f32 0.0, %v1905
        %1907 = vmatmul.f32.gmra.mxu0 %v1805
        %v1908 = vpop.f32.mrf.mxu0
        %v1909 = vadd.f32 0.0, %v1908
        %1910 = vmatmul.f32.gmra.mxu0 %v1806
        %v1911 = vpop.f32.mrf.mxu0
        %v1912 = vadd.f32 0.0, %v1911
        %1913 = vmatmul.f32.gmra.mxu0 %v1807
        %v1914 = vpop.f32.mrf.mxu0
        %v1915 = vadd.f32 0.0, %v1914
        %1916 = vmatmul.f32.gmra.mxu0 %v1808
        %v1917 = vpop.f32.mrf.mxu0
        %v1918 = vadd.f32 0.0, %v1917
        %1919 = vmatmul.f32.gmra.mxu0 %v1809
        %v1920 = vpop.f32.mrf.mxu0
        %v1921 = vadd.f32 0.0, %v1920
        %1922 = vmatmul.f32.gmra.mxu0 %v1810
        %v1923 = vpop.f32.mrf.mxu0
        %v1924 = vadd.f32 0.0, %v1923
        %1925 = vmatmul.f32.gmra.mxu0 %v1811
        %v1926 = vpop.f32.mrf.mxu0
        %v1927 = vadd.f32 0.0, %v1926
        %1928 = vmatmul.f32.gmra.mxu0 %v1812
        %v1929 = vpop.f32.mrf.mxu0
        %v1930 = vadd.f32 0.0, %v1929
        %1931 = vmatmul.f32.gmra.mxu0 %v1813
        %v1932 = vpop.f32.mrf.mxu0
        %v1933 = vadd.f32 0.0, %v1932
        %1934 = vmatmul.f32.gmra.mxu0 %v1814
        %v1935 = vpop.f32.mrf.mxu0
        %v1936 = vadd.f32 0.0, %v1935
        %1937 = vmatmul.f32.gmra.mxu0 %v1815
        %v1938 = vpop.f32.mrf.mxu0
        %v1939 = vadd.f32 0.0, %v1938
        %1940 = vmatmul.f32.gmra.mxu0 %v1816
        %v1941 = vpop.f32.mrf.mxu0
        %v1942 = vadd.f32 0.0, %v1941
        %1943 = vmatmul.f32.gmra.mxu0 %v1817
        %v1944 = vpop.f32.mrf.mxu0
        %v1945 = vadd.f32 0.0, %v1944
        %1946 = vdwg.mxu0
        %1947 = vrot.lane.b32.xlu0 %v818, 64
        %v1948 = vpop.permute.xlu0 %1947
        %1949 = vrot.lane.b32.xlu0 %v821, 64
        %v1950 = vpop.permute.xlu0 %1949
        %1951 = vrot.lane.b32.xlu0 %v824, 64
        %v1952 = vpop.permute.xlu0 %1951
        %1953 = vrot.lane.b32.xlu0 %v827, 64
        %v1954 = vpop.permute.xlu0 %1953
        %1955 = vrot.lane.b32.xlu0 %v830, 64
        %v1956 = vpop.permute.xlu0 %1955
        %1957 = vrot.lane.b32.xlu0 %v833, 64
        %v1958 = vpop.permute.xlu0 %1957
        %1959 = vrot.lane.b32.xlu0 %v836, 64
        %v1960 = vpop.permute.xlu0 %1959
        %1961 = vrot.lane.b32.xlu0 %v839, 64
        %v1962 = vpop.permute.xlu0 %1961
        %1963 = vrot.lane.b32.xlu0 %v842, 64
        %v1964 = vpop.permute.xlu0 %1963
        %1965 = vrot.lane.b32.xlu0 %v845, 64
        %v1966 = vpop.permute.xlu0 %1965
        %1967 = vrot.lane.b32.xlu0 %v848, 64
        %v1968 = vpop.permute.xlu0 %1967
        %1969 = vrot.lane.b32.xlu0 %v851, 64
        %v1970 = vpop.permute.xlu0 %1969
        %1971 = vrot.lane.b32.xlu0 %v854, 64
        %v1972 = vpop.permute.xlu0 %1971
        %1973 = vrot.lane.b32.xlu0 %v857, 64
        %v1974 = vpop.permute.xlu0 %1973
        %1975 = vrot.lane.b32.xlu0 %v860, 64
        %v1976 = vpop.permute.xlu0 %1975
        %1977 = vrot.lane.b32.xlu0 %v863, 64
        %v1978 = vpop.permute.xlu0 %1977
        %1979 = vrot.lane.b32.xlu0 %v883, 64
        %v1980 = vpop.permute.xlu0 %1979
        %1981 = vrot.lane.b32.xlu0 %v886, 64
        %v1982 = vpop.permute.xlu0 %1981
        %1983 = vrot.lane.b32.xlu0 %v889, 64
        %v1984 = vpop.permute.xlu0 %1983
        %1985 = vrot.lane.b32.xlu0 %v892, 64
        %v1986 = vpop.permute.xlu0 %1985
        %1987 = vrot.lane.b32.xlu0 %v895, 64
        %v1988 = vpop.permute.xlu0 %1987
        %1989 = vrot.lane.b32.xlu0 %v898, 64
        %v1990 = vpop.permute.xlu0 %1989
        %1991 = vrot.lane.b32.xlu0 %v901, 64
        %v1992 = vpop.permute.xlu0 %1991
        %1993 = vrot.lane.b32.xlu0 %v904, 64
        %v1994 = vpop.permute.xlu0 %1993
        %1995 = vrot.lane.b32.xlu0 %v907, 64
        %v1996 = vpop.permute.xlu0 %1995
        %1997 = vrot.lane.b32.xlu0 %v910, 64
        %v1998 = vpop.permute.xlu0 %1997
        %1999 = vrot.lane.b32.xlu0 %v913, 64
        %v2000 = vpop.permute.xlu0 %1999
        %2001 = vrot.lane.b32.xlu0 %v916, 64
        %v2002 = vpop.permute.xlu0 %2001
        %2003 = vrot.lane.b32.xlu0 %v919, 64
        %v2004 = vpop.permute.xlu0 %2003
        %2005 = vrot.lane.b32.xlu0 %v922, 64
        %v2006 = vpop.permute.xlu0 %2005
        %2007 = vrot.lane.b32.xlu0 %v925, 64
        %v2008 = vpop.permute.xlu0 %2007
        %2009 = vrot.lane.b32.xlu0 %v928, 64
        %v2010 = vpop.permute.xlu0 %2009
        %v2011 = vsel %vm1046, %v1948, 0
        %v2013 = vsel %vm1046, %v1950, 0
        %v2015 = vsel %vm1046, %v1952, 0
        %v2017 = vsel %vm1046, %v1954, 0
        %v2019 = vsel %vm1046, %v1956, 0
        %v2021 = vsel %vm1046, %v1958, 0
        %v2023 = vsel %vm1046, %v1960, 0
        %v2025 = vsel %vm1046, %v1962, 0
        %v2027 = vsel %vm1046, %v1964, 0
        %v2029 = vsel %vm1046, %v1966, 0
        %v2031 = vsel %vm1046, %v1968, 0
        %v2033 = vsel %vm1046, %v1970, 0
        %v2035 = vsel %vm1046, %v1972, 0
        %v2037 = vsel %vm1046, %v1974, 0
        %v2039 = vsel %vm1046, %v1976, 0
        %v2041 = vsel %vm1046, %v1978, 0
        %v2043 = vsel %vm1046, %v1980, 0
        %v2045 = vsel %vm1046, %v1982, 0
        %v2047 = vsel %vm1046, %v1984, 0
        %v2049 = vsel %vm1046, %v1986, 0
        %v2051 = vsel %vm1046, %v1988, 0
        %v2053 = vsel %vm1046, %v1990, 0
        %v2055 = vsel %vm1046, %v1992, 0
        %v2057 = vsel %vm1046, %v1994, 0
        %v2059 = vsel %vm1046, %v1996, 0
        %v2061 = vsel %vm1046, %v1998, 0
        %v2063 = vsel %vm1046, %v2000, 0
        %v2065 = vsel %vm1046, %v2002, 0
        %v2067 = vsel %vm1046, %v2004, 0
        %v2069 = vsel %vm1046, %v2006, 0
        %v2071 = vsel %vm1046, %v2008, 0
        %v2073 = vsel %vm1046, %v2010, 0
        %2075 = vmatpush.xpose.msra.mxu0 %v2073
        %2076 = vmatpush.xpose.msra.mxu0 %v2071
        %2077 = vmatpush.xpose.msra.mxu0 %v2069
        %2078 = vmatpush.xpose.msra.mxu0 %v2067
        %2079 = vmatpush.xpose.msra.mxu0 %v2065
        %2080 = vmatpush.xpose.msra.mxu0 %v2063
        %2081 = vmatpush.xpose.msra.mxu0 %v2061
        %2082 = vmatpush.xpose.msra.mxu0 %v2059
        %2083 = vmatpush.xpose.msra.mxu0 %v2057
        %2084 = vmatpush.xpose.msra.mxu0 %v2055
        %2085 = vmatpush.xpose.msra.mxu0 %v2053
        %2086 = vmatpush.xpose.msra.mxu0 %v2051
        %2087 = vmatpush.xpose.msra.mxu0 %v2049
        %2088 = vmatpush.xpose.msra.mxu0 %v2047
        %2089 = vmatpush.xpose.msra.mxu0 %v2045
        %2090 = vmatpush.xpose.msra.mxu0 %v2043
        %2091 = vmatmul.f32.gmra.mxu0 %v2011
        %v2092 = vpop.f32.mrf.mxu0
        %v2093 = vadd.f32 0.0, %v2092
        %2094 = vmatmul.f32.gmra.mxu0 %v2013
        %v2095 = vpop.f32.mrf.mxu0
        %v2096 = vadd.f32 0.0, %v2095
        %2097 = vmatmul.f32.gmra.mxu0 %v2015
        %v2098 = vpop.f32.mrf.mxu0
        %v2099 = vadd.f32 0.0, %v2098
        %2100 = vmatmul.f32.gmra.mxu0 %v2017
        %v2101 = vpop.f32.mrf.mxu0
        %v2102 = vadd.f32 0.0, %v2101
        %2103 = vmatmul.f32.gmra.mxu0 %v2019
        %v2104 = vpop.f32.mrf.mxu0
        %v2105 = vadd.f32 0.0, %v2104
        %2106 = vmatmul.f32.gmra.mxu0 %v2021
        %v2107 = vpop.f32.mrf.mxu0
        %v2108 = vadd.f32 0.0, %v2107
        %2109 = vmatmul.f32.gmra.mxu0 %v2023
        %v2110 = vpop.f32.mrf.mxu0
        %v2111 = vadd.f32 0.0, %v2110
        %2112 = vmatmul.f32.gmra.mxu0 %v2025
        %v2113 = vpop.f32.mrf.mxu0
        %v2114 = vadd.f32 0.0, %v2113
        %2115 = vmatmul.f32.gmra.mxu0 %v2027
        %v2116 = vpop.f32.mrf.mxu0
        %v2117 = vadd.f32 0.0, %v2116
        %2118 = vmatmul.f32.gmra.mxu0 %v2029
        %v2119 = vpop.f32.mrf.mxu0
        %v2120 = vadd.f32 0.0, %v2119
        %2121 = vmatmul.f32.gmra.mxu0 %v2031
        %v2122 = vpop.f32.mrf.mxu0
        %v2123 = vadd.f32 0.0, %v2122
        %2124 = vmatmul.f32.gmra.mxu0 %v2033
        %v2125 = vpop.f32.mrf.mxu0
        %v2126 = vadd.f32 0.0, %v2125
        %2127 = vmatmul.f32.gmra.mxu0 %v2035
        %v2128 = vpop.f32.mrf.mxu0
        %v2129 = vadd.f32 0.0, %v2128
        %2130 = vmatmul.f32.gmra.mxu0 %v2037
        %v2131 = vpop.f32.mrf.mxu0
        %v2132 = vadd.f32 0.0, %v2131
        %2133 = vmatmul.f32.gmra.mxu0 %v2039
        %v2134 = vpop.f32.mrf.mxu0
        %v2135 = vadd.f32 0.0, %v2134
        %2136 = vmatmul.f32.gmra.mxu0 %v2041
        %v2137 = vpop.f32.mrf.mxu0
        %v2138 = vadd.f32 0.0, %v2137
        %2139 = vdwg.mxu0
        %v2140 = vmul.f32 %v2093, 0.17677669
        %v2141 = vmul.f32 %v2096, 0.17677669
        %v2142 = vmul.f32 %v2099, 0.17677669
        %v2143 = vmul.f32 %v2102, 0.17677669
        %v2144 = vmul.f32 %v2105, 0.17677669
        %v2145 = vmul.f32 %v2108, 0.17677669
        %v2146 = vmul.f32 %v2111, 0.17677669
        %v2147 = vmul.f32 %v2114, 0.17677669
        %v2148 = vmul.f32 %v2117, 0.17677669
        %v2149 = vmul.f32 %v2120, 0.17677669
        %v2150 = vmul.f32 %v2123, 0.17677669
        %v2151 = vmul.f32 %v2126, 0.17677669
        %v2152 = vmul.f32 %v2129, 0.17677669
        %v2153 = vmul.f32 %v2132, 0.17677669
        %v2154 = vmul.f32 %v2135, 0.17677669
        %v2155 = vmul.f32 %v2138, 0.17677669
        %v2156 = vadd.f32 %v2140, %v1030
        %v2157 = vadd.f32 %v2141, %v1031
        %v2158 = vadd.f32 %v2142, %v1032
        %v2159 = vadd.f32 %v2143, %v1033
        %v2160 = vadd.f32 %v2144, %v1034
        %v2161 = vadd.f32 %v2145, %v1035
        %v2162 = vadd.f32 %v2146, %v1036
        %v2163 = vadd.f32 %v2147, %v1037
        %v2164 = vadd.f32 %v2148, %v1038
        %v2165 = vadd.f32 %v2149, %v1039
        %v2166 = vadd.f32 %v2150, %v1040
        %v2167 = vadd.f32 %v2151, %v1041
        %v2168 = vadd.f32 %v2152, %v1042
        %v2169 = vadd.f32 %v2153, %v1043
        %v2170 = vadd.f32 %v2154, %v1044
        %v2171 = vadd.f32 %v2155, %v1045
        %2172 = vmax.xlane.f32.xlu0 %v2156
        %v2173 = vpop.xlane.xlu0 %2172
        %2174 = vmax.xlane.f32.xlu0 %v2157
        %v2175 = vpop.xlane.xlu0 %2174
        %2176 = vmax.xlane.f32.xlu0 %v2158
        %v2177 = vpop.xlane.xlu0 %2176
        %2178 = vmax.xlane.f32.xlu0 %v2159
        %v2179 = vpop.xlane.xlu0 %2178
        %2180 = vmax.xlane.f32.xlu0 %v2160
        %v2181 = vpop.xlane.xlu0 %2180
        %2182 = vmax.xlane.f32.xlu0 %v2161
        %v2183 = vpop.xlane.xlu0 %2182
        %2184 = vmax.xlane.f32.xlu0 %v2162
        %v2185 = vpop.xlane.xlu0 %2184
        %2186 = vmax.xlane.f32.xlu0 %v2163
        %v2187 = vpop.xlane.xlu0 %2186
        %2188 = vmax.xlane.f32.xlu0 %v2164
        %v2189 = vpop.xlane.xlu0 %2188
        %2190 = vmax.xlane.f32.xlu0 %v2165
        %v2191 = vpop.xlane.xlu0 %2190
        %2192 = vmax.xlane.f32.xlu0 %v2166
        %v2193 = vpop.xlane.xlu0 %2192
        %2194 = vmax.xlane.f32.xlu0 %v2167
        %v2195 = vpop.xlane.xlu0 %2194
        %2196 = vmax.xlane.f32.xlu0 %v2168
        %v2197 = vpop.xlane.xlu0 %2196
        %2198 = vmax.xlane.f32.xlu0 %v2169
        %v2199 = vpop.xlane.xlu0 %2198
        %2200 = vmax.xlane.f32.xlu0 %v2170
        %v2201 = vpop.xlane.xlu0 %2200
        %2202 = vmax.xlane.f32.xlu0 %v2171
        %v2203 = vpop.xlane.xlu0 %2202
        %v2204 = vsub.f32 %v2156, %v2173
        %v2205 = vsub.f32 %v2157, %v2175
        %v2206 = vsub.f32 %v2158, %v2177
        %v2207 = vsub.f32 %v2159, %v2179
        %v2208 = vsub.f32 %v2160, %v2181
        %v2209 = vsub.f32 %v2161, %v2183
        %v2210 = vsub.f32 %v2162, %v2185
        %v2211 = vsub.f32 %v2163, %v2187
        %v2212 = vsub.f32 %v2164, %v2189
        %v2213 = vsub.f32 %v2165, %v2191
        %v2214 = vsub.f32 %v2166, %v2193
        %v2215 = vsub.f32 %v2167, %v2195
        %v2216 = vsub.f32 %v2168, %v2197
        %v2217 = vsub.f32 %v2169, %v2199
        %v2218 = vsub.f32 %v2170, %v2201
        %v2219 = vsub.f32 %v2171, %v2203
        %v2220 = vmul.f32 %v2204, 1.442695
        %v2221 = vpow.pop %v2220
        %v2222 = vmul.f32 %v2205, 1.442695
        %v2223 = vpow.pop %v2222
        %v2224 = vmul.f32 %v2206, 1.442695
        %v2225 = vpow.pop %v2224
        %v2226 = vmul.f32 %v2207, 1.442695
        %v2227 = vpow.pop %v2226
        %v2228 = vmul.f32 %v2208, 1.442695
        %v2229 = vpow.pop %v2228
        %v2230 = vmul.f32 %v2209, 1.442695
        %v2231 = vpow.pop %v2230
        %v2232 = vmul.f32 %v2210, 1.442695
        %v2233 = vpow.pop %v2232
        %v2234 = vmul.f32 %v2211, 1.442695
        %v2235 = vpow.pop %v2234
        %v2236 = vmul.f32 %v2212, 1.442695
        %v2237 = vpow.pop %v2236
        %v2238 = vmul.f32 %v2213, 1.442695
        %v2239 = vpow.pop %v2238
        %v2240 = vmul.f32 %v2214, 1.442695
        %v2241 = vpow.pop %v2240
        %v2242 = vmul.f32 %v2215, 1.442695
        %v2243 = vpow.pop %v2242
        %v2244 = vmul.f32 %v2216, 1.442695
        %v2245 = vpow.pop %v2244
        %v2246 = vmul.f32 %v2217, 1.442695
        %v2247 = vpow.pop %v2246
        %v2248 = vmul.f32 %v2218, 1.442695
        %v2249 = vpow.pop %v2248
        %v2250 = vmul.f32 %v2219, 1.442695
        %v2251 = vpow.pop %v2250
        %2252 = vadd.xlane.f32.xlu0 %v2221
        %v2253 = vpop.xlane.xlu0 %2252
        %2254 = vadd.xlane.f32.xlu0 %v2223
        %v2255 = vpop.xlane.xlu0 %2254
        %2256 = vadd.xlane.f32.xlu0 %v2225
        %v2257 = vpop.xlane.xlu0 %2256
        %2258 = vadd.xlane.f32.xlu0 %v2227
        %v2259 = vpop.xlane.xlu0 %2258
        %2260 = vadd.xlane.f32.xlu0 %v2229
        %v2261 = vpop.xlane.xlu0 %2260
        %2262 = vadd.xlane.f32.xlu0 %v2231
        %v2263 = vpop.xlane.xlu0 %2262
        %2264 = vadd.xlane.f32.xlu0 %v2233
        %v2265 = vpop.xlane.xlu0 %2264
        %2266 = vadd.xlane.f32.xlu0 %v2235
        %v2267 = vpop.xlane.xlu0 %2266
        %2268 = vadd.xlane.f32.xlu0 %v2237
        %v2269 = vpop.xlane.xlu0 %2268
        %2270 = vadd.xlane.f32.xlu0 %v2239
        %v2271 = vpop.xlane.xlu0 %2270
        %2272 = vadd.xlane.f32.xlu0 %v2241
        %v2273 = vpop.xlane.xlu0 %2272
        %2274 = vadd.xlane.f32.xlu0 %v2243
        %v2275 = vpop.xlane.xlu0 %2274
        %2276 = vadd.xlane.f32.xlu0 %v2245
        %v2277 = vpop.xlane.xlu0 %2276
        %2278 = vadd.xlane.f32.xlu0 %v2247
        %v2279 = vpop.xlane.xlu0 %2278
        %2280 = vadd.xlane.f32.xlu0 %v2249
        %v2281 = vpop.xlane.xlu0 %2280
        %2282 = vadd.xlane.f32.xlu0 %v2251
        %v2283 = vpop.xlane.xlu0 %2282
        %v2284 = vrcp.pop %v2253
        %v2285 = vrcp.pop %v2255
        %v2286 = vrcp.pop %v2257
        %v2287 = vrcp.pop %v2259
        %v2288 = vrcp.pop %v2261
        %v2289 = vrcp.pop %v2263
        %v2290 = vrcp.pop %v2265
        %v2291 = vrcp.pop %v2267
        %v2292 = vrcp.pop %v2269
        %v2293 = vrcp.pop %v2271
        %v2294 = vrcp.pop %v2273
        %v2295 = vrcp.pop %v2275
        %v2296 = vrcp.pop %v2277
        %v2297 = vrcp.pop %v2279
        %v2298 = vrcp.pop %v2281
        %v2299 = vrcp.pop %v2283
        %v2300 = vmul.f32 %v2221, %v2284
        %v2301 = vmul.f32 %v2223, %v2285
        %v2302 = vmul.f32 %v2225, %v2286
        %v2303 = vmul.f32 %v2227, %v2287
        %v2304 = vmul.f32 %v2229, %v2288
        %v2305 = vmul.f32 %v2231, %v2289
        %v2306 = vmul.f32 %v2233, %v2290
        %v2307 = vmul.f32 %v2235, %v2291
        %v2308 = vmul.f32 %v2237, %v2292
        %v2309 = vmul.f32 %v2239, %v2293
        %v2310 = vmul.f32 %v2241, %v2294
        %v2311 = vmul.f32 %v2243, %v2295
        %v2312 = vmul.f32 %v2245, %v2296
        %v2313 = vmul.f32 %v2247, %v2297
        %v2314 = vmul.f32 %v2249, %v2298
        %v2315 = vmul.f32 %v2251, %v2299
        %2316 = vrot.lane.b32.xlu0 %v948, 64
        %v2317 = vpop.permute.xlu0 %2316
        %2318 = vrot.lane.b32.xlu0 %v951, 64
        %v2319 = vpop.permute.xlu0 %2318
        %2320 = vrot.lane.b32.xlu0 %v954, 64
        %v2321 = vpop.permute.xlu0 %2320
        %2322 = vrot.lane.b32.xlu0 %v957, 64
        %v2323 = vpop.permute.xlu0 %2322
        %2324 = vrot.lane.b32.xlu0 %v960, 64
        %v2325 = vpop.permute.xlu0 %2324
        %2326 = vrot.lane.b32.xlu0 %v963, 64
        %v2327 = vpop.permute.xlu0 %2326
        %2328 = vrot.lane.b32.xlu0 %v966, 64
        %v2329 = vpop.permute.xlu0 %2328
        %2330 = vrot.lane.b32.xlu0 %v969, 64
        %v2331 = vpop.permute.xlu0 %2330
        %2332 = vrot.lane.b32.xlu0 %v972, 64
        %v2333 = vpop.permute.xlu0 %2332
        %2334 = vrot.lane.b32.xlu0 %v975, 64
        %v2335 = vpop.permute.xlu0 %2334
        %2336 = vrot.lane.b32.xlu0 %v978, 64
        %v2337 = vpop.permute.xlu0 %2336
        %2338 = vrot.lane.b32.xlu0 %v981, 64
        %v2339 = vpop.permute.xlu0 %2338
        %2340 = vrot.lane.b32.xlu0 %v984, 64
        %v2341 = vpop.permute.xlu0 %2340
        %2342 = vrot.lane.b32.xlu0 %v987, 64
        %v2343 = vpop.permute.xlu0 %2342
        %2344 = vrot.lane.b32.xlu0 %v990, 64
        %v2345 = vpop.permute.xlu0 %2344
        %2346 = vrot.lane.b32.xlu0 %v993, 64
        %v2347 = vpop.permute.xlu0 %2346
        %2364 = vmatpush.msra.mxu0 %v2347
        %2365 = vmatpush.msra.mxu0 %v2345
        %2366 = vmatpush.msra.mxu0 %v2343
        %2367 = vmatpush.msra.mxu0 %v2341
        %2368 = vmatpush.msra.mxu0 %v2339
        %2369 = vmatpush.msra.mxu0 %v2337
        %2370 = vmatpush.msra.mxu0 %v2335
        %2371 = vmatpush.msra.mxu0 %v2333
        %2372 = vmatpush.msra.mxu0 %v2331
        %2373 = vmatpush.msra.mxu0 %v2329
        %2374 = vmatpush.msra.mxu0 %v2327
        %2375 = vmatpush.msra.mxu0 %v2325
        %2376 = vmatpush.msra.mxu0 %v2323
        %2377 = vmatpush.msra.mxu0 %v2321
        %2378 = vmatpush.msra.mxu0 %v2319
        %2379 = vmatpush.msra.mxu0 %v2317
        %2380 = vmatmul.f32.gmra.mxu0 %v2300
        %v2381 = vpop.f32.mrf.mxu0
        %v2382 = vadd.f32 0.0, %v2381
        %2383 = vmatmul.f32.gmra.mxu0 %v2301
        %v2384 = vpop.f32.mrf.mxu0
        %v2385 = vadd.f32 0.0, %v2384
        %2386 = vmatmul.f32.gmra.mxu0 %v2302
        %v2387 = vpop.f32.mrf.mxu0
        %v2388 = vadd.f32 0.0, %v2387
        %2389 = vmatmul.f32.gmra.mxu0 %v2303
        %v2390 = vpop.f32.mrf.mxu0
        %v2391 = vadd.f32 0.0, %v2390
        %2392 = vmatmul.f32.gmra.mxu0 %v2304
        %v2393 = vpop.f32.mrf.mxu0
        %v2394 = vadd.f32 0.0, %v2393
        %2395 = vmatmul.f32.gmra.mxu0 %v2305
        %v2396 = vpop.f32.mrf.mxu0
        %v2397 = vadd.f32 0.0, %v2396
        %2398 = vmatmul.f32.gmra.mxu0 %v2306
        %v2399 = vpop.f32.mrf.mxu0
        %v2400 = vadd.f32 0.0, %v2399
        %2401 = vmatmul.f32.gmra.mxu0 %v2307
        %v2402 = vpop.f32.mrf.mxu0
        %v2403 = vadd.f32 0.0, %v2402
        %2404 = vmatmul.f32.gmra.mxu0 %v2308
        %v2405 = vpop.f32.mrf.mxu0
        %v2406 = vadd.f32 0.0, %v2405
        %2407 = vmatmul.f32.gmra.mxu0 %v2309
        %v2408 = vpop.f32.mrf.mxu0
        %v2409 = vadd.f32 0.0, %v2408
        %2410 = vmatmul.f32.gmra.mxu0 %v2310
        %v2411 = vpop.f32.mrf.mxu0
        %v2412 = vadd.f32 0.0, %v2411
        %2413 = vmatmul.f32.gmra.mxu0 %v2311
        %v2414 = vpop.f32.mrf.mxu0
        %v2415 = vadd.f32 0.0, %v2414
        %2416 = vmatmul.f32.gmra.mxu0 %v2312
        %v2417 = vpop.f32.mrf.mxu0
        %v2418 = vadd.f32 0.0, %v2417
        %2419 = vmatmul.f32.gmra.mxu0 %v2313
        %v2420 = vpop.f32.mrf.mxu0
        %v2421 = vadd.f32 0.0, %v2420
        %2422 = vmatmul.f32.gmra.mxu0 %v2314
        %v2423 = vpop.f32.mrf.mxu0
        %v2424 = vadd.f32 0.0, %v2423
        %2425 = vmatmul.f32.gmra.mxu0 %v2315
        %v2426 = vpop.f32.mrf.mxu0
        %v2427 = vadd.f32 0.0, %v2426
        %2428 = vdwg.mxu0
        %2429 = vrot.lane.b32.xlu0 %v818, 32
        %v2430 = vpop.permute.xlu0 %2429
        %2431 = vrot.lane.b32.xlu0 %v821, 32
        %v2432 = vpop.permute.xlu0 %2431
        %2433 = vrot.lane.b32.xlu0 %v824, 32
        %v2434 = vpop.permute.xlu0 %2433
        %2435 = vrot.lane.b32.xlu0 %v827, 32
        %v2436 = vpop.permute.xlu0 %2435
        %2437 = vrot.lane.b32.xlu0 %v830, 32
        %v2438 = vpop.permute.xlu0 %2437
        %2439 = vrot.lane.b32.xlu0 %v833, 32
        %v2440 = vpop.permute.xlu0 %2439
        %2441 = vrot.lane.b32.xlu0 %v836, 32
        %v2442 = vpop.permute.xlu0 %2441
        %2443 = vrot.lane.b32.xlu0 %v839, 32
        %v2444 = vpop.permute.xlu0 %2443
        %2445 = vrot.lane.b32.xlu0 %v842, 32
        %v2446 = vpop.permute.xlu0 %2445
        %2447 = vrot.lane.b32.xlu0 %v845, 32
        %v2448 = vpop.permute.xlu0 %2447
        %2449 = vrot.lane.b32.xlu0 %v848, 32
        %v2450 = vpop.permute.xlu0 %2449
        %2451 = vrot.lane.b32.xlu0 %v851, 32
        %v2452 = vpop.permute.xlu0 %2451
        %2453 = vrot.lane.b32.xlu0 %v854, 32
        %v2454 = vpop.permute.xlu0 %2453
        %2455 = vrot.lane.b32.xlu0 %v857, 32
        %v2456 = vpop.permute.xlu0 %2455
        %2457 = vrot.lane.b32.xlu0 %v860, 32
        %v2458 = vpop.permute.xlu0 %2457
        %2459 = vrot.lane.b32.xlu0 %v863, 32
        %v2460 = vpop.permute.xlu0 %2459
        %2461 = vrot.lane.b32.xlu0 %v883, 32
        %v2462 = vpop.permute.xlu0 %2461
        %2463 = vrot.lane.b32.xlu0 %v886, 32
        %v2464 = vpop.permute.xlu0 %2463
        %2465 = vrot.lane.b32.xlu0 %v889, 32
        %v2466 = vpop.permute.xlu0 %2465
        %2467 = vrot.lane.b32.xlu0 %v892, 32
        %v2468 = vpop.permute.xlu0 %2467
        %2469 = vrot.lane.b32.xlu0 %v895, 32
        %v2470 = vpop.permute.xlu0 %2469
        %2471 = vrot.lane.b32.xlu0 %v898, 32
        %v2472 = vpop.permute.xlu0 %2471
        %2473 = vrot.lane.b32.xlu0 %v901, 32
        %v2474 = vpop.permute.xlu0 %2473
        %2475 = vrot.lane.b32.xlu0 %v904, 32
        %v2476 = vpop.permute.xlu0 %2475
        %2477 = vrot.lane.b32.xlu0 %v907, 32
        %v2478 = vpop.permute.xlu0 %2477
        %2479 = vrot.lane.b32.xlu0 %v910, 32
        %v2480 = vpop.permute.xlu0 %2479
        %2481 = vrot.lane.b32.xlu0 %v913, 32
        %v2482 = vpop.permute.xlu0 %2481
        %2483 = vrot.lane.b32.xlu0 %v916, 32
        %v2484 = vpop.permute.xlu0 %2483
        %2485 = vrot.lane.b32.xlu0 %v919, 32
        %v2486 = vpop.permute.xlu0 %2485
        %2487 = vrot.lane.b32.xlu0 %v922, 32
        %v2488 = vpop.permute.xlu0 %2487
        %2489 = vrot.lane.b32.xlu0 %v925, 32
        %v2490 = vpop.permute.xlu0 %2489
        %2491 = vrot.lane.b32.xlu0 %v928, 32
        %v2492 = vpop.permute.xlu0 %2491
        %v2493 = vsel %vm1046, %v2430, 0
        %v2495 = vsel %vm1046, %v2432, 0
        %v2497 = vsel %vm1046, %v2434, 0
        %v2499 = vsel %vm1046, %v2436, 0
        %v2501 = vsel %vm1046, %v2438, 0
        %v2503 = vsel %vm1046, %v2440, 0
        %v2505 = vsel %vm1046, %v2442, 0
        %v2507 = vsel %vm1046, %v2444, 0
        %v2509 = vsel %vm1046, %v2446, 0
        %v2511 = vsel %vm1046, %v2448, 0
        %v2513 = vsel %vm1046, %v2450, 0
        %v2515 = vsel %vm1046, %v2452, 0
        %v2517 = vsel %vm1046, %v2454, 0
        %v2519 = vsel %vm1046, %v2456, 0
        %v2521 = vsel %vm1046, %v2458, 0
        %v2523 = vsel %vm1046, %v2460, 0
        %v2525 = vsel %vm1046, %v2462, 0
        %v2527 = vsel %vm1046, %v2464, 0
        %v2529 = vsel %vm1046, %v2466, 0
        %v2531 = vsel %vm1046, %v2468, 0
        %v2533 = vsel %vm1046, %v2470, 0
        %v2535 = vsel %vm1046, %v2472, 0
        %v2537 = vsel %vm1046, %v2474, 0
        %v2539 = vsel %vm1046, %v2476, 0
        %v2541 = vsel %vm1046, %v2478, 0
        %v2543 = vsel %vm1046, %v2480, 0
        %v2545 = vsel %vm1046, %v2482, 0
        %v2547 = vsel %vm1046, %v2484, 0
        %v2549 = vsel %vm1046, %v2486, 0
        %v2551 = vsel %vm1046, %v2488, 0
        %v2553 = vsel %vm1046, %v2490, 0
        %v2555 = vsel %vm1046, %v2492, 0
        %2557 = vmatpush.xpose.msra.mxu0 %v2555
        %2558 = vmatpush.xpose.msra.mxu0 %v2553
        %2559 = vmatpush.xpose.msra.mxu0 %v2551
        %2560 = vmatpush.xpose.msra.mxu0 %v2549
        %2561 = vmatpush.xpose.msra.mxu0 %v2547
        %2562 = vmatpush.xpose.msra.mxu0 %v2545
        %2563 = vmatpush.xpose.msra.mxu0 %v2543
        %2564 = vmatpush.xpose.msra.mxu0 %v2541
        %2565 = vmatpush.xpose.msra.mxu0 %v2539
        %2566 = vmatpush.xpose.msra.mxu0 %v2537
        %2567 = vmatpush.xpose.msra.mxu0 %v2535
        %2568 = vmatpush.xpose.msra.mxu0 %v2533
        %2569 = vmatpush.xpose.msra.mxu0 %v2531
        %2570 = vmatpush.xpose.msra.mxu0 %v2529
        %2571 = vmatpush.xpose.msra.mxu0 %v2527
        %2572 = vmatpush.xpose.msra.mxu0 %v2525
        %2573 = vmatmul.f32.gmra.mxu0 %v2493
        %v2574 = vpop.f32.mrf.mxu0
        %v2575 = vadd.f32 0.0, %v2574
        %2576 = vmatmul.f32.gmra.mxu0 %v2495
        %v2577 = vpop.f32.mrf.mxu0
        %v2578 = vadd.f32 0.0, %v2577
        %2579 = vmatmul.f32.gmra.mxu0 %v2497
        %v2580 = vpop.f32.mrf.mxu0
        %v2581 = vadd.f32 0.0, %v2580
        %2582 = vmatmul.f32.gmra.mxu0 %v2499
        %v2583 = vpop.f32.mrf.mxu0
        %v2584 = vadd.f32 0.0, %v2583
        %2585 = vmatmul.f32.gmra.mxu0 %v2501
        %v2586 = vpop.f32.mrf.mxu0
        %v2587 = vadd.f32 0.0, %v2586
        %2588 = vmatmul.f32.gmra.mxu0 %v2503
        %v2589 = vpop.f32.mrf.mxu0
        %v2590 = vadd.f32 0.0, %v2589
        %2591 = vmatmul.f32.gmra.mxu0 %v2505
        %v2592 = vpop.f32.mrf.mxu0
        %v2593 = vadd.f32 0.0, %v2592
        %2594 = vmatmul.f32.gmra.mxu0 %v2507
        %v2595 = vpop.f32.mrf.mxu0
        %v2596 = vadd.f32 0.0, %v2595
        %2597 = vmatmul.f32.gmra.mxu0 %v2509
        %v2598 = vpop.f32.mrf.mxu0
        %v2599 = vadd.f32 0.0, %v2598
        %2600 = vmatmul.f32.gmra.mxu0 %v2511
        %v2601 = vpop.f32.mrf.mxu0
        %v2602 = vadd.f32 0.0, %v2601
        %2603 = vmatmul.f32.gmra.mxu0 %v2513
        %v2604 = vpop.f32.mrf.mxu0
        %v2605 = vadd.f32 0.0, %v2604
        %2606 = vmatmul.f32.gmra.mxu0 %v2515
        %v2607 = vpop.f32.mrf.mxu0
        %v2608 = vadd.f32 0.0, %v2607
        %2609 = vmatmul.f32.gmra.mxu0 %v2517
        %v2610 = vpop.f32.mrf.mxu0
        %v2611 = vadd.f32 0.0, %v2610
        %2612 = vmatmul.f32.gmra.mxu0 %v2519
        %v2613 = vpop.f32.mrf.mxu0
        %v2614 = vadd.f32 0.0, %v2613
        %2615 = vmatmul.f32.gmra.mxu0 %v2521
        %v2616 = vpop.f32.mrf.mxu0
        %v2617 = vadd.f32 0.0, %v2616
        %2618 = vmatmul.f32.gmra.mxu0 %v2523
        %v2619 = vpop.f32.mrf.mxu0
        %v2620 = vadd.f32 0.0, %v2619
        %2621 = vdwg.mxu0
        %v2622 = vmul.f32 %v2575, 0.17677669
        %v2623 = vmul.f32 %v2578, 0.17677669
        %v2624 = vmul.f32 %v2581, 0.17677669
        %v2625 = vmul.f32 %v2584, 0.17677669
        %v2626 = vmul.f32 %v2587, 0.17677669
        %v2627 = vmul.f32 %v2590, 0.17677669
        %v2628 = vmul.f32 %v2593, 0.17677669
        %v2629 = vmul.f32 %v2596, 0.17677669
        %v2630 = vmul.f32 %v2599, 0.17677669
        %v2631 = vmul.f32 %v2602, 0.17677669
        %v2632 = vmul.f32 %v2605, 0.17677669
        %v2633 = vmul.f32 %v2608, 0.17677669
        %v2634 = vmul.f32 %v2611, 0.17677669
        %v2635 = vmul.f32 %v2614, 0.17677669
        %v2636 = vmul.f32 %v2617, 0.17677669
        %v2637 = vmul.f32 %v2620, 0.17677669
        %v2638 = vadd.f32 %v2622, %v1030
        %v2639 = vadd.f32 %v2623, %v1031
        %v2640 = vadd.f32 %v2624, %v1032
        %v2641 = vadd.f32 %v2625, %v1033
        %v2642 = vadd.f32 %v2626, %v1034
        %v2643 = vadd.f32 %v2627, %v1035
        %v2644 = vadd.f32 %v2628, %v1036
        %v2645 = vadd.f32 %v2629, %v1037
        %v2646 = vadd.f32 %v2630, %v1038
        %v2647 = vadd.f32 %v2631, %v1039
        %v2648 = vadd.f32 %v2632, %v1040
        %v2649 = vadd.f32 %v2633, %v1041
        %v2650 = vadd.f32 %v2634, %v1042
        %v2651 = vadd.f32 %v2635, %v1043
        %v2652 = vadd.f32 %v2636, %v1044
        %v2653 = vadd.f32 %v2637, %v1045
        %2654 = vmax.xlane.f32.xlu0 %v2638
        %v2655 = vpop.xlane.xlu0 %2654
        %2656 = vmax.xlane.f32.xlu0 %v2639
        %v2657 = vpop.xlane.xlu0 %2656
        %2658 = vmax.xlane.f32.xlu0 %v2640
        %v2659 = vpop.xlane.xlu0 %2658
        %2660 = vmax.xlane.f32.xlu0 %v2641
        %v2661 = vpop.xlane.xlu0 %2660
        %2662 = vmax.xlane.f32.xlu0 %v2642
        %v2663 = vpop.xlane.xlu0 %2662
        %2664 = vmax.xlane.f32.xlu0 %v2643
        %v2665 = vpop.xlane.xlu0 %2664
        %2666 = vmax.xlane.f32.xlu0 %v2644
        %v2667 = vpop.xlane.xlu0 %2666
        %2668 = vmax.xlane.f32.xlu0 %v2645
        %v2669 = vpop.xlane.xlu0 %2668
        %2670 = vmax.xlane.f32.xlu0 %v2646
        %v2671 = vpop.xlane.xlu0 %2670
        %2672 = vmax.xlane.f32.xlu0 %v2647
        %v2673 = vpop.xlane.xlu0 %2672
        %2674 = vmax.xlane.f32.xlu0 %v2648
        %v2675 = vpop.xlane.xlu0 %2674
        %2676 = vmax.xlane.f32.xlu0 %v2649
        %v2677 = vpop.xlane.xlu0 %2676
        %2678 = vmax.xlane.f32.xlu0 %v2650
        %v2679 = vpop.xlane.xlu0 %2678
        %2680 = vmax.xlane.f32.xlu0 %v2651
        %v2681 = vpop.xlane.xlu0 %2680
        %2682 = vmax.xlane.f32.xlu0 %v2652
        %v2683 = vpop.xlane.xlu0 %2682
        %2684 = vmax.xlane.f32.xlu0 %v2653
        %v2685 = vpop.xlane.xlu0 %2684
        %v2686 = vsub.f32 %v2638, %v2655
        %v2687 = vsub.f32 %v2639, %v2657
        %v2688 = vsub.f32 %v2640, %v2659
        %v2689 = vsub.f32 %v2641, %v2661
        %v2690 = vsub.f32 %v2642, %v2663
        %v2691 = vsub.f32 %v2643, %v2665
        %v2692 = vsub.f32 %v2644, %v2667
        %v2693 = vsub.f32 %v2645, %v2669
        %v2694 = vsub.f32 %v2646, %v2671
        %v2695 = vsub.f32 %v2647, %v2673
        %v2696 = vsub.f32 %v2648, %v2675
        %v2697 = vsub.f32 %v2649, %v2677
        %v2698 = vsub.f32 %v2650, %v2679
        %v2699 = vsub.f32 %v2651, %v2681
        %v2700 = vsub.f32 %v2652, %v2683
        %v2701 = vsub.f32 %v2653, %v2685
        %v2702 = vmul.f32 %v2686, 1.442695
        %v2703 = vpow.pop %v2702
        %v2704 = vmul.f32 %v2687, 1.442695
        %v2705 = vpow.pop %v2704
        %v2706 = vmul.f32 %v2688, 1.442695
        %v2707 = vpow.pop %v2706
        %v2708 = vmul.f32 %v2689, 1.442695
        %v2709 = vpow.pop %v2708
        %v2710 = vmul.f32 %v2690, 1.442695
        %v2711 = vpow.pop %v2710
        %v2712 = vmul.f32 %v2691, 1.442695
        %v2713 = vpow.pop %v2712
        %v2714 = vmul.f32 %v2692, 1.442695
        %v2715 = vpow.pop %v2714
        %v2716 = vmul.f32 %v2693, 1.442695
        %v2717 = vpow.pop %v2716
        %v2718 = vmul.f32 %v2694, 1.442695
        %v2719 = vpow.pop %v2718
        %v2720 = vmul.f32 %v2695, 1.442695
        %v2721 = vpow.pop %v2720
        %v2722 = vmul.f32 %v2696, 1.442695
        %v2723 = vpow.pop %v2722
        %v2724 = vmul.f32 %v2697, 1.442695
        %v2725 = vpow.pop %v2724
        %v2726 = vmul.f32 %v2698, 1.442695
        %v2727 = vpow.pop %v2726
        %v2728 = vmul.f32 %v2699, 1.442695
        %v2729 = vpow.pop %v2728
        %v2730 = vmul.f32 %v2700, 1.442695
        %v2731 = vpow.pop %v2730
        %v2732 = vmul.f32 %v2701, 1.442695
        %v2733 = vpow.pop %v2732
        %2734 = vadd.xlane.f32.xlu0 %v2703
        %v2735 = vpop.xlane.xlu0 %2734
        %2736 = vadd.xlane.f32.xlu0 %v2705
        %v2737 = vpop.xlane.xlu0 %2736
        %2738 = vadd.xlane.f32.xlu0 %v2707
        %v2739 = vpop.xlane.xlu0 %2738
        %2740 = vadd.xlane.f32.xlu0 %v2709
        %v2741 = vpop.xlane.xlu0 %2740
        %2742 = vadd.xlane.f32.xlu0 %v2711
        %v2743 = vpop.xlane.xlu0 %2742
        %2744 = vadd.xlane.f32.xlu0 %v2713
        %v2745 = vpop.xlane.xlu0 %2744
        %2746 = vadd.xlane.f32.xlu0 %v2715
        %v2747 = vpop.xlane.xlu0 %2746
        %2748 = vadd.xlane.f32.xlu0 %v2717
        %v2749 = vpop.xlane.xlu0 %2748
        %2750 = vadd.xlane.f32.xlu0 %v2719
        %v2751 = vpop.xlane.xlu0 %2750
        %2752 = vadd.xlane.f32.xlu0 %v2721
        %v2753 = vpop.xlane.xlu0 %2752
        %2754 = vadd.xlane.f32.xlu0 %v2723
        %v2755 = vpop.xlane.xlu0 %2754
        %2756 = vadd.xlane.f32.xlu0 %v2725
        %v2757 = vpop.xlane.xlu0 %2756
        %2758 = vadd.xlane.f32.xlu0 %v2727
        %v2759 = vpop.xlane.xlu0 %2758
        %2760 = vadd.xlane.f32.xlu0 %v2729
        %v2761 = vpop.xlane.xlu0 %2760
        %2762 = vadd.xlane.f32.xlu0 %v2731
        %v2763 = vpop.xlane.xlu0 %2762
        %2764 = vadd.xlane.f32.xlu0 %v2733
        %v2765 = vpop.xlane.xlu0 %2764
        %v2766 = vrcp.pop %v2735
        %v2767 = vrcp.pop %v2737
        %v2768 = vrcp.pop %v2739
        %v2769 = vrcp.pop %v2741
        %v2770 = vrcp.pop %v2743
        %v2771 = vrcp.pop %v2745
        %v2772 = vrcp.pop %v2747
        %v2773 = vrcp.pop %v2749
        %v2774 = vrcp.pop %v2751
        %v2775 = vrcp.pop %v2753
        %v2776 = vrcp.pop %v2755
        %v2777 = vrcp.pop %v2757
        %v2778 = vrcp.pop %v2759
        %v2779 = vrcp.pop %v2761
        %v2780 = vrcp.pop %v2763
        %v2781 = vrcp.pop %v2765
        %v2782 = vmul.f32 %v2703, %v2766
        %v2783 = vmul.f32 %v2705, %v2767
        %v2784 = vmul.f32 %v2707, %v2768
        %v2785 = vmul.f32 %v2709, %v2769
        %v2786 = vmul.f32 %v2711, %v2770
        %v2787 = vmul.f32 %v2713, %v2771
        %v2788 = vmul.f32 %v2715, %v2772
        %v2789 = vmul.f32 %v2717, %v2773
        %v2790 = vmul.f32 %v2719, %v2774
        %v2791 = vmul.f32 %v2721, %v2775
        %v2792 = vmul.f32 %v2723, %v2776
        %v2793 = vmul.f32 %v2725, %v2777
        %v2794 = vmul.f32 %v2727, %v2778
        %v2795 = vmul.f32 %v2729, %v2779
        %v2796 = vmul.f32 %v2731, %v2780
        %v2797 = vmul.f32 %v2733, %v2781
        %2798 = vrot.lane.b32.xlu0 %v948, 32
        %v2799 = vpop.permute.xlu0 %2798
        %2800 = vrot.lane.b32.xlu0 %v951, 32
        %v2801 = vpop.permute.xlu0 %2800
        %2802 = vrot.lane.b32.xlu0 %v954, 32
        %v2803 = vpop.permute.xlu0 %2802
        %2804 = vrot.lane.b32.xlu0 %v957, 32
        %v2805 = vpop.permute.xlu0 %2804
        %2806 = vrot.lane.b32.xlu0 %v960, 32
        %v2807 = vpop.permute.xlu0 %2806
        %2808 = vrot.lane.b32.xlu0 %v963, 32
        %v2809 = vpop.permute.xlu0 %2808
        %2810 = vrot.lane.b32.xlu0 %v966, 32
        %v2811 = vpop.permute.xlu0 %2810
        %2812 = vrot.lane.b32.xlu0 %v969, 32
        %v2813 = vpop.permute.xlu0 %2812
        %2814 = vrot.lane.b32.xlu0 %v972, 32
        %v2815 = vpop.permute.xlu0 %2814
        %2816 = vrot.lane.b32.xlu0 %v975, 32
        %v2817 = vpop.permute.xlu0 %2816
        %2818 = vrot.lane.b32.xlu0 %v978, 32
        %v2819 = vpop.permute.xlu0 %2818
        %2820 = vrot.lane.b32.xlu0 %v981, 32
        %v2821 = vpop.permute.xlu0 %2820
        %2822 = vrot.lane.b32.xlu0 %v984, 32
        %v2823 = vpop.permute.xlu0 %2822
        %2824 = vrot.lane.b32.xlu0 %v987, 32
        %v2825 = vpop.permute.xlu0 %2824
        %2826 = vrot.lane.b32.xlu0 %v990, 32
        %v2827 = vpop.permute.xlu0 %2826
        %2828 = vrot.lane.b32.xlu0 %v993, 32
        %v2829 = vpop.permute.xlu0 %2828
        %2846 = vmatpush.msra.mxu0 %v2829
        %2847 = vmatpush.msra.mxu0 %v2827
        %2848 = vmatpush.msra.mxu0 %v2825
        %2849 = vmatpush.msra.mxu0 %v2823
        %2850 = vmatpush.msra.mxu0 %v2821
        %2851 = vmatpush.msra.mxu0 %v2819
        %2852 = vmatpush.msra.mxu0 %v2817
        %2853 = vmatpush.msra.mxu0 %v2815
        %2854 = vmatpush.msra.mxu0 %v2813
        %2855 = vmatpush.msra.mxu0 %v2811
        %2856 = vmatpush.msra.mxu0 %v2809
        %2857 = vmatpush.msra.mxu0 %v2807
        %2858 = vmatpush.msra.mxu0 %v2805
        %2859 = vmatpush.msra.mxu0 %v2803
        %2860 = vmatpush.msra.mxu0 %v2801
        %2861 = vmatpush.msra.mxu0 %v2799
        %2862 = vmatmul.f32.gmra.mxu0 %v2782
        %v2863 = vpop.f32.mrf.mxu0
        %v2864 = vadd.f32 0.0, %v2863
        %2865 = vmatmul.f32.gmra.mxu0 %v2783
        %v2866 = vpop.f32.mrf.mxu0
        %v2867 = vadd.f32 0.0, %v2866
        %2868 = vmatmul.f32.gmra.mxu0 %v2784
        %v2869 = vpop.f32.mrf.mxu0
        %v2870 = vadd.f32 0.0, %v2869
        %2871 = vmatmul.f32.gmra.mxu0 %v2785
        %v2872 = vpop.f32.mrf.mxu0
        %v2873 = vadd.f32 0.0, %v2872
        %2874 = vmatmul.f32.gmra.mxu0 %v2786
        %v2875 = vpop.f32.mrf.mxu0
        %v2876 = vadd.f32 0.0, %v2875
        %2877 = vmatmul.f32.gmra.mxu0 %v2787
        %v2878 = vpop.f32.mrf.mxu0
        %v2879 = vadd.f32 0.0, %v2878
        %2880 = vmatmul.f32.gmra.mxu0 %v2788
        %v2881 = vpop.f32.mrf.mxu0
        %v2882 = vadd.f32 0.0, %v2881
        %2883 = vmatmul.f32.gmra.mxu0 %v2789
        %v2884 = vpop.f32.mrf.mxu0
        %v2885 = vadd.f32 0.0, %v2884
        %2886 = vmatmul.f32.gmra.mxu0 %v2790
        %v2887 = vpop.f32.mrf.mxu0
        %v2888 = vadd.f32 0.0, %v2887
        %2889 = vmatmul.f32.gmra.mxu0 %v2791
        %v2890 = vpop.f32.mrf.mxu0
        %v2891 = vadd.f32 0.0, %v2890
        %2892 = vmatmul.f32.gmra.mxu0 %v2792
        %v2893 = vpop.f32.mrf.mxu0
        %v2894 = vadd.f32 0.0, %v2893
        %2895 = vmatmul.f32.gmra.mxu0 %v2793
        %v2896 = vpop.f32.mrf.mxu0
        %v2897 = vadd.f32 0.0, %v2896
        %2898 = vmatmul.f32.gmra.mxu0 %v2794
        %v2899 = vpop.f32.mrf.mxu0
        %v2900 = vadd.f32 0.0, %v2899
        %2901 = vmatmul.f32.gmra.mxu0 %v2795
        %v2902 = vpop.f32.mrf.mxu0
        %v2903 = vadd.f32 0.0, %v2902
        %2904 = vmatmul.f32.gmra.mxu0 %v2796
        %v2905 = vpop.f32.mrf.mxu0
        %v2906 = vadd.f32 0.0, %v2905
        %2907 = vmatmul.f32.gmra.mxu0 %v2797
        %v2908 = vpop.f32.mrf.mxu0
        %v2909 = vadd.f32 0.0, %v2908
        %2910 = vdwg.mxu0
        %2927 = vrot.lane.b32.xlu0 %v1900, 32
        %v2928 = vpop.permute.xlu0 %2927
        %2929 = vrot.lane.b32.xlu0 %v1903, 32
        %v2930 = vpop.permute.xlu0 %2929
        %2931 = vrot.lane.b32.xlu0 %v1906, 32
        %v2932 = vpop.permute.xlu0 %2931
        %2933 = vrot.lane.b32.xlu0 %v1909, 32
        %v2934 = vpop.permute.xlu0 %2933
        %2935 = vrot.lane.b32.xlu0 %v1912, 32
        %v2936 = vpop.permute.xlu0 %2935
        %2937 = vrot.lane.b32.xlu0 %v1915, 32
        %v2938 = vpop.permute.xlu0 %2937
        %2939 = vrot.lane.b32.xlu0 %v1918, 32
        %v2940 = vpop.permute.xlu0 %2939
        %2941 = vrot.lane.b32.xlu0 %v1921, 32
        %v2942 = vpop.permute.xlu0 %2941
        %2943 = vrot.lane.b32.xlu0 %v1924, 32
        %v2944 = vpop.permute.xlu0 %2943
        %2945 = vrot.lane.b32.xlu0 %v1927, 32
        %v2946 = vpop.permute.xlu0 %2945
        %2947 = vrot.lane.b32.xlu0 %v1930, 32
        %v2948 = vpop.permute.xlu0 %2947
        %2949 = vrot.lane.b32.xlu0 %v1933, 32
        %v2950 = vpop.permute.xlu0 %2949
        %2951 = vrot.lane.b32.xlu0 %v1936, 32
        %v2952 = vpop.permute.xlu0 %2951
        %2953 = vrot.lane.b32.xlu0 %v1939, 32
        %v2954 = vpop.permute.xlu0 %2953
        %2955 = vrot.lane.b32.xlu0 %v1942, 32
        %v2956 = vpop.permute.xlu0 %2955
        %2957 = vrot.lane.b32.xlu0 %v1945, 32
        %v2958 = vpop.permute.xlu0 %2957
        %2991 = vrot.lane.b32.xlu0 %v2382, 64
        %v2992 = vpop.permute.xlu0 %2991
        %2993 = vrot.lane.b32.xlu0 %v2385, 64
        %v2994 = vpop.permute.xlu0 %2993
        %2995 = vrot.lane.b32.xlu0 %v2388, 64
        %v2996 = vpop.permute.xlu0 %2995
        %2997 = vrot.lane.b32.xlu0 %v2391, 64
        %v2998 = vpop.permute.xlu0 %2997
        %2999 = vrot.lane.b32.xlu0 %v2394, 64
        %v3000 = vpop.permute.xlu0 %2999
        %3001 = vrot.lane.b32.xlu0 %v2397, 64
        %v3002 = vpop.permute.xlu0 %3001
        %3003 = vrot.lane.b32.xlu0 %v2400, 64
        %v3004 = vpop.permute.xlu0 %3003
        %3005 = vrot.lane.b32.xlu0 %v2403, 64
        %v3006 = vpop.permute.xlu0 %3005
        %3007 = vrot.lane.b32.xlu0 %v2406, 64
        %v3008 = vpop.permute.xlu0 %3007
        %3009 = vrot.lane.b32.xlu0 %v2409, 64
        %v3010 = vpop.permute.xlu0 %3009
        %3011 = vrot.lane.b32.xlu0 %v2412, 64
        %v3012 = vpop.permute.xlu0 %3011
        %3013 = vrot.lane.b32.xlu0 %v2415, 64
        %v3014 = vpop.permute.xlu0 %3013
        %3015 = vrot.lane.b32.xlu0 %v2418, 64
        %v3016 = vpop.permute.xlu0 %3015
        %3017 = vrot.lane.b32.xlu0 %v2421, 64
        %v3018 = vpop.permute.xlu0 %3017
        %3019 = vrot.lane.b32.xlu0 %v2424, 64
        %v3020 = vpop.permute.xlu0 %3019
        %3021 = vrot.lane.b32.xlu0 %v2427, 64
        %v3022 = vpop.permute.xlu0 %3021
        %3055 = vrot.lane.b32.xlu0 %v2864, 96
        %v3056 = vpop.permute.xlu0 %3055
        %3057 = vrot.lane.b32.xlu0 %v2867, 96
        %v3058 = vpop.permute.xlu0 %3057
        %3059 = vrot.lane.b32.xlu0 %v2870, 96
        %v3060 = vpop.permute.xlu0 %3059
        %3061 = vrot.lane.b32.xlu0 %v2873, 96
        %v3062 = vpop.permute.xlu0 %3061
        %3063 = vrot.lane.b32.xlu0 %v2876, 96
        %v3064 = vpop.permute.xlu0 %3063
        %3065 = vrot.lane.b32.xlu0 %v2879, 96
        %v3066 = vpop.permute.xlu0 %3065
        %3067 = vrot.lane.b32.xlu0 %v2882, 96
        %v3068 = vpop.permute.xlu0 %3067
        %3069 = vrot.lane.b32.xlu0 %v2885, 96
        %v3070 = vpop.permute.xlu0 %3069
        %3071 = vrot.lane.b32.xlu0 %v2888, 96
        %v3072 = vpop.permute.xlu0 %3071
        %3073 = vrot.lane.b32.xlu0 %v2891, 96
        %v3074 = vpop.permute.xlu0 %3073
        %3075 = vrot.lane.b32.xlu0 %v2894, 96
        %v3076 = vpop.permute.xlu0 %3075
        %3077 = vrot.lane.b32.xlu0 %v2897, 96
        %v3078 = vpop.permute.xlu0 %3077
        %3079 = vrot.lane.b32.xlu0 %v2900, 96
        %v3080 = vpop.permute.xlu0 %3079
        %3081 = vrot.lane.b32.xlu0 %v2903, 96
        %v3082 = vpop.permute.xlu0 %3081
        %3083 = vrot.lane.b32.xlu0 %v2906, 96
        %v3084 = vpop.permute.xlu0 %3083
        %3085 = vrot.lane.b32.xlu0 %v2909, 96
        %v3086 = vpop.permute.xlu0 %3085
        %v3103 = vsel %vm1046, %v1402, %v2928
        %v3104 = vsel %vm1046, %v1405, %v2930
        %v3105 = vsel %vm1046, %v1408, %v2932
        %v3106 = vsel %vm1046, %v1411, %v2934
        %v3107 = vsel %vm1046, %v1414, %v2936
        %v3108 = vsel %vm1046, %v1417, %v2938
        %v3109 = vsel %vm1046, %v1420, %v2940
        %v3110 = vsel %vm1046, %v1423, %v2942
        %v3111 = vsel %vm1046, %v1426, %v2944
        %v3112 = vsel %vm1046, %v1429, %v2946
        %v3113 = vsel %vm1046, %v1432, %v2948
        %v3114 = vsel %vm1046, %v1435, %v2950
        %v3115 = vsel %vm1046, %v1438, %v2952
        %v3116 = vsel %vm1046, %v1441, %v2954
        %v3117 = vsel %vm1046, %v1444, %v2956
        %v3118 = vsel %vm1046, %v1447, %v2958
        %vm3119 = vcmask 523264
        %v3120 = vsel %vm3119, %v3103, %v2992
        %v3121 = vsel %vm3119, %v3104, %v2994
        %v3122 = vsel %vm3119, %v3105, %v2996
        %v3123 = vsel %vm3119, %v3106, %v2998
        %v3124 = vsel %vm3119, %v3107, %v3000
        %v3125 = vsel %vm3119, %v3108, %v3002
        %v3126 = vsel %vm3119, %v3109, %v3004
        %v3127 = vsel %vm3119, %v3110, %v3006
        %v3128 = vsel %vm3119, %v3111, %v3008
        %v3129 = vsel %vm3119, %v3112, %v3010
        %v3130 = vsel %vm3119, %v3113, %v3012
        %v3131 = vsel %vm3119, %v3114, %v3014
        %v3132 = vsel %vm3119, %v3115, %v3016
        %v3133 = vsel %vm3119, %v3116, %v3018
        %v3134 = vsel %vm3119, %v3117, %v3020
        %v3135 = vsel %vm3119, %v3118, %v3022
        %vm3136 = vcmask 785408
        %v3137 = vsel %vm3136, %v3120, %v3056
        %v3138 = vsel %vm3136, %v3121, %v3058
        %v3139 = vsel %vm3136, %v3122, %v3060
        %v3140 = vsel %vm3136, %v3123, %v3062
        %v3141 = vsel %vm3136, %v3124, %v3064
        %v3142 = vsel %vm3136, %v3125, %v3066
        %v3143 = vsel %vm3136, %v3126, %v3068
        %v3144 = vsel %vm3136, %v3127, %v3070
        %v3145 = vsel %vm3136, %v3128, %v3072
        %v3146 = vsel %vm3136, %v3129, %v3074
        %v3147 = vsel %vm3136, %v3130, %v3076
        %v3148 = vsel %vm3136, %v3131, %v3078
        %v3149 = vsel %vm3136, %v3132, %v3080
        %v3150 = vsel %vm3136, %v3133, %v3082
        %v3151 = vsel %vm3136, %v3134, %v3084
        %v3152 = vsel %vm3136, %v3135, %v3086
        %v3153 = vld [vmem:[#allocation10] sm:$0xff]
        %v3154 = vld [vmem:[#allocation10 + $0x8] sm:$0xff]
        %v3155 = vld [vmem:[#allocation10 + $0x10] sm:$0xff]
        %v3156 = vld [vmem:[#allocation10 + $0x18] sm:$0xff]
        %v3157 = vld [vmem:[#allocation10 + $0x20] sm:$0xff]
        %v3158 = vld [vmem:[#allocation10 + $0x28] sm:$0xff]
        %v3159 = vld [vmem:[#allocation10 + $0x30] sm:$0xff]
        %v3160 = vld [vmem:[#allocation10 + $0x38] sm:$0xff]
        %v3161 = vld [vmem:[#allocation10 + $0x40] sm:$0xff]
        %v3162 = vld [vmem:[#allocation10 + $0x48] sm:$0xff]
        %v3163 = vld [vmem:[#allocation10 + $0x50] sm:$0xff]
        %v3164 = vld [vmem:[#allocation10 + $0x58] sm:$0xff]
        %v3165 = vld [vmem:[#allocation10 + $0x60] sm:$0xff]
        %v3166 = vld [vmem:[#allocation10 + $0x68] sm:$0xff]
        %v3167 = vld [vmem:[#allocation10 + $0x70] sm:$0xff]
        %v3168 = vld [vmem:[#allocation10 + $0x78] sm:$0xff]
        %v3169 = vld [vmem:[%s6] sm:$0x1]
        %v3171 = vperm.slane %v3169, 0
        %3173 = vmatpush.msra.mxu0 %v3168
        %3174 = vmatpush.msra.mxu0 %v3167
        %3175 = vmatpush.msra.mxu0 %v3166
        %3176 = vmatpush.msra.mxu0 %v3165
        %3177 = vmatpush.msra.mxu0 %v3164
        %3178 = vmatpush.msra.mxu0 %v3163
        %3179 = vmatpush.msra.mxu0 %v3162
        %3180 = vmatpush.msra.mxu0 %v3161
        %3181 = vmatpush.msra.mxu0 %v3160
        %3182 = vmatpush.msra.mxu0 %v3159
        %3183 = vmatpush.msra.mxu0 %v3158
        %3184 = vmatpush.msra.mxu0 %v3157
        %3185 = vmatpush.msra.mxu0 %v3156
        %3186 = vmatpush.msra.mxu0 %v3155
        %3187 = vmatpush.msra.mxu0 %v3154
        %3188 = vmatpush.msra.mxu0 %v3153
        %3189 = vmatmul.f32.gmra.mxu0 %v3137
        %v3190 = vpop.f32.mrf.mxu0
        %v3191 = vadd.f32 %v3171, %v3190
        %3192 = vmatmul.f32.gmra.mxu0 %v3138
        %v3193 = vpop.f32.mrf.mxu0
        %v3194 = vadd.f32 %v3171, %v3193
        %3195 = vmatmul.f32.gmra.mxu0 %v3139
        %v3196 = vpop.f32.mrf.mxu0
        %v3197 = vadd.f32 %v3171, %v3196
        %3198 = vmatmul.f32.gmra.mxu0 %v3140
        %v3199 = vpop.f32.mrf.mxu0
        %v3200 = vadd.f32 %v3171, %v3199
        %3201 = vmatmul.f32.gmra.mxu0 %v3141
        %v3202 = vpop.f32.mrf.mxu0
        %v3203 = vadd.f32 %v3171, %v3202
        %3204 = vmatmul.f32.gmra.mxu0 %v3142
        %v3205 = vpop.f32.mrf.mxu0
        %v3206 = vadd.f32 %v3171, %v3205
        %3207 = vmatmul.f32.gmra.mxu0 %v3143
        %v3208 = vpop.f32.mrf.mxu0
        %v3209 = vadd.f32 %v3171, %v3208
        %3210 = vmatmul.f32.gmra.mxu0 %v3144
        %v3211 = vpop.f32.mrf.mxu0
        %v3212 = vadd.f32 %v3171, %v3211
        %3213 = vmatmul.f32.gmra.mxu0 %v3145
        %v3214 = vpop.f32.mrf.mxu0
        %v3215 = vadd.f32 %v3171, %v3214
        %3216 = vmatmul.f32.gmra.mxu0 %v3146
        %v3217 = vpop.f32.mrf.mxu0
        %v3218 = vadd.f32 %v3171, %v3217
        %3219 = vmatmul.f32.gmra.mxu0 %v3147
        %v3220 = vpop.f32.mrf.mxu0
        %v3221 = vadd.f32 %v3171, %v3220
        %3222 = vmatmul.f32.gmra.mxu0 %v3148
        %v3223 = vpop.f32.mrf.mxu0
        %v3224 = vadd.f32 %v3171, %v3223
        %3225 = vmatmul.f32.gmra.mxu0 %v3149
        %v3226 = vpop.f32.mrf.mxu0
        %v3227 = vadd.f32 %v3171, %v3226
        %3228 = vmatmul.f32.gmra.mxu0 %v3150
        %v3229 = vpop.f32.mrf.mxu0
        %v3230 = vadd.f32 %v3171, %v3229
        %3231 = vmatmul.f32.gmra.mxu0 %v3151
        %v3232 = vpop.f32.mrf.mxu0
        %v3233 = vadd.f32 %v3171, %v3232
        %3234 = vmatmul.f32.gmra.mxu0 %v3152
        %v3235 = vpop.f32.mrf.mxu0
        %v3236 = vadd.f32 %v3171, %v3235
        %3237 = vdwg.mxu0
        %v3238 = vadd.f32 %v361, %v3191
        %v3239 = vadd.f32 %v362, %v3194
        %v3240 = vadd.f32 %v363, %v3197
        %v3241 = vadd.f32 %v364, %v3200
        %v3242 = vadd.f32 %v365, %v3203
        %v3243 = vadd.f32 %v366, %v3206
        %v3244 = vadd.f32 %v367, %v3209
        %v3245 = vadd.f32 %v368, %v3212
        %v3246 = vadd.f32 %v369, %v3215
        %v3247 = vadd.f32 %v370, %v3218
        %v3248 = vadd.f32 %v371, %v3221
        %v3249 = vadd.f32 %v372, %v3224
        %v3250 = vadd.f32 %v373, %v3227
        %v3251 = vadd.f32 %v374, %v3230
        %v3252 = vadd.f32 %v375, %v3233
        %v3253 = vadd.f32 %v376, %v3236
        %3254 = vst [vmem:[%s360] sm:$0xff] %v3238
        %3255 = vst [vmem:[%s360 + $0x8] sm:$0xff] %v3239
        %3256 = vst [vmem:[%s360 + $0x10] sm:$0xff] %v3240
        %3257 = vst [vmem:[%s360 + $0x18] sm:$0xff] %v3241
        %3258 = vst [vmem:[%s360 + $0x20] sm:$0xff] %v3242
        %3259 = vst [vmem:[%s360 + $0x28] sm:$0xff] %v3243
        %3260 = vst [vmem:[%s360 + $0x30] sm:$0xff] %v3244
        %3261 = vst [vmem:[%s360 + $0x38] sm:$0xff] %v3245
        %3262 = vst [vmem:[%s360 + $0x40] sm:$0xff] %v3246
        %3263 = vst [vmem:[%s360 + $0x48] sm:$0xff] %v3247
        %3264 = vst [vmem:[%s360 + $0x50] sm:$0xff] %v3248
        %3265 = vst [vmem:[%s360 + $0x58] sm:$0xff] %v3249
        %3266 = vst [vmem:[%s360 + $0x60] sm:$0xff] %v3250
        %3267 = vst [vmem:[%s360 + $0x68] sm:$0xff] %v3251
        %3268 = vst [vmem:[%s360 + $0x70] sm:$0xff] %v3252
        %3269 = vst [vmem:[%s360 + $0x78] sm:$0xff] %v3253
        %s3270 = sand.u32 %s186, 1
        %s3271 = scalar_lea.sflag [#allocation4], %s3270
        %s3272 = sand.u32 %s186, 1
        %s3273 = smul.addr %s3272, 128
        %s3274 = scalar_lea.vmem [#allocation11], %s3273
        // Predicated region
        $region69: #{tpu_custom_call.1} parent=47 // pred_check
          %p3275 = pneg %p196
        $region70: #{tpu_custom_call.1} parent=47 // pred_check_branch
          %3277 = sbr.rel (%p3275) target = $region72
        $region71: #{tpu_custom_call.1} parent=47 // pred_region
          %3279 = vsyncadd %s3271, 0
          %s3280 = smul.addr %s26, 16
          %s3281 = smul.addr %s3280, 8
          %s3282 = scalar_lea.hbm %s7, %s3281
          %s3283 = sshll.u32 %s3274, 4
          %s3284 = int_to_ptr.vmem [resolvable:$true] %s3283
          %s3285 = sshll.u32 %s3282, 4
          %s3286 = int_to_ptr.hbm [resolvable:$true] %s3285
          %3291 = dma.vmem_to_hbm [thread:$0]  %s3284, 2048, %s3286, %s3271, 128, 128, 8
        $region72: #{tpu_custom_call.1} parent=47 // pred_fallthru
          _
      $region48: #{tpu_custom_call.1} parent=5 // pred_fallthru
        _
      %p3292 = scmp.le.s32.totalorder 2, %s21
      // Predicated region
      $region73: #{tpu_custom_call.1} parent=5 // pred_check
        %p3293 = pneg %p3292
      $region74: #{tpu_custom_call.1} parent=5 // pred_check_branch
        %3295 = sbr.rel (%p3293) target = $region76
      $region75: #{tpu_custom_call.1} parent=5 // pred_region
        %s3296 = ssub.s32 %s21, 2
        // Predicated region
        $region77: #{tpu_custom_call.1} parent=75 // pred_check
          %p3297 = pneg %p202
        $region78: #{tpu_custom_call.1} parent=75 // pred_check_branch
          %3299 = sbr.rel (%p3297) target = $region80
        $region79: #{tpu_custom_call.1} parent=75 // pred_region
          %s3300 = sand.u32 %s187, 1
          %s3301 = scalar_lea.sflag [#allocation4], %s3300
          %s3302 = sand.u32 %s187, 1
          %s3303 = smul.addr %s3302, 128
          %s3304 = scalar_lea.vmem [#allocation11], %s3303
          %3306 = dma.done %s3301, 2048
        $region80: #{tpu_custom_call.1} parent=75 // pred_fallthru
          _
      $region76: #{tpu_custom_call.1} parent=5 // pred_fallthru
        _
    $region6: #{tpu_custom_call.1} parent=1 // loop_footer
      %s25 = sadd.s32 1, %s21
    $region7: #{tpu_custom_call.1} parent=1 // loop_footer_branch
      %20 = sbr.rel target = $region3
    $region8: #{tpu_custom_call.1} parent=1 // loop_exit
      _
    %3307 = vsyncpa [#allocation3], 1
    %s3308 = scalar_lea.sflag [#allocation3], 1
    %3309 = vsyncpa %s3308, 1
    %3310 = vsyncpa [#allocation6], 1
    %3311 = vsyncpa [#allocation9], 1
    %3312 = vsyncpa [#allocation4], 1
    %s3313 = scalar_lea.sflag [#allocation4], 1
    %3314 = vsyncpa %s3313, 1

</llo_original>
